<compile_context>
chip_gen: v6e
topology: v6e:2x2x1
jax: 0.10.0
libtpu: 0.0.40
codegen_flags: <defaults>
</compile_context>

<pallas_src>
import functools

import jax
import jax.numpy as jnp
import numpy as np
from jax import lax
from jax.experimental import pallas as pl
from jax.experimental.pallas import tpu as pltpu


def _round_up(x, m):
    return ((x + m - 1) // m) * m


# ----------------------- capability probes / tuning --------------------------
@functools.lru_cache(maxsize=None)
def _single_buffer_weights_supported():
    """Probe once whether pipeline_mode=pl.Buffered(1) is accepted on this install."""
    try:
        def _k(x_ref, o_ref):
            o_ref[...] = x_ref[...] * 2.0

        x = jnp.zeros((8, 128), jnp.float32)
        out = pl.pallas_call(
            _k,
            out_shape=jax.ShapeDtypeStruct((8, 128), jnp.float32),
            grid=(1,),
            in_specs=[pl.BlockSpec((8, 128), lambda i: (0, 0),
                                   pipeline_mode=pl.Buffered(1))],
            out_specs=pl.BlockSpec((8, 128), lambda i: (0, 0)),
        )(x)
        jax.block_until_ready(out)
        return True
    except Exception:
        return False


@functools.lru_cache(maxsize=None)
def _vmem_limit_bytes():
    """Generation-aware scoped-VMEM limit (leave headroom below physical)."""
    cap = None
    try:
        cap = int(pltpu.get_tpu_info().vmem_capacity_bytes)
    except Exception:
        cap = None
    if not cap or cap <= 0:
        cap = 64 * 1024 * 1024          # conservative default (v7x per-TC)
    # ~62% of physical: 64 MiB -> 40 MiB (v7x), 128 MiB -> 80 MiB (v5e/v6e).
    return int(min(cap * 5 // 8, 100 * 1024 * 1024))


# --------------------------- kernel factory ----------------------------------
def _make_kernel(H, W, Cin, Cmid, Cout, down_sample, use_im2col):
    N = H * W
    OFF = _round_up(W + 1, 16)          # vertical halo, bf16-sublane aligned
    PADN = N + 2 * OFF

    def kernel(x_ref, w1_ref, b1_ref, w2_ref, b2_ref, w3_ref, b3_ref,
               o_ref, pad_ref, *maybe_col):
        # Zero only the vertical-halo rows of the persistent pad scratch.
        # Done every grid step (cheap) instead of behind a program_id==0
        # guard: with a "parallel" batch axis each TensorCore owns its own
        # scratch and only one of them ever sees step 0.
        pad_ref[0:OFF, :] = jnp.zeros((OFF, Cmid), jnp.bfloat16)
        pad_ref[OFF + N:PADN, :] = jnp.zeros((PADN - OFF - N, Cmid), jnp.bfloat16)

        # ---- conv1 (1x1, BN folded) [+ fused residual projection] ----------
        h = jnp.dot(x_ref[0], w1_ref[...],
                    preferred_element_type=jnp.float32) + b1_ref[...]
        if down_sample:
            res = h[:, :Cout]            # projection residual (no relu)
            h1 = h[:, Cout:]             # conv1 output
        else:
            h1 = h
        h1 = jnp.maximum(h1, 0.0).astype(jnp.bfloat16)          # (N, Cmid)
        pad_ref[OFF:OFF + N, :] = h1

        # hoisted horizontal-validity masks (shared by all three ky values)
        w_idx = lax.broadcasted_iota(jnp.int32, (N, 1), 0) % W
        valid_m1 = w_idx >= 1            # dx = -1 in-bounds
        valid_p1 = w_idx < (W - 1)       # dx = +1 in-bounds

        def tap(ky, kx):
            s = (ky - 1) * W + (kx - 1)
            t = pad_ref[OFF + s:OFF + s + N, :]                 # (N, Cmid)
            if kx == 0:
                t = jnp.where(valid_m1, t, jnp.zeros_like(t))
            elif kx == 2:
                t = jnp.where(valid_p1, t, jnp.zeros_like(t))
            return t

        # ---- conv2 (3x3, stride 1, pad 1) ----------------------------------
        if use_im2col:
            # One stacked matmul with K = 9*Cmid (good MXU occupancy when
            # Cmid is narrow).  No explicit K-padding: Mosaic pads internally.
            (col_ref,) = maybe_col
            for ky in range(3):
                for kx in range(3):
                    k = ky * 3 + kx
                    col_ref[:, k * Cmid:(k + 1) * Cmid] = tap(ky, kx)
            h2 = jnp.dot(col_ref[...], w2_ref[...],
                         preferred_element_type=jnp.float32) + b2_ref[...]
        else:
            # Direct 9-tap accumulation: per-tap K = Cmid already fills the
            # MXU; skips the col scratch and its store/reload traffic.
            acc = None
            for ky in range(3):
                for kx in range(3):
                    k = ky * 3 + kx
                    d = jnp.dot(tap(ky, kx),
                                w2_ref[k * Cmid:(k + 1) * Cmid, :],
                                preferred_element_type=jnp.float32)
                    acc = d if acc is None else acc + d
            h2 = acc + b2_ref[...]
        h2 = jnp.maximum(h2, 0.0).astype(jnp.bfloat16)          # (N, Cmid)

        # ---- conv3 (1x1, BN folded) + residual + relu -----------------------
        h3 = jnp.dot(h2, w3_ref[...],
                     preferred_element_type=jnp.float32) + b3_ref[...]
        if not down_sample:
            # identity residual, read late straight from the pinned x block
            res = x_ref[0].astype(jnp.float32)
        o_ref[0] = jnp.maximum(h3 + res, 0.0).astype(o_ref.dtype)

    return kernel, PADN


# ------------------------- parameter folding ---------------------------------
def _fold_params(params, down_sample):
    """Fold eval-mode BN scales into conv weights; cast weights to bf16.

    For down_sample blocks the projection weight/bias are concatenated in
    front of conv1's ([wd | w1], [bd | b1]) so conv1 and the projection run
    as a single matmul over x.
    """
    bf = jnp.bfloat16
    Cmid = params["w1"].shape[1]
    fp = {}
    w1 = (params["w1"] * params["s1"]).astype(bf)                # (Cin, Cmid)
    b1 = params["b1"]
    if down_sample:
        wd = (params["wd"] * params["sd"]).astype(bf)            # (Cin, Cout)
        fp["w1"] = jnp.concatenate([wd, w1], axis=1)             # (Cin, Cout+Cmid)
        fp["b1"] = jnp.concatenate([params["bd"], b1], axis=1)   # (1, Cout+Cmid)
    else:
        fp["w1"], fp["b1"] = w1, b1
    fp["w2"] = (params["w2"] * params["s2"]).reshape(9 * Cmid, Cmid).astype(bf)
    fp["b2"] = params["b2"]
    fp["w3"] = (params["w3"] * params["s3"]).astype(bf)          # (Cmid, Cout)
    fp["b3"] = params["b3"]
    return fp


# ------------------------------ wrappers --------------------------------------
def bottleneck_forward_nhwc(x_nhwc, params, down_sample=True, conv2_mode=None):
    """x_nhwc: (B, H, W, Cin) -> (B, H, W, Cout) bf16, NHWC end-to-end."""
    B, H, W, Cin = x_nhwc.shape
    Cmid = params["w1"].shape[1]
    Cout = params["w3"].shape[1]
    if not down_sample and Cin != Cout:
        raise ValueError(
            f"identity residual requires Cin == Cout (got {Cin} vs {Cout})")
    N = H * W

    if conv2_mode is None:
        # im2col stacks K to 9*Cmid (fills the MXU when Cmid is narrow); once
        # Cmid >= 128 each tap already fills the contraction width, so
        # accumulate directly and skip the col scratch entirely.
        conv2_mode = "im2col" if Cmid < 128 else "direct"
    use_im2col = conv2_mode == "im2col"

    fp = _fold_params(params, down_sample)
    x2 = x_nhwc.reshape(B, N, Cin).astype(jnp.bfloat16)

    kernel, PADN = _make_kernel(H, W, Cin, Cmid, Cout, down_sample, use_im2col)

    inputs = [x2, fp["w1"], fp["b1"], fp["w2"], fp["b2"], fp["w3"], fp["b3"]]

    single_buf = _single_buffer_weights_supported()

    def const_spec(arr):
        nd = arr.ndim
        idx = lambda b, _nd=nd: (0,) * _nd
        if single_buf:
            # Constant index map -> weights never change; one buffer suffices.
            return pl.BlockSpec(arr.shape, idx, pipeline_mode=pl.Buffered(1))
        return pl.BlockSpec(arr.shape, idx)

    in_specs = [pl.BlockSpec((1, N, Cin), lambda b: (b, 0, 0))]
    in_specs += [const_spec(a) for a in inputs[1:]]

    scratch_shapes = [pltpu.VMEM((PADN, Cmid), jnp.bfloat16)]
    if use_im2col:
        scratch_shapes.append(pltpu.VMEM((N, 9 * Cmid), jnp.bfloat16))

    # TODO(synk): add spatial row-block tiling (grid=(B, H//rows) with a
    #             1-row halo) so full 56x56 maps fit v7x's 64 MiB VMEM and
    #             both of its TensorCores get work at small batch sizes.
    out = pl.pallas_call(
        kernel,
        out_shape=jax.ShapeDtypeStruct((B, N, Cout), jnp.bfloat16),
        grid=(B,),
        in_specs=in_specs,
        out_specs=pl.BlockSpec((1, N, Cout), lambda b: (b, 0, 0)),
        scratch_shapes=scratch_shapes,
        compiler_params=pltpu.CompilerParams(
            dimension_semantics=("parallel",),
            vmem_limit_bytes=_vmem_limit_bytes()),
    )(*inputs)
    return out.reshape(B, H, W, Cout)


def bottleneck_forward(x_nchw, params, down_sample=True, conv2_mode=None):
    """PyTorch-layout compatibility wrapper: (B, Cin, H, W) -> (B, Cout, H, W) f32."""
    x_nhwc = jnp.transpose(x_nchw, (0, 2, 3, 1))
    out = bottleneck_forward_nhwc(x_nhwc, params, down_sample, conv2_mode)
    return jnp.transpose(out, (0, 3, 1, 2)).astype(jnp.float32)


# ------------------------- pure-JAX reference ---------------------------------
def reference_nhwc(x, p, down_sample=True):
    """Unfused f32 reference (conv -> eval-BN scale/bias -> relu), NHWC."""
    B, H, W, Cin = x.shape
    Cmid = p["w1"].shape[1]

    def bn(h, s, b):
        return h * s[0] + b[0]

    h1 = jax.nn.relu(bn(jnp.einsum("bhwc,co->bhwo", x, p["w1"]), p["s1"], p["b1"]))
    hp = jnp.pad(h1, ((0, 0), (1, 1), (1, 1), (0, 0)))
    w2 = p["w2"].reshape(3, 3, Cmid, Cmid)
    acc = jnp.zeros_like(h1)
    for ky in range(3):
        for kx in range(3):
            acc = acc + jnp.einsum("bhwc,co->bhwo",
                                   hp[:, ky:ky + H, kx:kx + W, :], w2[ky, kx])
    h2 = jax.nn.relu(bn(acc, p["s2"], p["b2"]))
    h3 = bn(jnp.einsum("bhwc,co->bhwo", h2, p["w3"]), p["s3"], p["b3"])
    if down_sample:
        res = bn(jnp.einsum("bhwc,co->bhwo", x, p["wd"]), p["sd"], p["bd"])
    else:
        res = x
    return jax.nn.relu(h3 + res)


def _folded_ref_params(params, down_sample):
    """Reference params carrying the exact bf16-rounded folded weights."""
    f32 = jnp.float32
    Cmid = params["w1"].shape[1]
    Cout = params["w3"].shape[1]
    ones = lambda C: jnp.ones((1, C), f32)
    fold = lambda w, s: (w * s).astype(jnp.bfloat16).astype(f32)
    q = dict(w1=fold(params["w1"], params["s1"]), s1=ones(Cmid), b1=params["b1"],
             w2=fold(params["w2"], params["s2"]), s2=ones(Cmid), b2=params["b2"],
             w3=fold(params["w3"], params["s3"]), s3=ones(Cout), b3=params["b3"])
    if down_sample:
        q.update(wd=fold(params["wd"], params["sd"]), sd=ones(Cout),
                 bd=params["bd"])
    return q


# ------------------------------ test setup ------------------------------------
def make_params(key, Cin, Cmid, Cout, down_sample, eps=1e-5):
    ks = jax.random.split(key, 20)

    def bn_fold(kg, kb, km, kv, C):
        gamma = 0.5 + jax.random.uniform(kg, (C,), jnp.float32)
        beta = 0.1 * jax.random.normal(kb, (C,), jnp.float32)
        mean = 0.1 * jax.random.normal(km, (C,), jnp.float32)
        var = 0.5 + jax.random.uniform(kv, (C,), jnp.float32)
        scale = gamma / jnp.sqrt(var + eps)
        bias = beta - mean * scale
        return scale[None, :], bias[None, :]

    p = {}
    # conv weights stored pre-transposed: (Cin, Cout); conv2 as (9, Cmid, Cmid)
    p["w1"] = 0.1 * jax.random.normal(ks[0], (Cin, Cmid), jnp.float32)
    p["w2"] = 0.1 * jax.random.normal(ks[1], (9, Cmid, Cmid), jnp.float32)
    p["w3"] = 0.1 * jax.random.normal(ks[2], (Cmid, Cout), jnp.float32)
    p["s1"], p["b1"] = bn_fold(ks[4], ks[5], ks[6], ks[7], Cmid)
    p["s2"], p["b2"] = bn_fold(ks[8], ks[9], ks[10], ks[11], Cmid)
    p["s3"], p["b3"] = bn_fold(ks[12], ks[13], ks[14], ks[15], Cout)
    if down_sample:
        p["wd"] = 0.1 * jax.random.normal(ks[3], (Cin, Cout), jnp.float32)
        p["sd"], p["bd"] = bn_fold(ks[16], ks[17], ks[18], ks[19], Cout)
    return p


if __name__ == "__main__":
    B, H, W = 2, 16, 16
    # (Cin, Cmid, Cout, down_sample, conv2_mode)
    configs = [
        (4, 4, 8, True, None),        # projection residual, fused conv1|proj, im2col conv2
        (8, 4, 8, False, None),       # identity residual (Cin == Cout), im2col conv2
        (4, 4, 8, True, "direct"),    # direct 9-tap-accumulation conv2 path
    ]

    key = jax.random.PRNGKey(0)
    for Cin, Cmid, Cout, ds, mode in configs:
        kp, kx, key = jax.random.split(key, 3)
        params = make_params(kp, Cin, Cmid, Cout, ds)
        x_nchw = jax.random.normal(kx, (B, Cin, H, W), jnp.float32)
        x_nhwc = jnp.transpose(x_nchw, (0, 2, 3, 1))

        out = bottleneck_forward_nhwc(x_nhwc, params, down_sample=ds,
                                      conv2_mode=mode)
        out = jax.block_until_ready(out)
        out_f32 = np.asarray(jnp.asarray(out, jnp.float32))

        # strict check: reference fed the exact bf16-folded weights / bf16 x.
        q = _folded_ref_params(params, ds)
        x_bf = x_nhwc.astype(jnp.bfloat16).astype(jnp.float32)
        ref_strict = np.asarray(reference_nhwc(x_bf, q, ds))
        np.testing.assert_allclose(out_f32, ref_strict, rtol=2e-2, atol=2e-2)

        # loose check: original unfused f32 module math (validates BN folding).
        ref_loose = np.asarray(reference_nhwc(x_nhwc, params, ds))
        np.testing.assert_allclose(out_f32, ref_loose, rtol=6e-2, atol=6e-2)

    # also exercise the NCHW (PyTorch-layout) compatibility wrapper.
    Cin, Cmid, Cout, ds, _ = configs[0]
    params = make_params(jax.random.PRNGKey(1), Cin, Cmid, Cout, ds)
    x_nchw = jax.random.normal(jax.random.PRNGKey(2), (B, Cin, H, W), jnp.float32)
    out_nchw = jax.block_until_ready(bottleneck_forward(x_nchw, params, ds))
    ref = reference_nhwc(jnp.transpose(x_nchw, (0, 2, 3, 1)), params, ds)
    np.testing.assert_allclose(np.asarray(out_nchw),
                               np.asarray(jnp.transpose(ref, (0, 3, 1, 2))),
                               rtol=6e-2, atol=6e-2)

    print("KERNEL_OK")
</pallas_src>

<mosaic_0001>
module attributes {stable_mosaic.version = 11 : i64} {
  func.func @_k(%arg0: i32, %arg1: memref<8x128xf32, #tpu.memory_space<vmem>>, %arg2: memref<8x128xf32, #tpu.memory_space<vmem>>) attributes {dimension_semantics = [#tpu.dimension_semantics<arbitrary>], iteration_bounds = array<i64: 1>, scalar_prefetch = 0 : i64, scratch_operands = 0 : i64, tpu.core_type = #tpu.core_type<tc>, window_params = [{pipeline_mode = #tpu.pipeline_mode<synchronous>, transform_indices = @transform_0, window_bounds = array<i64: 8, 128>}, {pipeline_mode = #tpu.pipeline_mode<synchronous>, transform_indices = @transform_1, window_bounds = array<i64: 8, 128>}]} {
    %c0 = arith.constant 0 : index
    %c0_0 = arith.constant 0 : index
    %0 = vector.load %arg1[%c0, %c0_0] : memref<8x128xf32, #tpu.memory_space<vmem>>, vector<8x128xf32>
    %cst = arith.constant 2.000000e+00 : f32
    %1 = vector.broadcast %cst : f32 to vector<8x128xf32>
    %2 = arith.mulf %0, %1 : vector<8x128xf32>
    %c0_1 = arith.constant 0 : index
    %c0_2 = arith.constant 0 : index
    %3 = vector.load %arg2[%c0_1, %c0_2] : memref<8x128xf32, #tpu.memory_space<vmem>>, vector<8x128xf32>
    tpu.vector_store %arg2[%c0_1, %c0_2], %2 {strides = array<i32>} : memref<8x128xf32, #tpu.memory_space<vmem>>, vector<8x128xf32>,
    return
  }
  func.func @transform_0(%arg0: i32) -> (i32, i32) {
    %c0_i32 = arith.constant 0 : i32
    %c0_i32_0 = arith.constant 0 : i32
    %c0_i32_1 = arith.constant 0 : i32
    return %c0_i32, %c0_i32_0 : i32, i32
  }
  func.func @transform_1(%arg0: i32) -> (i32, i32) {
    %c0_i32 = arith.constant 0 : i32
    %c0_i32_0 = arith.constant 0 : i32
    %c0_i32_1 = arith.constant 0 : i32
    return %c0_i32, %c0_i32_0 : i32, i32
  }
}

module attributes {stable_mosaic.version = 11 : i64} {
  func.func @kernel(%arg0: i32, %arg1: memref<1x256x4xbf16, #tpu.memory_space<vmem>>, %arg2: memref<4x12xbf16, #tpu.memory_space<vmem>>, %arg3: memref<1x12xf32, #tpu.memory_space<vmem>>, %arg4: memref<36x4xbf16, #tpu.memory_space<vmem>>, %arg5: memref<1x4xf32, #tpu.memory_space<vmem>>, %arg6: memref<4x8xbf16, #tpu.memory_space<vmem>>, %arg7: memref<1x8xf32, #tpu.memory_space<vmem>>, %arg8: memref<1x256x8xbf16, #tpu.memory_space<vmem>>, %arg9: memref<320x4xbf16, #tpu.memory_space<vmem>>, %arg10: memref<256x36xbf16, #tpu.memory_space<vmem>>) attributes {dimension_semantics = [#tpu.dimension_semantics<parallel>], iteration_bounds = array<i64: 2>, scalar_prefetch = 0 : i64, scratch_operands = 2 : i64, tpu.core_type = #tpu.core_type<tc>, window_params = [{transform_indices = @transform_0, window_bounds = array<i64: 1, 256, 4>}, {pipeline_mode = #tpu.pipeline_mode<synchronous>, transform_indices = @transform_1, window_bounds = array<i64: 4, 12>}, {pipeline_mode = #tpu.pipeline_mode<synchronous>, transform_indices = @transform_2, window_bounds = array<i64: 1, 12>}, {pipeline_mode = #tpu.pipeline_mode<synchronous>, transform_indices = @transform_3, window_bounds = array<i64: 36, 4>}, {pipeline_mode = #tpu.pipeline_mode<synchronous>, transform_indices = @transform_4, window_bounds = array<i64: 1, 4>}, {pipeline_mode = #tpu.pipeline_mode<synchronous>, transform_indices = @transform_5, window_bounds = array<i64: 4, 8>}, {pipeline_mode = #tpu.pipeline_mode<synchronous>, transform_indices = @transform_6, window_bounds = array<i64: 1, 8>}, {transform_indices = @transform_7, window_bounds = array<i64: 1, 256, 8>}]} {
    %cst = arith.constant 0.000000e+00 : bf16
    %0 = vector.broadcast %cst : bf16 to vector<32x4xbf16>
    %c0 = arith.constant 0 : index
    %c0_0 = arith.constant 0 : index
    %1 = vector.load %arg9[%c0, %c0_0] : memref<320x4xbf16, #tpu.memory_space<vmem>>, vector<32x4xbf16>
    tpu.vector_store %arg9[%c0, %c0_0], %0 {strides = array<i32>} : memref<320x4xbf16, #tpu.memory_space<vmem>>, vector<32x4xbf16>,
    %cst_1 = arith.constant 0.000000e+00 : bf16
    %2 = vector.broadcast %cst_1 : bf16 to vector<32x4xbf16>
    %c288 = arith.constant 288 : index
    %c0_2 = arith.constant 0 : index
    %3 = vector.load %arg9[%c288, %c0_2] : memref<320x4xbf16, #tpu.memory_space<vmem>>, vector<32x4xbf16>
    tpu.vector_store %arg9[%c288, %c0_2], %2 {strides = array<i32>} : memref<320x4xbf16, #tpu.memory_space<vmem>>, vector<32x4xbf16>,
    %c0_3 = arith.constant 0 : index
    %c0_4 = arith.constant 0 : index
    %c0_5 = arith.constant 0 : index
    %4 = vector.load %arg1[%c0_3, %c0_4, %c0_5] : memref<1x256x4xbf16, #tpu.memory_space<vmem>>, vector<1x256x4xbf16>
    %5 = vector.shape_cast %4 : vector<1x256x4xbf16> to vector<256x4xbf16>
    %c0_6 = arith.constant 0 : index
    %c0_7 = arith.constant 0 : index
    %6 = vector.load %arg2[%c0_6, %c0_7] : memref<4x12xbf16, #tpu.memory_space<vmem>>, vector<4x12xbf16>
    %cst_8 = arith.constant dense<0.000000e+00> : vector<256x12xf32>
    %7 = tpu.matmul %5, %6, %cst_8 {dimension_numbers = #tpu.dot_dimension_numbers<[1], [0], [0], [1], [0, 0, 1, 1], [], []>} : vector<256x4xbf16>, vector<4x12xbf16>, vector<256x12xf32> -> vector<256x12xf32>
    %c0_9 = arith.constant 0 : index
    %c0_10 = arith.constant 0 : index
    %8 = vector.load %arg3[%c0_9, %c0_10] : memref<1x12xf32, #tpu.memory_space<vmem>>, vector<1x12xf32>
    %9 = vector.broadcast %8 : vector<1x12xf32> to vector<256x12xf32>
    %10 = arith.addf %7, %9 : vector<256x12xf32>
    %11 = vector.extract_strided_slice %10 {offsets = [0, 0], sizes = [256, 8], strides = [1, 1]} : vector<256x12xf32> to vector<256x8xf32>
    %12 = vector.extract_strided_slice %10 {offsets = [0, 8], sizes = [256, 4], strides = [1, 1]} : vector<256x12xf32> to vector<256x4xf32>
    %cst_11 = arith.constant 0.000000e+00 : f32
    %13 = vector.broadcast %cst_11 : f32 to vector<256x4xf32>
    %14 = arith.maximumf %12, %13 : vector<256x4xf32>
    %15 = arith.truncf %14 : vector<256x4xf32> to vector<256x4xbf16>
    %c32 = arith.constant 32 : index
    %c0_12 = arith.constant 0 : index
    %16 = vector.load %arg9[%c32, %c0_12] : memref<320x4xbf16, #tpu.memory_space<vmem>>, vector<256x4xbf16>
    tpu.vector_store %arg9[%c32, %c0_12], %15 {strides = array<i32>} : memref<320x4xbf16, #tpu.memory_space<vmem>>, vector<256x4xbf16>,
    %17 = tpu.iota {dimensions = array<i32: 0>} : vector<256x1xi32>
    %c16_i32 = arith.constant 16 : i32
    %c0_i32 = arith.constant 0 : i32
    %18 = arith.cmpi eq, %c16_i32, %c0_i32 : i32
    %c1_i32 = arith.constant 1 : i32
    %19 = arith.select %18, %c1_i32, %c16_i32 : i32
    %20 = vector.broadcast %19 : i32 to vector<256x1xi32>
    %21 = arith.remsi %17, %20 : vector<256x1xi32>
    %c0_i32_13 = arith.constant 0 : i32
    %22 = vector.broadcast %c0_i32_13 : i32 to vector<256x1xi32>
    %23 = arith.cmpi ne, %21, %22 : vector<256x1xi32>
    %c0_i32_14 = arith.constant 0 : i32
    %24 = vector.broadcast %c0_i32_14 : i32 to vector<256x1xi32>
    %25 = arith.cmpi slt, %21, %24 : vector<256x1xi32>
    %c0_i32_15 = arith.constant 0 : i32
    %26 = arith.cmpi slt, %19, %c0_i32_15 : i32
    %27 = vector.broadcast %26 : i1 to vector<256x1xi1>
    %28 = vector.broadcast %27 : vector<256x1xi1> to vector<256x1xi1>
    %29 = arith.xori %25, %28 : vector<256x1xi1>
    %30 = arith.andi %29, %23 : vector<256x1xi1>
    %31 = vector.broadcast %19 : i32 to vector<256x1xi32>
    %32 = arith.addi %21, %31 : vector<256x1xi32>
    %33 = arith.select %30, %32, %21 : vector<256x1xi1>, vector<256x1xi32>
    %c1_i32_16 = arith.constant 1 : i32
    %34 = vector.broadcast %c1_i32_16 : i32 to vector<256x1xi32>
    %35 = arith.cmpi sge, %33, %34 : vector<256x1xi32>
    %c15_i32 = arith.constant 15 : i32
    %36 = vector.broadcast %c15_i32 : i32 to vector<256x1xi32>
    %37 = arith.cmpi slt, %33, %36 : vector<256x1xi32>
    %c15 = arith.constant 15 : index
    %c0_17 = arith.constant 0 : index
    %38 = vector.load %arg9[%c15, %c0_17] : memref<320x4xbf16, #tpu.memory_space<vmem>>, vector<256x4xbf16>
    %cst_18 = arith.constant 0.000000e+00 : bf16
    %39 = vector.broadcast %cst_18 : bf16 to vector<256x4xbf16>
    %40 = vector.shape_cast %35 : vector<256x1xi1> to vector<256x1xi1>
    %41 = vector.broadcast %40 : vector<256x1xi1> to vector<256x4xi1>
    %42 = arith.select %41, %38, %39 : vector<256x4xi1>, vector<256x4xbf16>
    %c0_19 = arith.constant 0 : index
    %c0_20 = arith.constant 0 : index
    %43 = vector.load %arg10[%c0_19, %c0_20] : memref<256x36xbf16, #tpu.memory_space<vmem>>, vector<256x4xbf16>
    tpu.vector_store %arg10[%c0_19, %c0_20], %42 {strides = array<i32>} : memref<256x36xbf16, #tpu.memory_space<vmem>>, vector<256x4xbf16>,
    %c16 = arith.constant 16 : index
    %c0_21 = arith.constant 0 : index
    %44 = vector.load %arg9[%c16, %c0_21] : memref<320x4xbf16, #tpu.memory_space<vmem>>, vector<256x4xbf16>
    %c0_22 = arith.constant 0 : index
    %c4 = arith.constant 4 : index
    %45 = vector.load %arg10[%c0_22, %c4] : memref<256x36xbf16, #tpu.memory_space<vmem>>, vector<256x4xbf16>
    tpu.vector_store %arg10[%c0_22, %c4], %44 {strides = array<i32>} : memref<256x36xbf16, #tpu.memory_space<vmem>>, vector<256x4xbf16>,
    %c17 = arith.constant 17 : index
    %c0_23 = arith.constant 0 : index
    %46 = vector.load %arg9[%c17, %c0_23] : memref<320x4xbf16, #tpu.memory_space<vmem>>, vector<256x4xbf16>
    %cst_24 = arith.constant 0.000000e+00 : bf16
    %47 = vector.broadcast %cst_24 : bf16 to vector<256x4xbf16>
    %48 = vector.shape_cast %37 : vector<256x1xi1> to vector<256x1xi1>
    %49 = vector.broadcast %48 : vector<256x1xi1> to vector<256x4xi1>
    %50 = arith.select %49, %46, %47 : vector<256x4xi1>, vector<256x4xbf16>
    %c0_25 = arith.constant 0 : index
    %c8 = arith.constant 8 : index
    %51 = vector.load %arg10[%c0_25, %c8] : memref<256x36xbf16, #tpu.memory_space<vmem>>, vector<256x4xbf16>
    tpu.vector_store %arg10[%c0_25, %c8], %50 {strides = array<i32>} : memref<256x36xbf16, #tpu.memory_space<vmem>>, vector<256x4xbf16>,
    %c31 = arith.constant 31 : index
    %c0_26 = arith.constant 0 : index
    %52 = vector.load %arg9[%c31, %c0_26] : memref<320x4xbf16, #tpu.memory_space<vmem>>, vector<256x4xbf16>
    %cst_27 = arith.constant 0.000000e+00 : bf16
    %53 = vector.broadcast %cst_27 : bf16 to vector<256x4xbf16>
    %54 = vector.shape_cast %35 : vector<256x1xi1> to vector<256x1xi1>
    %55 = vector.broadcast %54 : vector<256x1xi1> to vector<256x4xi1>
    %56 = arith.select %55, %52, %53 : vector<256x4xi1>, vector<256x4xbf16>
    %c0_28 = arith.constant 0 : index
    %c12 = arith.constant 12 : index
    %57 = vector.load %arg10[%c0_28, %c12] : memref<256x36xbf16, #tpu.memory_space<vmem>>, vector<256x4xbf16>
    tpu.vector_store %arg10[%c0_28, %c12], %56 {strides = array<i32>} : memref<256x36xbf16, #tpu.memory_space<vmem>>, vector<256x4xbf16>,
    %c32_29 = arith.constant 32 : index
    %c0_30 = arith.constant 0 : index
    %58 = vector.load %arg9[%c32_29, %c0_30] : memref<320x4xbf16, #tpu.memory_space<vmem>>, vector<256x4xbf16>
    %c0_31 = arith.constant 0 : index
    %c16_32 = arith.constant 16 : index
    %59 = vector.load %arg10[%c0_31, %c16_32] : memref<256x36xbf16, #tpu.memory_space<vmem>>, vector<256x4xbf16>
    tpu.vector_store %arg10[%c0_31, %c16_32], %58 {strides = array<i32>} : memref<256x36xbf16, #tpu.memory_space<vmem>>, vector<256x4xbf16>,
    %c33 = arith.constant 33 : index
    %c0_33 = arith.constant 0 : index
    %60 = vector.load %arg9[%c33, %c0_33] : memref<320x4xbf16, #tpu.memory_space<vmem>>, vector<256x4xbf16>
    %cst_34 = arith.constant 0.000000e+00 : bf16
    %61 = vector.broadcast %cst_34 : bf16 to vector<256x4xbf16>
    %62 = vector.shape_cast %37 : vector<256x1xi1> to vector<256x1xi1>
    %63 = vector.broadcast %62 : vector<256x1xi1> to vector<256x4xi1>
    %64 = arith.select %63, %60, %61 : vector<256x4xi1>, vector<256x4xbf16>
    %c0_35 = arith.constant 0 : index
    %c20 = arith.constant 20 : index
    %65 = vector.load %arg10[%c0_35, %c20] : memref<256x36xbf16, #tpu.memory_space<vmem>>, vector<256x4xbf16>
    tpu.vector_store %arg10[%c0_35, %c20], %64 {strides = array<i32>} : memref<256x36xbf16, #tpu.memory_space<vmem>>, vector<256x4xbf16>,
    %c47 = arith.constant 47 : index
    %c0_36 = arith.constant 0 : index
    %66 = vector.load %arg9[%c47, %c0_36] : memref<320x4xbf16, #tpu.memory_space<vmem>>, vector<256x4xbf16>
    %cst_37 = arith.constant 0.000000e+00 : bf16
    %67 = vector.broadcast %cst_37 : bf16 to vector<256x4xbf16>
    %68 = vector.shape_cast %35 : vector<256x1xi1> to vector<256x1xi1>
    %69 = vector.broadcast %68 : vector<256x1xi1> to vector<256x4xi1>
    %70 = arith.select %69, %66, %67 : vector<256x4xi1>, vector<256x4xbf16>
    %c0_38 = arith.constant 0 : index
    %c24 = arith.constant 24 : index
    %71 = vector.load %arg10[%c0_38, %c24] : memref<256x36xbf16, #tpu.memory_space<vmem>>, vector<256x4xbf16>
    tpu.vector_store %arg10[%c0_38, %c24], %70 {strides = array<i32>} : memref<256x36xbf16, #tpu.memory_space<vmem>>, vector<256x4xbf16>,
    %c48 = arith.constant 48 : index
    %c0_39 = arith.constant 0 : index
    %72 = vector.load %arg9[%c48, %c0_39] : memref<320x4xbf16, #tpu.memory_space<vmem>>, vector<256x4xbf16>
    %c0_40 = arith.constant 0 : index
    %c28 = arith.constant 28 : index
    %73 = vector.load %arg10[%c0_40, %c28] : memref<256x36xbf16, #tpu.memory_space<vmem>>, vector<256x4xbf16>
    tpu.vector_store %arg10[%c0_40, %c28], %72 {strides = array<i32>} : memref<256x36xbf16, #tpu.memory_space<vmem>>, vector<256x4xbf16>,
    %c49 = arith.constant 49 : index
    %c0_41 = arith.constant 0 : index
    %74 = vector.load %arg9[%c49, %c0_41] : memref<320x4xbf16, #tpu.memory_space<vmem>>, vector<256x4xbf16>
    %cst_42 = arith.constant 0.000000e+00 : bf16
    %75 = vector.broadcast %cst_42 : bf16 to vector<256x4xbf16>
    %76 = vector.shape_cast %37 : vector<256x1xi1> to vector<256x1xi1>
    %77 = vector.broadcast %76 : vector<256x1xi1> to vector<256x4xi1>
    %78 = arith.select %77, %74, %75 : vector<256x4xi1>, vector<256x4xbf16>
    %c0_43 = arith.constant 0 : index
    %c32_44 = arith.constant 32 : index
    %79 = vector.load %arg10[%c0_43, %c32_44] : memref<256x36xbf16, #tpu.memory_space<vmem>>, vector<256x4xbf16>
    tpu.vector_store %arg10[%c0_43, %c32_44], %78 {strides = array<i32>} : memref<256x36xbf16, #tpu.memory_space<vmem>>, vector<256x4xbf16>,
    %c0_45 = arith.constant 0 : index
    %c0_46 = arith.constant 0 : index
    %80 = vector.load %arg10[%c0_45, %c0_46] : memref<256x36xbf16, #tpu.memory_space<vmem>>, vector<256x36xbf16>
    %c0_47 = arith.constant 0 : index
    %c0_48 = arith.constant 0 : index
    %81 = vector.load %arg4[%c0_47, %c0_48] : memref<36x4xbf16, #tpu.memory_space<vmem>>, vector<36x4xbf16>
    %cst_49 = arith.constant dense<0.000000e+00> : vector<256x4xf32>
    %82 = tpu.matmul %80, %81, %cst_49 {dimension_numbers = #tpu.dot_dimension_numbers<[1], [0], [0], [1], [0, 0, 1, 1], [], []>} : vector<256x36xbf16>, vector<36x4xbf16>, vector<256x4xf32> -> vector<256x4xf32>
    %c0_50 = arith.constant 0 : index
    %c0_51 = arith.constant 0 : index
    %83 = vector.load %arg5[%c0_50, %c0_51] : memref<1x4xf32, #tpu.memory_space<vmem>>, vector<1x4xf32>
    %84 = vector.broadcast %83 : vector<1x4xf32> to vector<256x4xf32>
    %85 = arith.addf %82, %84 : vector<256x4xf32>
    %cst_52 = arith.constant 0.000000e+00 : f32
    %86 = vector.broadcast %cst_52 : f32 to vector<256x4xf32>
    %87 = arith.maximumf %85, %86 : vector<256x4xf32>
    %88 = arith.truncf %87 : vector<256x4xf32> to vector<256x4xbf16>
    %c0_53 = arith.constant 0 : index
    %c0_54 = arith.constant 0 : index
    %89 = vector.load %arg6[%c0_53, %c0_54] : memref<4x8xbf16, #tpu.memory_space<vmem>>, vector<4x8xbf16>
    %cst_55 = arith.constant dense<0.000000e+00> : vector<256x8xf32>
    %90 = tpu.matmul %88, %89, %cst_55 {dimension_numbers = #tpu.dot_dimension_numbers<[1], [0], [0], [1], [0, 0, 1, 1], [], []>} : vector<256x4xbf16>, vector<4x8xbf16>, vector<256x8xf32> -> vector<256x8xf32>
    %c0_56 = arith.constant 0 : index
    %c0_57 = arith.constant 0 : index
    %91 = vector.load %arg7[%c0_56, %c0_57] : memref<1x8xf32, #tpu.memory_space<vmem>>, vector<1x8xf32>
    %92 = vector.broadcast %91 : vector<1x8xf32> to vector<256x8xf32>
    %93 = arith.addf %90, %92 : vector<256x8xf32>
    %94 = arith.addf %93, %11 : vector<256x8xf32>
    %cst_58 = arith.constant 0.000000e+00 : f32
    %95 = vector.broadcast %cst_58 : f32 to vector<256x8xf32>
    %96 = arith.maximumf %94, %95 : vector<256x8xf32>
    %97 = arith.truncf %96 : vector<256x8xf32> to vector<256x8xbf16>
    %c0_59 = arith.constant 0 : index
    %c0_60 = arith.constant 0 : index
    %c0_61 = arith.constant 0 : index
    %98 = vector.load %arg8[%c0_59, %c0_60, %c0_61] : memref<1x256x8xbf16, #tpu.memory_space<vmem>>, vector<1x256x8xbf16>
    %99 = vector.shape_cast %98 : vector<1x256x8xbf16> to vector<256x8xbf16>
    %100 = vector.shape_cast %97 : vector<256x8xbf16> to vector<1x256x8xbf16>
    tpu.vector_store %arg8[%c0_59, %c0_60, %c0_61], %100 {strides = array<i32>} : memref<1x256x8xbf16, #tpu.memory_space<vmem>>, vector<1x256x8xbf16>,
    return
  }
  func.func @transform_0(%arg0: i32) -> (i32, i32, i32) {
    %c0_i32 = arith.constant 0 : i32
    %c0_i32_0 = arith.constant 0 : i32
    %c0_i32_1 = arith.constant 0 : i32
    return %arg0, %c0_i32, %c0_i32_0 : i32, i32, i32
  }
  func.func @transform_1(%arg0: i32) -> (i32, i32) {
    %c0_i32 = arith.constant 0 : i32
    %c0_i32_0 = arith.constant 0 : i32
    %c0_i32_1 = arith.constant 0 : i32
    return %c0_i32, %c0_i32_0 : i32, i32
  }
  func.func @transform_2(%arg0: i32) -> (i32, i32) {
    %c0_i32 = arith.constant 0 : i32
    %c0_i32_0 = arith.constant 0 : i32
    %c0_i32_1 = arith.constant 0 : i32
    return %c0_i32, %c0_i32_0 : i32, i32
  }
  func.func @transform_3(%arg0: i32) -> (i32, i32) {
    %c0_i32 = arith.constant 0 : i32
    %c0_i32_0 = arith.constant 0 : i32
    %c0_i32_1 = arith.constant 0 : i32
    return %c0_i32, %c0_i32_0 : i32, i32
  }
  func.func @transform_4(%arg0: i32) -> (i32, i32) {
    %c0_i32 = arith.constant 0 : i32
    %c0_i32_0 = arith.constant 0 : i32
    %c0_i32_1 = arith.constant 0 : i32
    return %c0_i32, %c0_i32_0 : i32, i32
  }
  func.func @transform_5(%arg0: i32) -> (i32, i32) {
    %c0_i32 = arith.constant 0 : i32
    %c0_i32_0 = arith.constant 0 : i32
    %c0_i32_1 = arith.constant 0 : i32
    return %c0_i32, %c0_i32_0 : i32, i32
  }
  func.func @transform_6(%arg0: i32) -> (i32, i32) {
    %c0_i32 = arith.constant 0 : i32
    %c0_i32_0 = arith.constant 0 : i32
    %c0_i32_1 = arith.constant 0 : i32
    return %c0_i32, %c0_i32_0 : i32, i32
  }
  func.func @transform_7(%arg0: i32) -> (i32, i32, i32) {
    %c0_i32 = arith.constant 0 : i32
    %c0_i32_0 = arith.constant 0 : i32
    %c0_i32_1 = arith.constant 0 : i32
    return %arg0, %c0_i32, %c0_i32_0 : i32, i32, i32
  }
}

</mosaic_0001>

<llo_original>
// kernel: tpu_custom_call.1
$region0: #{tpu_custom_call.1}
  #allocation0 [shape = 'u32[]', space=smem, size = 0x4, offset = 0x4, fixed_abs, tag = 'smem constant byte address 0x4 - core index']
  #allocation1 [shape = 'u32[144,128]{1,0:T(1,128)}', space=vmem, size = 0x12000, scoped, tag = 'internal scratch']
  %s0 = inlined_call_operand.hbm [shape: f32[8,128], index: 0, kind: input, shape index: {}]
  %s1 = inlined_call_operand.hbm [shape: f32[8,128], index: 1, kind: output, shape index: {}]
  %s2 = sld [smem:[#allocation0]]
  $region18: #{tpu_custom_call.1} parent=0
    _
  %s4 = ssub.s32 1, %s2
  %s5 = scalar_select 0, %s4, %s2
  $region1: #{tpu_custom_call.1} parent=0
    #allocation2 [shape = 'u8[4096]{0}', space=vmem, size = 0x1000, scoped, tag = 'input window, operand 0, single buffered']
    #allocation3 [shape = 's32[1]{0}', space=sflag, size = 0x4, scoped, tag = 'scoped memory for tpu_custom_call.1']
    #allocation4 [shape = 's32[1]{0}', space=sflag, size = 0x4, scoped, tag = 'scoped memory for tpu_custom_call.1']
    #allocation5 [shape = 'u8[4096]{0}', space=vmem, size = 0x1000, scoped, tag = 'output window, operand 0, single buffered']
    %6 = vsyncpa [#allocation3], 0
    %7 = vsyncpa [#allocation4], 0
    // Predicated region
    $region2: #{tpu_custom_call.1} parent=1 // pred_check
      _
    $region3: #{tpu_custom_call.1} parent=1 // pred_check_branch
      %9 = sbr.rel (0) target = $region5
    $region4: #{tpu_custom_call.1} parent=1 // pred_region
      %s11 = ssub.s32 128, 128
      %12 = vsyncadd [#allocation3], %s11
      %s14 = sshll.u32 [#allocation2], 4
      %s15 = int_to_ptr.vmem [resolvable:$true] %s14
      %17 = dma.hbm_to_vmem [thread:$0]  %s0, 128, %s15, [#allocation3]
    $region5: #{tpu_custom_call.1} parent=1 // pred_fallthru
      _
    // Predicated region
    $region6: #{tpu_custom_call.1} parent=1 // pred_check
      _
    $region7: #{tpu_custom_call.1} parent=1 // pred_check_branch
      %19 = sbr.rel (0) target = $region9
    $region8: #{tpu_custom_call.1} parent=1 // pred_region
      %20 = dma.done [#allocation3], 128
    $region9: #{tpu_custom_call.1} parent=1 // pred_fallthru
      _
    %v21 = vld [vmem:[#allocation2] sm:$0xff]
    %v22 = vmul.f32 %v21, 2.0
    %23 = vst [vmem:[#allocation5] sm:$0xff] %v22
    // Predicated region
    $region10: #{tpu_custom_call.1} parent=1 // pred_check
      _
    $region11: #{tpu_custom_call.1} parent=1 // pred_check_branch
      %25 = sbr.rel (0) target = $region13
    $region12: #{tpu_custom_call.1} parent=1 // pred_region
      %s27 = ssub.s32 128, 128
      %28 = vsyncadd [#allocation4], %s27
      %s30 = sshll.u32 [#allocation5], 4
      %s31 = int_to_ptr.vmem [resolvable:$true] %s30
      %33 = dma.vmem_to_hbm [thread:$0]  %s31, 128, %s1, [#allocation4]
    $region13: #{tpu_custom_call.1} parent=1 // pred_fallthru
      _
    // Predicated region
    $region14: #{tpu_custom_call.1} parent=1 // pred_check
      _
    $region15: #{tpu_custom_call.1} parent=1 // pred_check_branch
      %35 = sbr.rel (0) target = $region17
    $region16: #{tpu_custom_call.1} parent=1 // pred_region
      %36 = dma.done [#allocation4], 128
    $region17: #{tpu_custom_call.1} parent=1 // pred_fallthru
      _
    %37 = vsyncpa [#allocation3], 1
    %38 = vsyncpa [#allocation4], 1

// kernel: tpu_custom_call.1
$region0: #{tpu_custom_call.1}
  #allocation0 [shape = 'u32[]', space=smem, size = 0x4, offset = 0x4, fixed_abs, tag = 'smem constant byte address 0x4 - core index']
  #allocation1 [shape = 'u32[144,128]{1,0:T(1,128)}', space=vmem, size = 0x12000, scoped, tag = 'internal scratch']
  #allocation2 [shape = 'bf16[320,4]{1,0:T(8,128)(2,1)}', space=vmem, size = 0x14000, scoped, tag = 'scratch operand']
  #allocation3 [shape = 'bf16[256,36]{1,0:T(8,128)(2,1)}', space=vmem, size = 0x10000, scoped, tag = 'scratch operand']
  %s0 = inlined_call_operand.vmem [shape: bf16[2,256,4], index: 0, kind: input, shape index: {}]
  %s1 = inlined_call_operand.vmem [shape: bf16[4,12], index: 1, kind: input, shape index: {}]
  %s2 = inlined_call_operand.vmem [shape: f32[1,12], index: 2, kind: input, shape index: {}]
  %s3 = inlined_call_operand.vmem [shape: bf16[36,4], index: 3, kind: input, shape index: {}]
  %s4 = inlined_call_operand.vmem [shape: f32[1,4], index: 4, kind: input, shape index: {}]
  %s5 = inlined_call_operand.vmem [shape: bf16[4,8], index: 5, kind: input, shape index: {}]
  %s6 = inlined_call_operand.vmem [shape: f32[1,8], index: 6, kind: input, shape index: {}]
  %s7 = inlined_call_operand.vmem [shape: bf16[2,256,8], index: 7, kind: output, shape index: {}]
  %s8 = sld [smem:[#allocation0]]
  $region61: #{tpu_custom_call.1} parent=0
    _
  %s10 = ssub.s32 1, %s8
  %s11 = scalar_select 0, %s10, %s8
  loop: start=0, step=1, limit=4
  $region2: #{tpu_custom_call.1} parent=0 // loop_pre_header
    _
  $region3: #{tpu_custom_call.1} parent=0 // loop_header
    %s13 = sphi 0, %s17
    %p14 = scmp.ge.s32.totalorder %s13, 4
    %s23 = sphi 0, %s25
    %s26 = sphi 0, %s23
    %s27 = sphi 0, %s26
    %s43 = sphi 0, %s27
    %s47 = sphi 0, %s47
    %s49 = sphi 0, %s47
    %s50 = sphi 0, %s49
    %s64 = sphi 0, %s50
    %s68 = sphi 0, %s68
    %s70 = sphi 0, %s68
    %s71 = sphi 0, %s70
    %s85 = sphi 0, %s71
    %s89 = sphi 0, %s89
    %s91 = sphi 0, %s89
    %s92 = sphi 0, %s91
    %s106 = sphi 0, %s92
    %s110 = sphi 0, %s110
    %s112 = sphi 0, %s110
    %s113 = sphi 0, %s112
    %s127 = sphi 0, %s113
    %s131 = sphi 0, %s131
    %s133 = sphi 0, %s131
    %s134 = sphi 0, %s133
    %s148 = sphi 0, %s134
    %s152 = sphi 0, %s152
    %s154 = sphi 0, %s152
    %s155 = sphi 0, %s154
    %s169 = sphi 0, %s155
    %s175 = sphi 0, %s177
    %s178 = sphi 0, %s175
    %s179 = sphi 0, %s178
    %s195 = sphi 0, %s179
  $region4: #{tpu_custom_call.1} parent=0 // loop_header_branch
    %16 = sbr.rel (%p14) target = $region8
  $region5: #{tpu_custom_call.1} parent=0 // loop_body
    %s18 = ssub.s32 %s13, 1
    %s19 = ssub.s32 %s13, 2
    %s20 = sadd.s32 %s13, 1
    %s21 = ssub.s32 %s13, %s20
    %p22 = scmp.eq.s32.totalorder %s21, 0
    %s24 = sadd.s32 %s23, 1
    %s25 = scalar_select %p22, %s23, %s24
    %p28 = pneg %p22
    %p29 = scmp.eq.s32.totalorder %s13, 1
    %p30 = por %p28, %p29
    %p31 = scmp.ne.s32.totalorder %s23, %s26
    %p32 = scmp.eq.s32.totalorder %s13, 0
    %p33 = por %p31, %p32
    %p34 = scmp.ne.s32.totalorder %s23, %s26
    %p35 = scmp.eq.s32.totalorder %s18, 1
    %p36 = por %p34, %p35
    %p37 = scmp.ne.s32.totalorder %s26, %s27
    %p38 = scmp.eq.s32.totalorder %s18, 0
    %p39 = por %p37, %p38
    %p40 = scmp.ne.s32.totalorder %s26, %s27
    %p41 = scmp.eq.s32.totalorder %s19, 1
    %p42 = por %p40, %p41
    %p44 = scmp.ne.s32.totalorder %s27, %s43
    %p45 = scmp.eq.s32.totalorder %s19, 0
    %p46 = por %p44, %p45
    %s48 = sadd.s32 %s47, 1
    %p51 = scmp.eq.s32.totalorder %s13, 1
    %p52 = scmp.ne.s32.totalorder %s47, %s49
    %p53 = scmp.eq.s32.totalorder %s13, 0
    %p54 = por %p52, %p53
    %p55 = scmp.ne.s32.totalorder %s47, %s49
    %p56 = scmp.eq.s32.totalorder %s18, 1
    %p57 = por %p55, %p56
    %p58 = scmp.ne.s32.totalorder %s49, %s50
    %p59 = scmp.eq.s32.totalorder %s18, 0
    %p60 = por %p58, %p59
    %p61 = scmp.ne.s32.totalorder %s49, %s50
    %p62 = scmp.eq.s32.totalorder %s19, 1
    %p63 = por %p61, %p62
    %p65 = scmp.ne.s32.totalorder %s50, %s64
    %p66 = scmp.eq.s32.totalorder %s19, 0
    %p67 = por %p65, %p66
    %s69 = sadd.s32 %s68, 1
    %p72 = scmp.eq.s32.totalorder %s13, 1
    %p73 = scmp.ne.s32.totalorder %s68, %s70
    %p74 = scmp.eq.s32.totalorder %s13, 0
    %p75 = por %p73, %p74
    %p76 = scmp.ne.s32.totalorder %s68, %s70
    %p77 = scmp.eq.s32.totalorder %s18, 1
    %p78 = por %p76, %p77
    %p79 = scmp.ne.s32.totalorder %s70, %s71
    %p80 = scmp.eq.s32.totalorder %s18, 0
    %p81 = por %p79, %p80
    %p82 = scmp.ne.s32.totalorder %s70, %s71
    %p83 = scmp.eq.s32.totalorder %s19, 1
    %p84 = por %p82, %p83
    %p86 = scmp.ne.s32.totalorder %s71, %s85
    %p87 = scmp.eq.s32.totalorder %s19, 0
    %p88 = por %p86, %p87
    %s90 = sadd.s32 %s89, 1
    %p93 = scmp.eq.s32.totalorder %s13, 1
    %p94 = scmp.ne.s32.totalorder %s89, %s91
    %p95 = scmp.eq.s32.totalorder %s13, 0
    %p96 = por %p94, %p95
    %p97 = scmp.ne.s32.totalorder %s89, %s91
    %p98 = scmp.eq.s32.totalorder %s18, 1
    %p99 = por %p97, %p98
    %p100 = scmp.ne.s32.totalorder %s91, %s92
    %p101 = scmp.eq.s32.totalorder %s18, 0
    %p102 = por %p100, %p101
    %p103 = scmp.ne.s32.totalorder %s91, %s92
    %p104 = scmp.eq.s32.totalorder %s19, 1
    %p105 = por %p103, %p104
    %p107 = scmp.ne.s32.totalorder %s92, %s106
    %p108 = scmp.eq.s32.totalorder %s19, 0
    %p109 = por %p107, %p108
    %s111 = sadd.s32 %s110, 1
    %p114 = scmp.eq.s32.totalorder %s13, 1
    %p115 = scmp.ne.s32.totalorder %s110, %s112
    %p116 = scmp.eq.s32.totalorder %s13, 0
    %p117 = por %p115, %p116
    %p118 = scmp.ne.s32.totalorder %s110, %s112
    %p119 = scmp.eq.s32.totalorder %s18, 1
    %p120 = por %p118, %p119
    %p121 = scmp.ne.s32.totalorder %s112, %s113
    %p122 = scmp.eq.s32.totalorder %s18, 0
    %p123 = por %p121, %p122
    %p124 = scmp.ne.s32.totalorder %s112, %s113
    %p125 = scmp.eq.s32.totalorder %s19, 1
    %p126 = por %p124, %p125
    %p128 = scmp.ne.s32.totalorder %s113, %s127
    %p129 = scmp.eq.s32.totalorder %s19, 0
    %p130 = por %p128, %p129
    %s132 = sadd.s32 %s131, 1
    %p135 = scmp.eq.s32.totalorder %s13, 1
    %p136 = scmp.ne.s32.totalorder %s131, %s133
    %p137 = scmp.eq.s32.totalorder %s13, 0
    %p138 = por %p136, %p137
    %p139 = scmp.ne.s32.totalorder %s131, %s133
    %p140 = scmp.eq.s32.totalorder %s18, 1
    %p141 = por %p139, %p140
    %p142 = scmp.ne.s32.totalorder %s133, %s134
    %p143 = scmp.eq.s32.totalorder %s18, 0
    %p144 = por %p142, %p143
    %p145 = scmp.ne.s32.totalorder %s133, %s134
    %p146 = scmp.eq.s32.totalorder %s19, 1
    %p147 = por %p145, %p146
    %p149 = scmp.ne.s32.totalorder %s134, %s148
    %p150 = scmp.eq.s32.totalorder %s19, 0
    %p151 = por %p149, %p150
    %s153 = sadd.s32 %s152, 1
    %p156 = scmp.eq.s32.totalorder %s13, 1
    %p157 = scmp.ne.s32.totalorder %s152, %s154
    %p158 = scmp.eq.s32.totalorder %s13, 0
    %p159 = por %p157, %p158
    %p160 = scmp.ne.s32.totalorder %s152, %s154
    %p161 = scmp.eq.s32.totalorder %s18, 1
    %p162 = por %p160, %p161
    %p163 = scmp.ne.s32.totalorder %s154, %s155
    %p164 = scmp.eq.s32.totalorder %s18, 0
    %p165 = por %p163, %p164
    %p166 = scmp.ne.s32.totalorder %s154, %s155
    %p167 = scmp.eq.s32.totalorder %s19, 1
    %p168 = por %p166, %p167
    %p170 = scmp.ne.s32.totalorder %s155, %s169
    %p171 = scmp.eq.s32.totalorder %s19, 0
    %p172 = por %p170, %p171
    %s173 = ssub.s32 %s13, %s20
    %p174 = scmp.eq.s32.totalorder %s173, 0
    %s176 = sadd.s32 %s175, 1
    %s177 = scalar_select %p174, %s175, %s176
    %p180 = pneg %p174
    %p181 = scmp.eq.s32.totalorder %s13, 1
    %p182 = por %p180, %p181
    %p183 = scmp.ne.s32.totalorder %s175, %s178
    %p184 = scmp.eq.s32.totalorder %s13, 0
    %p185 = por %p183, %p184
    %p186 = scmp.ne.s32.totalorder %s175, %s178
    %p187 = scmp.eq.s32.totalorder %s18, 1
    %p188 = por %p186, %p187
    %p189 = scmp.ne.s32.totalorder %s178, %s179
    %p190 = scmp.eq.s32.totalorder %s18, 0
    %p191 = por %p189, %p190
    %p192 = scmp.ne.s32.totalorder %s178, %s179
    %p193 = scmp.eq.s32.totalorder %s19, 1
    %p194 = por %p192, %p193
    %p196 = scmp.ne.s32.totalorder %s179, %s195
    %p197 = scmp.eq.s32.totalorder %s19, 0
    %p198 = por %p196, %p197
    %p199 = scmp.le.s32.totalorder 1, %s13
    %p200 = scmp.lt.s32.totalorder %s13, 3
    %p201 = pnand %p199, %p200
    %p202 = pneg %p201
    // Predicated region
    $region9: #{tpu_custom_call.1} parent=5 // pred_check
      _
    $region10: #{tpu_custom_call.1} parent=5 // pred_check_branch
      %204 = sbr.rel (%p201) target = $region12
    $region11: #{tpu_custom_call.1} parent=5 // pred_region
      %s205 = ssub.s32 %s13, 1
      // Predicated region
      $region13: #{tpu_custom_call.1} parent=11 // pred_check
        %p206 = pneg %p60
      $region14: #{tpu_custom_call.1} parent=11 // pred_check_branch
        %208 = sbr.rel (%p206) target = $region16
      $region15: #{tpu_custom_call.1} parent=11 // pred_region
        _
      $region16: #{tpu_custom_call.1} parent=11 // pred_fallthru
        _
      // Predicated region
      $region17: #{tpu_custom_call.1} parent=11 // pred_check
        %p209 = pneg %p81
      $region18: #{tpu_custom_call.1} parent=11 // pred_check_branch
        %211 = sbr.rel (%p209) target = $region20
      $region19: #{tpu_custom_call.1} parent=11 // pred_region
        _
      $region20: #{tpu_custom_call.1} parent=11 // pred_fallthru
        _
      // Predicated region
      $region21: #{tpu_custom_call.1} parent=11 // pred_check
        %p212 = pneg %p102
      $region22: #{tpu_custom_call.1} parent=11 // pred_check_branch
        %214 = sbr.rel (%p212) target = $region24
      $region23: #{tpu_custom_call.1} parent=11 // pred_region
        _
      $region24: #{tpu_custom_call.1} parent=11 // pred_fallthru
        _
      // Predicated region
      $region25: #{tpu_custom_call.1} parent=11 // pred_check
        %p215 = pneg %p123
      $region26: #{tpu_custom_call.1} parent=11 // pred_check_branch
        %217 = sbr.rel (%p215) target = $region28
      $region27: #{tpu_custom_call.1} parent=11 // pred_region
        _
      $region28: #{tpu_custom_call.1} parent=11 // pred_fallthru
        _
      // Predicated region
      $region29: #{tpu_custom_call.1} parent=11 // pred_check
        %p218 = pneg %p144
      $region30: #{tpu_custom_call.1} parent=11 // pred_check_branch
        %220 = sbr.rel (%p218) target = $region32
      $region31: #{tpu_custom_call.1} parent=11 // pred_region
        _
      $region32: #{tpu_custom_call.1} parent=11 // pred_fallthru
        _
      // Predicated region
      $region33: #{tpu_custom_call.1} parent=11 // pred_check
        %p221 = pneg %p165
      $region34: #{tpu_custom_call.1} parent=11 // pred_check_branch
        %223 = sbr.rel (%p221) target = $region36
      $region35: #{tpu_custom_call.1} parent=11 // pred_region
        _
      $region36: #{tpu_custom_call.1} parent=11 // pred_fallthru
        _
    $region12: #{tpu_custom_call.1} parent=5 // pred_fallthru
      _
    %p224 = scmp.lt.s32.totalorder %s13, 2
    // Predicated region
    $region37: #{tpu_custom_call.1} parent=5 // pred_check
      %p225 = pneg %p224
    $region38: #{tpu_custom_call.1} parent=5 // pred_check_branch
      %227 = sbr.rel (%p225) target = $region40
    $region39: #{tpu_custom_call.1} parent=5 // pred_region
      // Predicated region
      $region41: #{tpu_custom_call.1} parent=39 // pred_check
        %p228 = pneg %p33
      $region42: #{tpu_custom_call.1} parent=39 // pred_check_branch
        %230 = sbr.rel (%p228) target = $region44
      $region43: #{tpu_custom_call.1} parent=39 // pred_region
        %p231 = scmp.lt.s32.totalorder %s13, 1
        %s232 = scalar_select %p231, %s13, 1
        %s233 = smul.addr %s232, 32
        %s234 = smul.addr %s233, 4
        %s235 = scalar_lea.vmem %s0, %s234
      $region44: #{tpu_custom_call.1} parent=39 // pred_fallthru
        _
    $region40: #{tpu_custom_call.1} parent=5 // pred_fallthru
      _
    %p236 = scmp.le.s32.totalorder 1, %s13
    %p237 = scmp.lt.s32.totalorder %s13, 3
    %p238 = pnand %p236, %p237
    %p239 = pneg %p238
    // Predicated region
    $region45: #{tpu_custom_call.1} parent=5 // pred_check
      _
    $region46: #{tpu_custom_call.1} parent=5 // pred_check_branch
      %241 = sbr.rel (%p238) target = $region48
    $region47: #{tpu_custom_call.1} parent=5 // pred_region
      %s242 = ssub.s32 %s13, 1
      %p243 = scmp.lt.s32.totalorder %s18, 1
      %s244 = scalar_select %p243, %s18, 1
      %s245 = smul.addr %s244, 32
      %s246 = smul.addr %s245, 4
      %s247 = scalar_lea.vmem %s0, %s246
      %p248 = pneg %p39
      %p249 = pneg %p36
      %p250 = pneg %p60
      %p251 = pneg %p57
      %p252 = pneg %p81
      %p253 = pneg %p78
      %p254 = pneg %p102
      %p255 = pneg %p99
      %p256 = pneg %p123
      %p257 = pneg %p120
      %p258 = pneg %p144
      %p259 = pneg %p141
      %p260 = pneg %p165
      %p261 = pneg %p162
      %p262 = pneg %p191
      %p263 = pneg %p188
      %p264 = scmp.lt.s32.totalorder %s18, 1
      %s265 = scalar_select %p264, %s18, 1
      %s266 = smul.addr %s265, 32
      %s267 = smul.addr %s266, 4
      %s268 = scalar_lea.vmem %s7, %s267
      %p269 = scmp.lt.s32.totalorder %s18, 1
      %s270 = scalar_select %p269, %s18, 1
      %s271 = smul.addr %s270, 32
      %s272 = smul.addr %s271, 4
      %s273 = scalar_lea.vmem %s0, %s272
      %p274 = scmp.lt.s32.totalorder %s18, 1
      %s275 = scalar_select %p274, %s18, 1
      %s276 = smul.addr %s275, 32
      %s277 = smul.addr %s276, 4
      %s278 = scalar_lea.vmem %s7, %s277
      %vm282 = vcmask 27648
      %283 = vst.msk [vmem:[#allocation2] sm:$0xf] %vm282, 0
      %284 = vst.msk [vmem:[#allocation2 + $0x4] sm:$0xf] %vm282, 0
      %285 = vst.msk [vmem:[#allocation2 + $0x8] sm:$0xf] %vm282, 0
      %286 = vst.msk [vmem:[#allocation2 + $0xc] sm:$0xf] %vm282, 0
      %287 = vst.msk [vmem:[#allocation2 + $0x90] sm:$0xf] %vm282, 0
      %288 = vst.msk [vmem:[#allocation2 + $0x94] sm:$0xf] %vm282, 0
      %289 = vst.msk [vmem:[#allocation2 + $0x98] sm:$0xf] %vm282, 0
      %290 = vst.msk [vmem:[#allocation2 + $0x9c] sm:$0xf] %vm282, 0
      %v291 = vld [vmem:[%s273] sm:$0xf]
      %v292 = vld [vmem:[%s273 + $0x4] sm:$0xf]
      %v293 = vld [vmem:[%s273 + $0x8] sm:$0xf]
      %v294 = vld [vmem:[%s273 + $0xc] sm:$0xf]
      %v295 = vld [vmem:[%s273 + $0x10] sm:$0xf]
      %v296 = vld [vmem:[%s273 + $0x14] sm:$0xf]
      %v297 = vld [vmem:[%s273 + $0x18] sm:$0xf]
      %v298 = vld [vmem:[%s273 + $0x1c] sm:$0xf]
      %v299 = vld [vmem:[%s273 + $0x20] sm:$0xf]
      %v300 = vld [vmem:[%s273 + $0x24] sm:$0xf]
      %v301 = vld [vmem:[%s273 + $0x28] sm:$0xf]
      %v302 = vld [vmem:[%s273 + $0x2c] sm:$0xf]
      %v303 = vld [vmem:[%s273 + $0x30] sm:$0xf]
      %v304 = vld [vmem:[%s273 + $0x34] sm:$0xf]
      %v305 = vld [vmem:[%s273 + $0x38] sm:$0xf]
      %v306 = vld [vmem:[%s273 + $0x3c] sm:$0xf]
      %v307 = vld [vmem:[%s273 + $0x40] sm:$0xf]
      %v308 = vld [vmem:[%s273 + $0x44] sm:$0xf]
      %v309 = vld [vmem:[%s273 + $0x48] sm:$0xf]
      %v310 = vld [vmem:[%s273 + $0x4c] sm:$0xf]
      %v311 = vld [vmem:[%s273 + $0x50] sm:$0xf]
      %v312 = vld [vmem:[%s273 + $0x54] sm:$0xf]
      %v313 = vld [vmem:[%s273 + $0x58] sm:$0xf]
      %v314 = vld [vmem:[%s273 + $0x5c] sm:$0xf]
      %v315 = vld [vmem:[%s273 + $0x60] sm:$0xf]
      %v316 = vld [vmem:[%s273 + $0x64] sm:$0xf]
      %v317 = vld [vmem:[%s273 + $0x68] sm:$0xf]
      %v318 = vld [vmem:[%s273 + $0x6c] sm:$0xf]
      %v319 = vld [vmem:[%s273 + $0x70] sm:$0xf]
      %v320 = vld [vmem:[%s273 + $0x74] sm:$0xf]
      %v321 = vld [vmem:[%s273 + $0x78] sm:$0xf]
      %v322 = vld [vmem:[%s273 + $0x7c] sm:$0xf]
      %v323 = vld [vmem:[%s1] sm:$0x3]
      %v324 = vld [vmem:[%s2] sm:$0x1]
      %v326 = vlaneseq
      %v327 = vshrl.u32 %v326, 7
      %v328 = vsub.s32 0, %v327
      %v329 = vrot.slane %v324, %v328
      %v363 = vunpack.c.l.b16 %v291
      %v364 = vunpack.c.l.b16 %v292
      %v365 = vunpack.c.l.b16 %v293
      %v366 = vunpack.c.l.b16 %v294
      %v367 = vunpack.c.l.b16 %v295
      %v368 = vunpack.c.l.b16 %v296
      %v369 = vunpack.c.l.b16 %v297
      %v370 = vunpack.c.l.b16 %v298
      %v371 = vunpack.c.l.b16 %v299
      %v372 = vunpack.c.l.b16 %v300
      %v373 = vunpack.c.l.b16 %v301
      %v374 = vunpack.c.l.b16 %v302
      %v375 = vunpack.c.l.b16 %v303
      %v376 = vunpack.c.l.b16 %v304
      %v377 = vunpack.c.l.b16 %v305
      %v378 = vunpack.c.l.b16 %v306
      %v379 = vunpack.c.l.b16 %v307
      %v380 = vunpack.c.l.b16 %v308
      %v381 = vunpack.c.l.b16 %v309
      %v382 = vunpack.c.l.b16 %v310
      %v383 = vunpack.c.l.b16 %v311
      %v384 = vunpack.c.l.b16 %v312
      %v385 = vunpack.c.l.b16 %v313
      %v386 = vunpack.c.l.b16 %v314
      %v387 = vunpack.c.l.b16 %v315
      %v388 = vunpack.c.l.b16 %v316
      %v389 = vunpack.c.l.b16 %v317
      %v390 = vunpack.c.l.b16 %v318
      %v391 = vunpack.c.l.b16 %v319
      %v392 = vunpack.c.l.b16 %v320
      %v393 = vunpack.c.l.b16 %v321
      %v394 = vunpack.c.l.b16 %v322
      %v395 = vpack.c.b16 %v364, %v363
      %v396 = vpack.c.b16 %v366, %v365
      %v397 = vpack.c.b16 %v368, %v367
      %v398 = vpack.c.b16 %v370, %v369
      %v399 = vpack.c.b16 %v372, %v371
      %v400 = vpack.c.b16 %v374, %v373
      %v401 = vpack.c.b16 %v376, %v375
      %v402 = vpack.c.b16 %v378, %v377
      %v403 = vpack.c.b16 %v380, %v379
      %v404 = vpack.c.b16 %v382, %v381
      %v405 = vpack.c.b16 %v384, %v383
      %v406 = vpack.c.b16 %v386, %v385
      %v407 = vpack.c.b16 %v388, %v387
      %v408 = vpack.c.b16 %v390, %v389
      %v409 = vpack.c.b16 %v392, %v391
      %v410 = vpack.c.b16 %v394, %v393
      %vm411 = vcmask 31744
      %v413 = vsel %vm411, %v395, 0
      %v416 = vsel %vm411, %v396, 0
      %v419 = vsel %vm411, %v397, 0
      %v422 = vsel %vm411, %v398, 0
      %v425 = vsel %vm411, %v399, 0
      %v428 = vsel %vm411, %v400, 0
      %v431 = vsel %vm411, %v401, 0
      %v434 = vsel %vm411, %v402, 0
      %v437 = vsel %vm411, %v403, 0
      %v440 = vsel %vm411, %v404, 0
      %v443 = vsel %vm411, %v405, 0
      %v446 = vsel %vm411, %v406, 0
      %v449 = vsel %vm411, %v407, 0
      %v452 = vsel %vm411, %v408, 0
      %v455 = vsel %vm411, %v409, 0
      %v458 = vsel %vm411, %v410, 0
      %vm460 = vcmask 1041408
      %v462 = vsel %vm460, %v323, 0
      %464 = vmatprep.subr.bf16.mxu0 0
      %465 = vmatpush1.bf16.msra.mxu0 0
      %466 = vmatprep.subr.bf16.mxu0 0
      %467 = vmatpush1.bf16.msra.mxu0 0
      %468 = vmatprep.subr.bf16.mxu0 0
      %469 = vmatpush1.bf16.msra.mxu0 0
      %470 = vmatprep.subr.bf16.mxu0 0
      %471 = vmatpush1.bf16.msra.mxu0 0
      %472 = vmatprep.subr.bf16.mxu0 0
      %473 = vmatpush1.bf16.msra.mxu0 0
      %474 = vmatprep.subr.bf16.mxu0 0
      %475 = vmatpush1.bf16.msra.mxu0 0
      %476 = vmatprep.subr.bf16.mxu0 0
      %477 = vmatpush1.bf16.msra.mxu0 0
      %478 = vmatprep.subr.bf16.mxu0 0
      %479 = vmatpush1.bf16.msra.mxu0 %v462
      %480 = vmatprep.subr.bf16.mxu0 0
      %481 = vmatpush2.bf16.msra.mxu0 0
      %482 = vmatprep.subr.bf16.mxu0 0
      %483 = vmatpush2.bf16.msra.mxu0 0
      %484 = vmatprep.subr.bf16.mxu0 0
      %485 = vmatpush2.bf16.msra.mxu0 0
      %486 = vmatprep.subr.bf16.mxu0 0
      %487 = vmatpush2.bf16.msra.mxu0 0
      %488 = vmatprep.subr.bf16.mxu0 0
      %489 = vmatpush2.bf16.msra.mxu0 0
      %490 = vmatprep.subr.bf16.mxu0 0
      %491 = vmatpush2.bf16.msra.mxu0 0
      %492 = vmatprep.subr.bf16.mxu0 0
      %493 = vmatpush2.bf16.msra.mxu0 0
      %494 = vmatprep.subr.bf16.mxu0 0
      %495 = vmatpush2.bf16.msra.mxu0 0
      %496 = vmatprep.mubr.bf16.mxu0 0
      %497 = vmatmul.mubr.bf16.gmra.mxu0 %v413
      %v498 = vpop.f32.mrf.mxu0
      %v499 = vadd.f32 %v329, %v498
      %v500 = vpop.f32.mrf.mxu0
      %v501 = vpop.f32.mrf.mxu0
      %v502 = vadd.f32 %v329, %v501
      %v503 = vpop.f32.mrf.mxu0
      %504 = vmatprep.mubr.bf16.mxu0 0
      %505 = vmatmul.mubr.bf16.gmra.mxu0 %v416
      %v506 = vpop.f32.mrf.mxu0
      %v507 = vadd.f32 %v329, %v506
      %v508 = vpop.f32.mrf.mxu0
      %v509 = vpop.f32.mrf.mxu0
      %v510 = vadd.f32 %v329, %v509
      %v511 = vpop.f32.mrf.mxu0
      %512 = vmatprep.mubr.bf16.mxu0 0
      %513 = vmatmul.mubr.bf16.gmra.mxu0 %v419
      %v514 = vpop.f32.mrf.mxu0
      %v515 = vadd.f32 %v329, %v514
      %v516 = vpop.f32.mrf.mxu0
      %v517 = vpop.f32.mrf.mxu0
      %v518 = vadd.f32 %v329, %v517
      %v519 = vpop.f32.mrf.mxu0
      %520 = vmatprep.mubr.bf16.mxu0 0
      %521 = vmatmul.mubr.bf16.gmra.mxu0 %v422
      %v522 = vpop.f32.mrf.mxu0
      %v523 = vadd.f32 %v329, %v522
      %v524 = vpop.f32.mrf.mxu0
      %v525 = vpop.f32.mrf.mxu0
      %v526 = vadd.f32 %v329, %v525
      %v527 = vpop.f32.mrf.mxu0
      %528 = vmatprep.mubr.bf16.mxu0 0
      %529 = vmatmul.mubr.bf16.gmra.mxu0 %v425
      %v530 = vpop.f32.mrf.mxu0
      %v531 = vadd.f32 %v329, %v530
      %v532 = vpop.f32.mrf.mxu0
      %v533 = vpop.f32.mrf.mxu0
      %v534 = vadd.f32 %v329, %v533
      %v535 = vpop.f32.mrf.mxu0
      %536 = vmatprep.mubr.bf16.mxu0 0
      %537 = vmatmul.mubr.bf16.gmra.mxu0 %v428
      %v538 = vpop.f32.mrf.mxu0
      %v539 = vadd.f32 %v329, %v538
      %v540 = vpop.f32.mrf.mxu0
      %v541 = vpop.f32.mrf.mxu0
      %v542 = vadd.f32 %v329, %v541
      %v543 = vpop.f32.mrf.mxu0
      %544 = vmatprep.mubr.bf16.mxu0 0
      %545 = vmatmul.mubr.bf16.gmra.mxu0 %v431
      %v546 = vpop.f32.mrf.mxu0
      %v547 = vadd.f32 %v329, %v546
      %v548 = vpop.f32.mrf.mxu0
      %v549 = vpop.f32.mrf.mxu0
      %v550 = vadd.f32 %v329, %v549
      %v551 = vpop.f32.mrf.mxu0
      %552 = vmatprep.mubr.bf16.mxu0 0
      %553 = vmatmul.mubr.bf16.gmra.mxu0 %v434
      %v554 = vpop.f32.mrf.mxu0
      %v555 = vadd.f32 %v329, %v554
      %v556 = vpop.f32.mrf.mxu0
      %v557 = vpop.f32.mrf.mxu0
      %v558 = vadd.f32 %v329, %v557
      %v559 = vpop.f32.mrf.mxu0
      %560 = vmatprep.mubr.bf16.mxu0 0
      %561 = vmatmul.mubr.bf16.gmra.mxu0 %v437
      %v562 = vpop.f32.mrf.mxu0
      %v563 = vadd.f32 %v329, %v562
      %v564 = vpop.f32.mrf.mxu0
      %v565 = vpop.f32.mrf.mxu0
      %v566 = vadd.f32 %v329, %v565
      %v567 = vpop.f32.mrf.mxu0
      %568 = vmatprep.mubr.bf16.mxu0 0
      %569 = vmatmul.mubr.bf16.gmra.mxu0 %v440
      %v570 = vpop.f32.mrf.mxu0
      %v571 = vadd.f32 %v329, %v570
      %v572 = vpop.f32.mrf.mxu0
      %v573 = vpop.f32.mrf.mxu0
      %v574 = vadd.f32 %v329, %v573
      %v575 = vpop.f32.mrf.mxu0
      %576 = vmatprep.mubr.bf16.mxu0 0
      %577 = vmatmul.mubr.bf16.gmra.mxu0 %v443
      %v578 = vpop.f32.mrf.mxu0
      %v579 = vadd.f32 %v329, %v578
      %v580 = vpop.f32.mrf.mxu0
      %v581 = vpop.f32.mrf.mxu0
      %v582 = vadd.f32 %v329, %v581
      %v583 = vpop.f32.mrf.mxu0
      %584 = vmatprep.mubr.bf16.mxu0 0
      %585 = vmatmul.mubr.bf16.gmra.mxu0 %v446
      %v586 = vpop.f32.mrf.mxu0
      %v587 = vadd.f32 %v329, %v586
      %v588 = vpop.f32.mrf.mxu0
      %v589 = vpop.f32.mrf.mxu0
      %v590 = vadd.f32 %v329, %v589
      %v591 = vpop.f32.mrf.mxu0
      %592 = vmatprep.mubr.bf16.mxu0 0
      %593 = vmatmul.mubr.bf16.gmra.mxu0 %v449
      %v594 = vpop.f32.mrf.mxu0
      %v595 = vadd.f32 %v329, %v594
      %v596 = vpop.f32.mrf.mxu0
      %v597 = vpop.f32.mrf.mxu0
      %v598 = vadd.f32 %v329, %v597
      %v599 = vpop.f32.mrf.mxu0
      %600 = vmatprep.mubr.bf16.mxu0 0
      %601 = vmatmul.mubr.bf16.gmra.mxu0 %v452
      %v602 = vpop.f32.mrf.mxu0
      %v603 = vadd.f32 %v329, %v602
      %v604 = vpop.f32.mrf.mxu0
      %v605 = vpop.f32.mrf.mxu0
      %v606 = vadd.f32 %v329, %v605
      %v607 = vpop.f32.mrf.mxu0
      %608 = vmatprep.mubr.bf16.mxu0 0
      %609 = vmatmul.mubr.bf16.gmra.mxu0 %v455
      %v610 = vpop.f32.mrf.mxu0
      %v611 = vadd.f32 %v329, %v610
      %v612 = vpop.f32.mrf.mxu0
      %v613 = vpop.f32.mrf.mxu0
      %v614 = vadd.f32 %v329, %v613
      %v615 = vpop.f32.mrf.mxu0
      %616 = vmatprep.mubr.bf16.mxu0 0
      %617 = vmatmul.mubr.bf16.gmra.mxu0 %v458
      %v618 = vpop.f32.mrf.mxu0
      %v619 = vadd.f32 %v329, %v618
      %v620 = vpop.f32.mrf.mxu0
      %v621 = vpop.f32.mrf.mxu0
      %v622 = vadd.f32 %v329, %v621
      %v623 = vpop.f32.mrf.mxu0
      %624 = vdwg.mxu0
      %v625 = vmax.f32 %v499, 0.0
      %v626 = vmax.f32 %v502, 0.0
      %v627 = vmax.f32 %v507, 0.0
      %v628 = vmax.f32 %v510, 0.0
      %v629 = vmax.f32 %v515, 0.0
      %v630 = vmax.f32 %v518, 0.0
      %v631 = vmax.f32 %v523, 0.0
      %v632 = vmax.f32 %v526, 0.0
      %v633 = vmax.f32 %v531, 0.0
      %v634 = vmax.f32 %v534, 0.0
      %v635 = vmax.f32 %v539, 0.0
      %v636 = vmax.f32 %v542, 0.0
      %v637 = vmax.f32 %v547, 0.0
      %v638 = vmax.f32 %v550, 0.0
      %v639 = vmax.f32 %v555, 0.0
      %v640 = vmax.f32 %v558, 0.0
      %v641 = vmax.f32 %v563, 0.0
      %v642 = vmax.f32 %v566, 0.0
      %v643 = vmax.f32 %v571, 0.0
      %v644 = vmax.f32 %v574, 0.0
      %v645 = vmax.f32 %v579, 0.0
      %v646 = vmax.f32 %v582, 0.0
      %v647 = vmax.f32 %v587, 0.0
      %v648 = vmax.f32 %v590, 0.0
      %v649 = vmax.f32 %v595, 0.0
      %v650 = vmax.f32 %v598, 0.0
      %v651 = vmax.f32 %v603, 0.0
      %v652 = vmax.f32 %v606, 0.0
      %v653 = vmax.f32 %v611, 0.0
      %v654 = vmax.f32 %v614, 0.0
      %v655 = vmax.f32 %v619, 0.0
      %v656 = vmax.f32 %v622, 0.0
      %v657 = vpack.c.bf16 %v626, %v625
      %v658 = vpack.c.bf16 %v628, %v627
      %v659 = vpack.c.bf16 %v630, %v629
      %v660 = vpack.c.bf16 %v632, %v631
      %v661 = vpack.c.bf16 %v634, %v633
      %v662 = vpack.c.bf16 %v636, %v635
      %v663 = vpack.c.bf16 %v638, %v637
      %v664 = vpack.c.bf16 %v640, %v639
      %v665 = vpack.c.bf16 %v642, %v641
      %v666 = vpack.c.bf16 %v644, %v643
      %v667 = vpack.c.bf16 %v646, %v645
      %v668 = vpack.c.bf16 %v648, %v647
      %v669 = vpack.c.bf16 %v650, %v649
      %v670 = vpack.c.bf16 %v652, %v651
      %v671 = vpack.c.bf16 %v654, %v653
      %v672 = vpack.c.bf16 %v656, %v655
      %v689 = vunpack.c.l.b16 %v657
      %v690 = vunpack.c.h.b16 %v657
      %v691 = vunpack.c.l.b16 %v658
      %v692 = vunpack.c.h.b16 %v658
      %v693 = vunpack.c.l.b16 %v659
      %v694 = vunpack.c.h.b16 %v659
      %v695 = vunpack.c.l.b16 %v660
      %v696 = vunpack.c.h.b16 %v660
      %v697 = vunpack.c.l.b16 %v661
      %v698 = vunpack.c.h.b16 %v661
      %v699 = vunpack.c.l.b16 %v662
      %v700 = vunpack.c.h.b16 %v662
      %v701 = vunpack.c.l.b16 %v663
      %v702 = vunpack.c.h.b16 %v663
      %v703 = vunpack.c.l.b16 %v664
      %v704 = vunpack.c.h.b16 %v664
      %v705 = vunpack.c.l.b16 %v665
      %v706 = vunpack.c.h.b16 %v665
      %v707 = vunpack.c.l.b16 %v666
      %v708 = vunpack.c.h.b16 %v666
      %v709 = vunpack.c.l.b16 %v667
      %v710 = vunpack.c.h.b16 %v667
      %v711 = vunpack.c.l.b16 %v668
      %v712 = vunpack.c.h.b16 %v668
      %v713 = vunpack.c.l.b16 %v669
      %v714 = vunpack.c.h.b16 %v669
      %v715 = vunpack.c.l.b16 %v670
      %v716 = vunpack.c.h.b16 %v670
      %v717 = vunpack.c.l.b16 %v671
      %v718 = vunpack.c.h.b16 %v671
      %v719 = vunpack.c.l.b16 %v672
      %v720 = vunpack.c.h.b16 %v672
      %v721 = vpack.c.b16 %v689, %v689
      %v722 = vpack.c.b16 %v690, %v690
      %v723 = vpack.c.b16 %v691, %v691
      %v724 = vpack.c.b16 %v692, %v692
      %v725 = vpack.c.b16 %v693, %v693
      %v726 = vpack.c.b16 %v694, %v694
      %v727 = vpack.c.b16 %v695, %v695
      %v728 = vpack.c.b16 %v696, %v696
      %v729 = vpack.c.b16 %v697, %v697
      %v730 = vpack.c.b16 %v698, %v698
      %v731 = vpack.c.b16 %v699, %v699
      %v732 = vpack.c.b16 %v700, %v700
      %v733 = vpack.c.b16 %v701, %v701
      %v734 = vpack.c.b16 %v702, %v702
      %v735 = vpack.c.b16 %v703, %v703
      %v736 = vpack.c.b16 %v704, %v704
      %v737 = vpack.c.b16 %v705, %v705
      %v738 = vpack.c.b16 %v706, %v706
      %v739 = vpack.c.b16 %v707, %v707
      %v740 = vpack.c.b16 %v708, %v708
      %v741 = vpack.c.b16 %v709, %v709
      %v742 = vpack.c.b16 %v710, %v710
      %v743 = vpack.c.b16 %v711, %v711
      %v744 = vpack.c.b16 %v712, %v712
      %v745 = vpack.c.b16 %v713, %v713
      %v746 = vpack.c.b16 %v714, %v714
      %v747 = vpack.c.b16 %v715, %v715
      %v748 = vpack.c.b16 %v716, %v716
      %v749 = vpack.c.b16 %v717, %v717
      %v750 = vpack.c.b16 %v718, %v718
      %v751 = vpack.c.b16 %v719, %v719
      %v752 = vpack.c.b16 %v720, %v720
      %753 = vrot.lane.b32.xlu0 %v721, 120
      %v754 = vpop.permute.xlu0 %753
      %755 = vrot.lane.b32.xlu0 %v722, 120
      %v756 = vpop.permute.xlu0 %755
      %757 = vrot.lane.b32.xlu0 %v723, 120
      %v758 = vpop.permute.xlu0 %757
      %759 = vrot.lane.b32.xlu0 %v724, 120
      %v760 = vpop.permute.xlu0 %759
      %761 = vrot.lane.b32.xlu0 %v725, 120
      %v762 = vpop.permute.xlu0 %761
      %763 = vrot.lane.b32.xlu0 %v726, 120
      %v764 = vpop.permute.xlu0 %763
      %765 = vrot.lane.b32.xlu0 %v727, 120
      %v766 = vpop.permute.xlu0 %765
      %767 = vrot.lane.b32.xlu0 %v728, 120
      %v768 = vpop.permute.xlu0 %767
      %769 = vrot.lane.b32.xlu0 %v729, 120
      %v770 = vpop.permute.xlu0 %769
      %771 = vrot.lane.b32.xlu0 %v730, 120
      %v772 = vpop.permute.xlu0 %771
      %773 = vrot.lane.b32.xlu0 %v731, 120
      %v774 = vpop.permute.xlu0 %773
      %775 = vrot.lane.b32.xlu0 %v732, 120
      %v776 = vpop.permute.xlu0 %775
      %777 = vrot.lane.b32.xlu0 %v733, 120
      %v778 = vpop.permute.xlu0 %777
      %779 = vrot.lane.b32.xlu0 %v734, 120
      %v780 = vpop.permute.xlu0 %779
      %781 = vrot.lane.b32.xlu0 %v735, 120
      %v782 = vpop.permute.xlu0 %781
      %783 = vrot.lane.b32.xlu0 %v736, 120
      %v784 = vpop.permute.xlu0 %783
      %785 = vrot.lane.b32.xlu0 %v737, 120
      %v786 = vpop.permute.xlu0 %785
      %787 = vrot.lane.b32.xlu0 %v738, 120
      %v788 = vpop.permute.xlu0 %787
      %789 = vrot.lane.b32.xlu0 %v739, 120
      %v790 = vpop.permute.xlu0 %789
      %791 = vrot.lane.b32.xlu0 %v740, 120
      %v792 = vpop.permute.xlu0 %791
      %793 = vrot.lane.b32.xlu0 %v741, 120
      %v794 = vpop.permute.xlu0 %793
      %795 = vrot.lane.b32.xlu0 %v742, 120
      %v796 = vpop.permute.xlu0 %795
      %797 = vrot.lane.b32.xlu0 %v743, 120
      %v798 = vpop.permute.xlu0 %797
      %799 = vrot.lane.b32.xlu0 %v744, 120
      %v800 = vpop.permute.xlu0 %799
      %801 = vrot.lane.b32.xlu0 %v745, 120
      %v802 = vpop.permute.xlu0 %801
      %803 = vrot.lane.b32.xlu0 %v746, 120
      %v804 = vpop.permute.xlu0 %803
      %805 = vrot.lane.b32.xlu0 %v747, 120
      %v806 = vpop.permute.xlu0 %805
      %807 = vrot.lane.b32.xlu0 %v748, 120
      %v808 = vpop.permute.xlu0 %807
      %809 = vrot.lane.b32.xlu0 %v749, 120
      %v810 = vpop.permute.xlu0 %809
      %811 = vrot.lane.b32.xlu0 %v750, 120
      %v812 = vpop.permute.xlu0 %811
      %813 = vrot.lane.b32.xlu0 %v751, 120
      %v814 = vpop.permute.xlu0 %813
      %815 = vrot.lane.b32.xlu0 %v752, 120
      %v816 = vpop.permute.xlu0 %815
      %849 = vst.msk [vmem:[#allocation2 + $0x10] sm:$0xf] %vm282, %v754
      %850 = vst.msk [vmem:[#allocation2 + $0x14] sm:$0xf] %vm282, %v756
      %851 = vst.msk [vmem:[#allocation2 + $0x18] sm:$0xf] %vm282, %v758
      %852 = vst.msk [vmem:[#allocation2 + $0x1c] sm:$0xf] %vm282, %v760
      %853 = vst.msk [vmem:[#allocation2 + $0x20] sm:$0xf] %vm282, %v762
      %854 = vst.msk [vmem:[#allocation2 + $0x24] sm:$0xf] %vm282, %v764
      %855 = vst.msk [vmem:[#allocation2 + $0x28] sm:$0xf] %vm282, %v766
      %856 = vst.msk [vmem:[#allocation2 + $0x2c] sm:$0xf] %vm282, %v768
      %857 = vst.msk [vmem:[#allocation2 + $0x30] sm:$0xf] %vm282, %v770
      %858 = vst.msk [vmem:[#allocation2 + $0x34] sm:$0xf] %vm282, %v772
      %859 = vst.msk [vmem:[#allocation2 + $0x38] sm:$0xf] %vm282, %v774
      %860 = vst.msk [vmem:[#allocation2 + $0x3c] sm:$0xf] %vm282, %v776
      %861 = vst.msk [vmem:[#allocation2 + $0x40] sm:$0xf] %vm282, %v778
      %862 = vst.msk [vmem:[#allocation2 + $0x44] sm:$0xf] %vm282, %v780
      %863 = vst.msk [vmem:[#allocation2 + $0x48] sm:$0xf] %vm282, %v782
      %864 = vst.msk [vmem:[#allocation2 + $0x4c] sm:$0xf] %vm282, %v784
      %865 = vst.msk [vmem:[#allocation2 + $0x50] sm:$0xf] %vm282, %v786
      %866 = vst.msk [vmem:[#allocation2 + $0x54] sm:$0xf] %vm282, %v788
      %867 = vst.msk [vmem:[#allocation2 + $0x58] sm:$0xf] %vm282, %v790
      %868 = vst.msk [vmem:[#allocation2 + $0x5c] sm:$0xf] %vm282, %v792
      %869 = vst.msk [vmem:[#allocation2 + $0x60] sm:$0xf] %vm282, %v794
      %870 = vst.msk [vmem:[#allocation2 + $0x64] sm:$0xf] %vm282, %v796
      %871 = vst.msk [vmem:[#allocation2 + $0x68] sm:$0xf] %vm282, %v798
      %872 = vst.msk [vmem:[#allocation2 + $0x6c] sm:$0xf] %vm282, %v800
      %873 = vst.msk [vmem:[#allocation2 + $0x70] sm:$0xf] %vm282, %v802
      %874 = vst.msk [vmem:[#allocation2 + $0x74] sm:$0xf] %vm282, %v804
      %875 = vst.msk [vmem:[#allocation2 + $0x78] sm:$0xf] %vm282, %v806
      %876 = vst.msk [vmem:[#allocation2 + $0x7c] sm:$0xf] %vm282, %v808
      %877 = vst.msk [vmem:[#allocation2 + $0x80] sm:$0xf] %vm282, %v810
      %878 = vst.msk [vmem:[#allocation2 + $0x84] sm:$0xf] %vm282, %v812
      %879 = vst.msk [vmem:[#allocation2 + $0x88] sm:$0xf] %vm282, %v814
      %880 = vst.msk [vmem:[#allocation2 + $0x8c] sm:$0xf] %vm282, %v816
      %v881 = vlaneseq
      %v882 = vshrl.u32 %v881, 7
      %v883 = vadd.s32 %v882, 8
      %v884 = vadd.s32 %v882, 16
      %v885 = vadd.s32 %v882, 24
      %v886 = vadd.s32 %v882, 32
      %v887 = vadd.s32 %v882, 40
      %v888 = vadd.s32 %v882, 48
      %v889 = vadd.s32 %v882, 56
      %v890 = vadd.s32 %v882, 64
      %v891 = vadd.s32 %v882, 72
      %v892 = vadd.s32 %v882, 80
      %v893 = vadd.s32 %v882, 88
      %v894 = vadd.s32 %v882, 96
      %v895 = vadd.s32 %v882, 104
      %v896 = vadd.s32 %v882, 112
      %v897 = vadd.s32 %v882, 120
      %v898 = vadd.s32 %v882, 128
      %v899 = vadd.s32 %v882, 136
      %v900 = vadd.s32 %v882, 144
      %v901 = vadd.s32 %v882, 152
      %v902 = vadd.s32 %v882, 160
      %v903 = vadd.s32 %v882, 168
      %v904 = vadd.s32 %v882, 176
      %v905 = vadd.s32 %v882, 184
      %v906 = vadd.s32 %v882, 192
      %v907 = vadd.s32 %v882, 200
      %v908 = vadd.s32 %v882, 208
      %v909 = vadd.s32 %v882, 216
      %v910 = vadd.s32 %v882, 224
      %v911 = vadd.s32 %v882, 232
      %v912 = vadd.s32 %v882, 240
      %v913 = vadd.s32 %v882, 248
      %vm914 = vcmp.lt.s32.totalorder %v882, 0
      %v915 = vsub.s32 0, %v882
      %v916 = vsel %vm914, %v915, %v882
      %v917 = vshrl.u32 %v916, 4
      %v918 = vand.u32 %v916, 15
      %v919 = vsub.s32 0, %v918
      %v920 = vsel %vm914, %v919, %v918
      %vm921 = vcmp.lt.s32.totalorder %v883, 0
      %v922 = vsub.s32 0, %v883
      %v923 = vsel %vm921, %v922, %v883
      %v924 = vshrl.u32 %v923, 4
      %v925 = vand.u32 %v923, 15
      %v926 = vsub.s32 0, %v925
      %v927 = vsel %vm921, %v926, %v925
      %vm928 = vcmp.lt.s32.totalorder %v884, 0
      %v929 = vsub.s32 0, %v884
      %v930 = vsel %vm928, %v929, %v884
      %v931 = vshrl.u32 %v930, 4
      %v932 = vand.u32 %v930, 15
      %v933 = vsub.s32 0, %v932
      %v934 = vsel %vm928, %v933, %v932
      %vm935 = vcmp.lt.s32.totalorder %v885, 0
      %v936 = vsub.s32 0, %v885
      %v937 = vsel %vm935, %v936, %v885
      %v938 = vshrl.u32 %v937, 4
      %v939 = vand.u32 %v937, 15
      %v940 = vsub.s32 0, %v939
      %v941 = vsel %vm935, %v940, %v939
      %vm942 = vcmp.lt.s32.totalorder %v886, 0
      %v943 = vsub.s32 0, %v886
      %v944 = vsel %vm942, %v943, %v886
      %v945 = vshrl.u32 %v944, 4
      %v946 = vand.u32 %v944, 15
      %v947 = vsub.s32 0, %v946
      %v948 = vsel %vm942, %v947, %v946
      %vm949 = vcmp.lt.s32.totalorder %v887, 0
      %v950 = vsub.s32 0, %v887
      %v951 = vsel %vm949, %v950, %v887
      %v952 = vshrl.u32 %v951, 4
      %v953 = vand.u32 %v951, 15
      %v954 = vsub.s32 0, %v953
      %v955 = vsel %vm949, %v954, %v953
      %vm956 = vcmp.lt.s32.totalorder %v888, 0
      %v957 = vsub.s32 0, %v888
      %v958 = vsel %vm956, %v957, %v888
      %v959 = vshrl.u32 %v958, 4
      %v960 = vand.u32 %v958, 15
      %v961 = vsub.s32 0, %v960
      %v962 = vsel %vm956, %v961, %v960
      %vm963 = vcmp.lt.s32.totalorder %v889, 0
      %v964 = vsub.s32 0, %v889
      %v965 = vsel %vm963, %v964, %v889
      %v966 = vshrl.u32 %v965, 4
      %v967 = vand.u32 %v965, 15
      %v968 = vsub.s32 0, %v967
      %v969 = vsel %vm963, %v968, %v967
      %vm970 = vcmp.lt.s32.totalorder %v890, 0
      %v971 = vsub.s32 0, %v890
      %v972 = vsel %vm970, %v971, %v890
      %v973 = vshrl.u32 %v972, 4
      %v974 = vand.u32 %v972, 15
      %v975 = vsub.s32 0, %v974
      %v976 = vsel %vm970, %v975, %v974
      %vm977 = vcmp.lt.s32.totalorder %v891, 0
      %v978 = vsub.s32 0, %v891
      %v979 = vsel %vm977, %v978, %v891
      %v980 = vshrl.u32 %v979, 4
      %v981 = vand.u32 %v979, 15
      %v982 = vsub.s32 0, %v981
      %v983 = vsel %vm977, %v982, %v981
      %vm984 = vcmp.lt.s32.totalorder %v892, 0
      %v985 = vsub.s32 0, %v892
      %v986 = vsel %vm984, %v985, %v892
      %v987 = vshrl.u32 %v986, 4
      %v988 = vand.u32 %v986, 15
      %v989 = vsub.s32 0, %v988
      %v990 = vsel %vm984, %v989, %v988
      %vm991 = vcmp.lt.s32.totalorder %v893, 0
      %v992 = vsub.s32 0, %v893
      %v993 = vsel %vm991, %v992, %v893
      %v994 = vshrl.u32 %v993, 4
      %v995 = vand.u32 %v993, 15
      %v996 = vsub.s32 0, %v995
      %v997 = vsel %vm991, %v996, %v995
      %vm998 = vcmp.lt.s32.totalorder %v894, 0
      %v999 = vsub.s32 0, %v894
      %v1000 = vsel %vm998, %v999, %v894
      %v1001 = vshrl.u32 %v1000, 4
      %v1002 = vand.u32 %v1000, 15
      %v1003 = vsub.s32 0, %v1002
      %v1004 = vsel %vm998, %v1003, %v1002
      %vm1005 = vcmp.lt.s32.totalorder %v895, 0
      %v1006 = vsub.s32 0, %v895
      %v1007 = vsel %vm1005, %v1006, %v895
      %v1008 = vshrl.u32 %v1007, 4
      %v1009 = vand.u32 %v1007, 15
      %v1010 = vsub.s32 0, %v1009
      %v1011 = vsel %vm1005, %v1010, %v1009
      %vm1012 = vcmp.lt.s32.totalorder %v896, 0
      %v1013 = vsub.s32 0, %v896
      %v1014 = vsel %vm1012, %v1013, %v896
      %v1015 = vshrl.u32 %v1014, 4
      %v1016 = vand.u32 %v1014, 15
      %v1017 = vsub.s32 0, %v1016
      %v1018 = vsel %vm1012, %v1017, %v1016
      %vm1019 = vcmp.lt.s32.totalorder %v897, 0
      %v1020 = vsub.s32 0, %v897
      %v1021 = vsel %vm1019, %v1020, %v897
      %v1022 = vshrl.u32 %v1021, 4
      %v1023 = vand.u32 %v1021, 15
      %v1024 = vsub.s32 0, %v1023
      %v1025 = vsel %vm1019, %v1024, %v1023
      %vm1026 = vcmp.lt.s32.totalorder %v898, 0
      %v1027 = vsub.s32 0, %v898
      %v1028 = vsel %vm1026, %v1027, %v898
      %v1029 = vshrl.u32 %v1028, 4
      %v1030 = vand.u32 %v1028, 15
      %v1031 = vsub.s32 0, %v1030
      %v1032 = vsel %vm1026, %v1031, %v1030
      %vm1033 = vcmp.lt.s32.totalorder %v899, 0
      %v1034 = vsub.s32 0, %v899
      %v1035 = vsel %vm1033, %v1034, %v899
      %v1036 = vshrl.u32 %v1035, 4
      %v1037 = vand.u32 %v1035, 15
      %v1038 = vsub.s32 0, %v1037
      %v1039 = vsel %vm1033, %v1038, %v1037
      %vm1040 = vcmp.lt.s32.totalorder %v900, 0
      %v1041 = vsub.s32 0, %v900
      %v1042 = vsel %vm1040, %v1041, %v900
      %v1043 = vshrl.u32 %v1042, 4
      %v1044 = vand.u32 %v1042, 15
      %v1045 = vsub.s32 0, %v1044
      %v1046 = vsel %vm1040, %v1045, %v1044
      %vm1047 = vcmp.lt.s32.totalorder %v901, 0
      %v1048 = vsub.s32 0, %v901
      %v1049 = vsel %vm1047, %v1048, %v901
      %v1050 = vshrl.u32 %v1049, 4
      %v1051 = vand.u32 %v1049, 15
      %v1052 = vsub.s32 0, %v1051
      %v1053 = vsel %vm1047, %v1052, %v1051
      %vm1054 = vcmp.lt.s32.totalorder %v902, 0
      %v1055 = vsub.s32 0, %v902
      %v1056 = vsel %vm1054, %v1055, %v902
      %v1057 = vshrl.u32 %v1056, 4
      %v1058 = vand.u32 %v1056, 15
      %v1059 = vsub.s32 0, %v1058
      %v1060 = vsel %vm1054, %v1059, %v1058
      %vm1061 = vcmp.lt.s32.totalorder %v903, 0
      %v1062 = vsub.s32 0, %v903
      %v1063 = vsel %vm1061, %v1062, %v903
      %v1064 = vshrl.u32 %v1063, 4
      %v1065 = vand.u32 %v1063, 15
      %v1066 = vsub.s32 0, %v1065
      %v1067 = vsel %vm1061, %v1066, %v1065
      %vm1068 = vcmp.lt.s32.totalorder %v904, 0
      %v1069 = vsub.s32 0, %v904
      %v1070 = vsel %vm1068, %v1069, %v904
      %v1071 = vshrl.u32 %v1070, 4
      %v1072 = vand.u32 %v1070, 15
      %v1073 = vsub.s32 0, %v1072
      %v1074 = vsel %vm1068, %v1073, %v1072
      %vm1075 = vcmp.lt.s32.totalorder %v905, 0
      %v1076 = vsub.s32 0, %v905
      %v1077 = vsel %vm1075, %v1076, %v905
      %v1078 = vshrl.u32 %v1077, 4
      %v1079 = vand.u32 %v1077, 15
      %v1080 = vsub.s32 0, %v1079
      %v1081 = vsel %vm1075, %v1080, %v1079
      %vm1082 = vcmp.lt.s32.totalorder %v906, 0
      %v1083 = vsub.s32 0, %v906
      %v1084 = vsel %vm1082, %v1083, %v906
      %v1085 = vshrl.u32 %v1084, 4
      %v1086 = vand.u32 %v1084, 15
      %v1087 = vsub.s32 0, %v1086
      %v1088 = vsel %vm1082, %v1087, %v1086
      %vm1089 = vcmp.lt.s32.totalorder %v907, 0
      %v1090 = vsub.s32 0, %v907
      %v1091 = vsel %vm1089, %v1090, %v907
      %v1092 = vshrl.u32 %v1091, 4
      %v1093 = vand.u32 %v1091, 15
      %v1094 = vsub.s32 0, %v1093
      %v1095 = vsel %vm1089, %v1094, %v1093
      %vm1096 = vcmp.lt.s32.totalorder %v908, 0
      %v1097 = vsub.s32 0, %v908
      %v1098 = vsel %vm1096, %v1097, %v908
      %v1099 = vshrl.u32 %v1098, 4
      %v1100 = vand.u32 %v1098, 15
      %v1101 = vsub.s32 0, %v1100
      %v1102 = vsel %vm1096, %v1101, %v1100
      %vm1103 = vcmp.lt.s32.totalorder %v909, 0
      %v1104 = vsub.s32 0, %v909
      %v1105 = vsel %vm1103, %v1104, %v909
      %v1106 = vshrl.u32 %v1105, 4
      %v1107 = vand.u32 %v1105, 15
      %v1108 = vsub.s32 0, %v1107
      %v1109 = vsel %vm1103, %v1108, %v1107
      %vm1110 = vcmp.lt.s32.totalorder %v910, 0
      %v1111 = vsub.s32 0, %v910
      %v1112 = vsel %vm1110, %v1111, %v910
      %v1113 = vshrl.u32 %v1112, 4
      %v1114 = vand.u32 %v1112, 15
      %v1115 = vsub.s32 0, %v1114
      %v1116 = vsel %vm1110, %v1115, %v1114
      %vm1117 = vcmp.lt.s32.totalorder %v911, 0
      %v1118 = vsub.s32 0, %v911
      %v1119 = vsel %vm1117, %v1118, %v911
      %v1120 = vshrl.u32 %v1119, 4
      %v1121 = vand.u32 %v1119, 15
      %v1122 = vsub.s32 0, %v1121
      %v1123 = vsel %vm1117, %v1122, %v1121
      %vm1124 = vcmp.lt.s32.totalorder %v912, 0
      %v1125 = vsub.s32 0, %v912
      %v1126 = vsel %vm1124, %v1125, %v912
      %v1127 = vshrl.u32 %v1126, 4
      %v1128 = vand.u32 %v1126, 15
      %v1129 = vsub.s32 0, %v1128
      %v1130 = vsel %vm1124, %v1129, %v1128
      %vm1131 = vcmp.lt.s32.totalorder %v913, 0
      %v1132 = vsub.s32 0, %v913
      %v1133 = vsel %vm1131, %v1132, %v913
      %v1134 = vshrl.u32 %v1133, 4
      %v1135 = vand.u32 %v1133, 15
      %v1136 = vsub.s32 0, %v1135
      %v1137 = vsel %vm1131, %v1136, %v1135
      %vm1138 = vcmp.ne.s32.totalorder %v920, 0
      %vm1139 = vcmp.ne.s32.totalorder %v927, 0
      %vm1140 = vcmp.ne.s32.totalorder %v934, 0
      %vm1141 = vcmp.ne.s32.totalorder %v941, 0
      %vm1142 = vcmp.ne.s32.totalorder %v948, 0
      %vm1143 = vcmp.ne.s32.totalorder %v955, 0
      %vm1144 = vcmp.ne.s32.totalorder %v962, 0
      %vm1145 = vcmp.ne.s32.totalorder %v969, 0
      %vm1146 = vcmp.ne.s32.totalorder %v976, 0
      %vm1147 = vcmp.ne.s32.totalorder %v983, 0
      %vm1148 = vcmp.ne.s32.totalorder %v990, 0
      %vm1149 = vcmp.ne.s32.totalorder %v997, 0
      %vm1150 = vcmp.ne.s32.totalorder %v1004, 0
      %vm1151 = vcmp.ne.s32.totalorder %v1011, 0
      %vm1152 = vcmp.ne.s32.totalorder %v1018, 0
      %vm1153 = vcmp.ne.s32.totalorder %v1025, 0
      %vm1154 = vcmp.ne.s32.totalorder %v1032, 0
      %vm1155 = vcmp.ne.s32.totalorder %v1039, 0
      %vm1156 = vcmp.ne.s32.totalorder %v1046, 0
      %vm1157 = vcmp.ne.s32.totalorder %v1053, 0
      %vm1158 = vcmp.ne.s32.totalorder %v1060, 0
      %vm1159 = vcmp.ne.s32.totalorder %v1067, 0
      %vm1160 = vcmp.ne.s32.totalorder %v1074, 0
      %vm1161 = vcmp.ne.s32.totalorder %v1081, 0
      %vm1162 = vcmp.ne.s32.totalorder %v1088, 0
      %vm1163 = vcmp.ne.s32.totalorder %v1095, 0
      %vm1164 = vcmp.ne.s32.totalorder %v1102, 0
      %vm1165 = vcmp.ne.s32.totalorder %v1109, 0
      %vm1166 = vcmp.ne.s32.totalorder %v1116, 0
      %vm1167 = vcmp.ne.s32.totalorder %v1123, 0
      %vm1168 = vcmp.ne.s32.totalorder %v1130, 0
      %vm1169 = vcmp.ne.s32.totalorder %v1137, 0
      %vm1170 = vcmp.lt.s32.totalorder %v920, 0
      %vm1171 = vcmp.lt.s32.totalorder %v927, 0
      %vm1172 = vcmp.lt.s32.totalorder %v934, 0
      %vm1173 = vcmp.lt.s32.totalorder %v941, 0
      %vm1174 = vcmp.lt.s32.totalorder %v948, 0
      %vm1175 = vcmp.lt.s32.totalorder %v955, 0
      %vm1176 = vcmp.lt.s32.totalorder %v962, 0
      %vm1177 = vcmp.lt.s32.totalorder %v969, 0
      %vm1178 = vcmp.lt.s32.totalorder %v976, 0
      %vm1179 = vcmp.lt.s32.totalorder %v983, 0
      %vm1180 = vcmp.lt.s32.totalorder %v990, 0
      %vm1181 = vcmp.lt.s32.totalorder %v997, 0
      %vm1182 = vcmp.lt.s32.totalorder %v1004, 0
      %vm1183 = vcmp.lt.s32.totalorder %v1011, 0
      %vm1184 = vcmp.lt.s32.totalorder %v1018, 0
      %vm1185 = vcmp.lt.s32.totalorder %v1025, 0
      %vm1186 = vcmp.lt.s32.totalorder %v1032, 0
      %vm1187 = vcmp.lt.s32.totalorder %v1039, 0
      %vm1188 = vcmp.lt.s32.totalorder %v1046, 0
      %vm1189 = vcmp.lt.s32.totalorder %v1053, 0
      %vm1190 = vcmp.lt.s32.totalorder %v1060, 0
      %vm1191 = vcmp.lt.s32.totalorder %v1067, 0
      %vm1192 = vcmp.lt.s32.totalorder %v1074, 0
      %vm1193 = vcmp.lt.s32.totalorder %v1081, 0
      %vm1194 = vcmp.lt.s32.totalorder %v1088, 0
      %vm1195 = vcmp.lt.s32.totalorder %v1095, 0
      %vm1196 = vcmp.lt.s32.totalorder %v1102, 0
      %vm1197 = vcmp.lt.s32.totalorder %v1109, 0
      %vm1198 = vcmp.lt.s32.totalorder %v1116, 0
      %vm1199 = vcmp.lt.s32.totalorder %v1123, 0
      %vm1200 = vcmp.lt.s32.totalorder %v1130, 0
      %vm1201 = vcmp.lt.s32.totalorder %v1137, 0
      %vm1202 = vmand %vm1170, %vm1138
      %vm1203 = vmand %vm1171, %vm1139
      %vm1204 = vmand %vm1172, %vm1140
      %vm1205 = vmand %vm1173, %vm1141
      %vm1206 = vmand %vm1174, %vm1142
      %vm1207 = vmand %vm1175, %vm1143
      %vm1208 = vmand %vm1176, %vm1144
      %vm1209 = vmand %vm1177, %vm1145
      %vm1210 = vmand %vm1178, %vm1146
      %vm1211 = vmand %vm1179, %vm1147
      %vm1212 = vmand %vm1180, %vm1148
      %vm1213 = vmand %vm1181, %vm1149
      %vm1214 = vmand %vm1182, %vm1150
      %vm1215 = vmand %vm1183, %vm1151
      %vm1216 = vmand %vm1184, %vm1152
      %vm1217 = vmand %vm1185, %vm1153
      %vm1218 = vmand %vm1186, %vm1154
      %vm1219 = vmand %vm1187, %vm1155
      %vm1220 = vmand %vm1188, %vm1156
      %vm1221 = vmand %vm1189, %vm1157
      %vm1222 = vmand %vm1190, %vm1158
      %vm1223 = vmand %vm1191, %vm1159
      %vm1224 = vmand %vm1192, %vm1160
      %vm1225 = vmand %vm1193, %vm1161
      %vm1226 = vmand %vm1194, %vm1162
      %vm1227 = vmand %vm1195, %vm1163
      %vm1228 = vmand %vm1196, %vm1164
      %vm1229 = vmand %vm1197, %vm1165
      %vm1230 = vmand %vm1198, %vm1166
      %vm1231 = vmand %vm1199, %vm1167
      %vm1232 = vmand %vm1200, %vm1168
      %vm1233 = vmand %vm1201, %vm1169
      %v1234 = vadd.s32 %v920, 16
      %v1235 = vadd.s32 %v927, 16
      %v1236 = vadd.s32 %v934, 16
      %v1237 = vadd.s32 %v941, 16
      %v1238 = vadd.s32 %v948, 16
      %v1239 = vadd.s32 %v955, 16
      %v1240 = vadd.s32 %v962, 16
      %v1241 = vadd.s32 %v969, 16
      %v1242 = vadd.s32 %v976, 16
      %v1243 = vadd.s32 %v983, 16
      %v1244 = vadd.s32 %v990, 16
      %v1245 = vadd.s32 %v997, 16
      %v1246 = vadd.s32 %v1004, 16
      %v1247 = vadd.s32 %v1011, 16
      %v1248 = vadd.s32 %v1018, 16
      %v1249 = vadd.s32 %v1025, 16
      %v1250 = vadd.s32 %v1032, 16
      %v1251 = vadd.s32 %v1039, 16
      %v1252 = vadd.s32 %v1046, 16
      %v1253 = vadd.s32 %v1053, 16
      %v1254 = vadd.s32 %v1060, 16
      %v1255 = vadd.s32 %v1067, 16
      %v1256 = vadd.s32 %v1074, 16
      %v1257 = vadd.s32 %v1081, 16
      %v1258 = vadd.s32 %v1088, 16
      %v1259 = vadd.s32 %v1095, 16
      %v1260 = vadd.s32 %v1102, 16
      %v1261 = vadd.s32 %v1109, 16
      %v1262 = vadd.s32 %v1116, 16
      %v1263 = vadd.s32 %v1123, 16
      %v1264 = vadd.s32 %v1130, 16
      %v1265 = vadd.s32 %v1137, 16
      %v1266 = vsel %vm1202, %v1234, %v920
      %v1267 = vsel %vm1203, %v1235, %v927
      %v1268 = vsel %vm1204, %v1236, %v934
      %v1269 = vsel %vm1205, %v1237, %v941
      %v1270 = vsel %vm1206, %v1238, %v948
      %v1271 = vsel %vm1207, %v1239, %v955
      %v1272 = vsel %vm1208, %v1240, %v962
      %v1273 = vsel %vm1209, %v1241, %v969
      %v1274 = vsel %vm1210, %v1242, %v976
      %v1275 = vsel %vm1211, %v1243, %v983
      %v1276 = vsel %vm1212, %v1244, %v990
      %v1277 = vsel %vm1213, %v1245, %v997
      %v1278 = vsel %vm1214, %v1246, %v1004
      %v1279 = vsel %vm1215, %v1247, %v1011
      %v1280 = vsel %vm1216, %v1248, %v1018
      %v1281 = vsel %vm1217, %v1249, %v1025
      %v1282 = vsel %vm1218, %v1250, %v1032
      %v1283 = vsel %vm1219, %v1251, %v1039
      %v1284 = vsel %vm1220, %v1252, %v1046
      %v1285 = vsel %vm1221, %v1253, %v1053
      %v1286 = vsel %vm1222, %v1254, %v1060
      %v1287 = vsel %vm1223, %v1255, %v1067
      %v1288 = vsel %vm1224, %v1256, %v1074
      %v1289 = vsel %vm1225, %v1257, %v1081
      %v1290 = vsel %vm1226, %v1258, %v1088
      %v1291 = vsel %vm1227, %v1259, %v1095
      %v1292 = vsel %vm1228, %v1260, %v1102
      %v1293 = vsel %vm1229, %v1261, %v1109
      %v1294 = vsel %vm1230, %v1262, %v1116
      %v1295 = vsel %vm1231, %v1263, %v1123
      %v1296 = vsel %vm1232, %v1264, %v1130
      %v1297 = vsel %vm1233, %v1265, %v1137
      %vm1298 = vcmp.ge.s32.totalorder %v1266, 1
      %vm1299 = vcmp.ge.s32.totalorder %v1267, 1
      %vm1300 = vcmp.ge.s32.totalorder %v1268, 1
      %vm1301 = vcmp.ge.s32.totalorder %v1269, 1
      %vm1302 = vcmp.ge.s32.totalorder %v1270, 1
      %vm1303 = vcmp.ge.s32.totalorder %v1271, 1
      %vm1304 = vcmp.ge.s32.totalorder %v1272, 1
      %vm1305 = vcmp.ge.s32.totalorder %v1273, 1
      %vm1306 = vcmp.ge.s32.totalorder %v1274, 1
      %vm1307 = vcmp.ge.s32.totalorder %v1275, 1
      %vm1308 = vcmp.ge.s32.totalorder %v1276, 1
      %vm1309 = vcmp.ge.s32.totalorder %v1277, 1
      %vm1310 = vcmp.ge.s32.totalorder %v1278, 1
      %vm1311 = vcmp.ge.s32.totalorder %v1279, 1
      %vm1312 = vcmp.ge.s32.totalorder %v1280, 1
      %vm1313 = vcmp.ge.s32.totalorder %v1281, 1
      %vm1314 = vcmp.ge.s32.totalorder %v1282, 1
      %vm1315 = vcmp.ge.s32.totalorder %v1283, 1
      %vm1316 = vcmp.ge.s32.totalorder %v1284, 1
      %vm1317 = vcmp.ge.s32.totalorder %v1285, 1
      %vm1318 = vcmp.ge.s32.totalorder %v1286, 1
      %vm1319 = vcmp.ge.s32.totalorder %v1287, 1
      %vm1320 = vcmp.ge.s32.totalorder %v1288, 1
      %vm1321 = vcmp.ge.s32.totalorder %v1289, 1
      %vm1322 = vcmp.ge.s32.totalorder %v1290, 1
      %vm1323 = vcmp.ge.s32.totalorder %v1291, 1
      %vm1324 = vcmp.ge.s32.totalorder %v1292, 1
      %vm1325 = vcmp.ge.s32.totalorder %v1293, 1
      %vm1326 = vcmp.ge.s32.totalorder %v1294, 1
      %vm1327 = vcmp.ge.s32.totalorder %v1295, 1
      %vm1328 = vcmp.ge.s32.totalorder %v1296, 1
      %vm1329 = vcmp.ge.s32.totalorder %v1297, 1
      %vm1330 = vcmp.lt.s32.totalorder %v1266, 15
      %vm1331 = vcmp.lt.s32.totalorder %v1267, 15
      %vm1332 = vcmp.lt.s32.totalorder %v1268, 15
      %vm1333 = vcmp.lt.s32.totalorder %v1269, 15
      %vm1334 = vcmp.lt.s32.totalorder %v1270, 15
      %vm1335 = vcmp.lt.s32.totalorder %v1271, 15
      %vm1336 = vcmp.lt.s32.totalorder %v1272, 15
      %vm1337 = vcmp.lt.s32.totalorder %v1273, 15
      %vm1338 = vcmp.lt.s32.totalorder %v1274, 15
      %vm1339 = vcmp.lt.s32.totalorder %v1275, 15
      %vm1340 = vcmp.lt.s32.totalorder %v1276, 15
      %vm1341 = vcmp.lt.s32.totalorder %v1277, 15
      %vm1342 = vcmp.lt.s32.totalorder %v1278, 15
      %vm1343 = vcmp.lt.s32.totalorder %v1279, 15
      %vm1344 = vcmp.lt.s32.totalorder %v1280, 15
      %vm1345 = vcmp.lt.s32.totalorder %v1281, 15
      %vm1346 = vcmp.lt.s32.totalorder %v1282, 15
      %vm1347 = vcmp.lt.s32.totalorder %v1283, 15
      %vm1348 = vcmp.lt.s32.totalorder %v1284, 15
      %vm1349 = vcmp.lt.s32.totalorder %v1285, 15
      %vm1350 = vcmp.lt.s32.totalorder %v1286, 15
      %vm1351 = vcmp.lt.s32.totalorder %v1287, 15
      %vm1352 = vcmp.lt.s32.totalorder %v1288, 15
      %vm1353 = vcmp.lt.s32.totalorder %v1289, 15
      %vm1354 = vcmp.lt.s32.totalorder %v1290, 15
      %vm1355 = vcmp.lt.s32.totalorder %v1291, 15
      %vm1356 = vcmp.lt.s32.totalorder %v1292, 15
      %vm1357 = vcmp.lt.s32.totalorder %v1293, 15
      %vm1358 = vcmp.lt.s32.totalorder %v1294, 15
      %vm1359 = vcmp.lt.s32.totalorder %v1295, 15
      %vm1360 = vcmp.lt.s32.totalorder %v1296, 15
      %vm1361 = vcmp.lt.s32.totalorder %v1297, 15
      %v1362 = vld [vmem:[#allocation2 + $0x4] sm:$0x8]
      %v1363 = vld [vmem:[#allocation2 + $0x8] sm:$0xf]
      %v1364 = vld [vmem:[#allocation2 + $0xc] sm:$0xf]
      %v1365 = vld [vmem:[#allocation2 + $0x10] sm:$0xf]
      %v1366 = vld [vmem:[#allocation2 + $0x14] sm:$0xf]
      %v1367 = vld [vmem:[#allocation2 + $0x18] sm:$0xf]
      %v1368 = vld [vmem:[#allocation2 + $0x1c] sm:$0xf]
      %v1369 = vld [vmem:[#allocation2 + $0x20] sm:$0xf]
      %v1370 = vld [vmem:[#allocation2 + $0x24] sm:$0xf]
      %v1371 = vld [vmem:[#allocation2 + $0x28] sm:$0xf]
      %v1372 = vld [vmem:[#allocation2 + $0x2c] sm:$0xf]
      %v1373 = vld [vmem:[#allocation2 + $0x30] sm:$0xf]
      %v1374 = vld [vmem:[#allocation2 + $0x34] sm:$0xf]
      %v1375 = vld [vmem:[#allocation2 + $0x38] sm:$0xf]
      %v1376 = vld [vmem:[#allocation2 + $0x3c] sm:$0xf]
      %v1377 = vld [vmem:[#allocation2 + $0x40] sm:$0xf]
      %v1378 = vld [vmem:[#allocation2 + $0x44] sm:$0xf]
      %v1379 = vld [vmem:[#allocation2 + $0x48] sm:$0xf]
      %v1380 = vld [vmem:[#allocation2 + $0x4c] sm:$0xf]
      %v1381 = vld [vmem:[#allocation2 + $0x50] sm:$0xf]
      %v1382 = vld [vmem:[#allocation2 + $0x54] sm:$0xf]
      %v1383 = vld [vmem:[#allocation2 + $0x58] sm:$0xf]
      %v1384 = vld [vmem:[#allocation2 + $0x5c] sm:$0xf]
      %v1385 = vld [vmem:[#allocation2 + $0x60] sm:$0xf]
      %v1386 = vld [vmem:[#allocation2 + $0x64] sm:$0xf]
      %v1387 = vld [vmem:[#allocation2 + $0x68] sm:$0xf]
      %v1388 = vld [vmem:[#allocation2 + $0x6c] sm:$0xf]
      %v1389 = vld [vmem:[#allocation2 + $0x70] sm:$0xf]
      %v1390 = vld [vmem:[#allocation2 + $0x74] sm:$0xf]
      %v1391 = vld [vmem:[#allocation2 + $0x78] sm:$0xf]
      %v1392 = vld [vmem:[#allocation2 + $0x7c] sm:$0xf]
      %v1393 = vld [vmem:[#allocation2 + $0x80] sm:$0xf]
      %v1394 = vld [vmem:[#allocation2 + $0x84] sm:$0xf]
      %v1395 = vsel %vm1298, 1, 0
      %v1396 = vsel %vm1299, 1, 0
      %v1397 = vsel %vm1300, 1, 0
      %v1398 = vsel %vm1301, 1, 0
      %v1399 = vsel %vm1302, 1, 0
      %v1400 = vsel %vm1303, 1, 0
      %v1401 = vsel %vm1304, 1, 0
      %v1402 = vsel %vm1305, 1, 0
      %v1403 = vsel %vm1306, 1, 0
      %v1404 = vsel %vm1307, 1, 0
      %v1405 = vsel %vm1308, 1, 0
      %v1406 = vsel %vm1309, 1, 0
      %v1407 = vsel %vm1310, 1, 0
      %v1408 = vsel %vm1311, 1, 0
      %v1409 = vsel %vm1312, 1, 0
      %v1410 = vsel %vm1313, 1, 0
      %v1411 = vsel %vm1314, 1, 0
      %v1412 = vsel %vm1315, 1, 0
      %v1413 = vsel %vm1316, 1, 0
      %v1414 = vsel %vm1317, 1, 0
      %v1415 = vsel %vm1318, 1, 0
      %v1416 = vsel %vm1319, 1, 0
      %v1417 = vsel %vm1320, 1, 0
      %v1418 = vsel %vm1321, 1, 0
      %v1419 = vsel %vm1322, 1, 0
      %v1420 = vsel %vm1323, 1, 0
      %v1421 = vsel %vm1324, 1, 0
      %v1422 = vsel %vm1325, 1, 0
      %v1423 = vsel %vm1326, 1, 0
      %v1424 = vsel %vm1327, 1, 0
      %v1425 = vsel %vm1328, 1, 0
      %v1426 = vsel %vm1329, 1, 0
      %vm1427 = vcmp.eq.s32.totalorder %v1395, 1
      %vm1428 = vcmp.eq.s32.totalorder %v1396, 1
      %vm1429 = vcmp.eq.s32.totalorder %v1397, 1
      %vm1430 = vcmp.eq.s32.totalorder %v1398, 1
      %vm1431 = vcmp.eq.s32.totalorder %v1399, 1
      %vm1432 = vcmp.eq.s32.totalorder %v1400, 1
      %vm1433 = vcmp.eq.s32.totalorder %v1401, 1
      %vm1434 = vcmp.eq.s32.totalorder %v1402, 1
      %vm1435 = vcmp.eq.s32.totalorder %v1403, 1
      %vm1436 = vcmp.eq.s32.totalorder %v1404, 1
      %vm1437 = vcmp.eq.s32.totalorder %v1405, 1
      %vm1438 = vcmp.eq.s32.totalorder %v1406, 1
      %vm1439 = vcmp.eq.s32.totalorder %v1407, 1
      %vm1440 = vcmp.eq.s32.totalorder %v1408, 1
      %vm1441 = vcmp.eq.s32.totalorder %v1409, 1
      %vm1442 = vcmp.eq.s32.totalorder %v1410, 1
      %vm1443 = vcmp.eq.s32.totalorder %v1411, 1
      %vm1444 = vcmp.eq.s32.totalorder %v1412, 1
      %vm1445 = vcmp.eq.s32.totalorder %v1413, 1
      %vm1446 = vcmp.eq.s32.totalorder %v1414, 1
      %vm1447 = vcmp.eq.s32.totalorder %v1415, 1
      %vm1448 = vcmp.eq.s32.totalorder %v1416, 1
      %vm1449 = vcmp.eq.s32.totalorder %v1417, 1
      %vm1450 = vcmp.eq.s32.totalorder %v1418, 1
      %vm1451 = vcmp.eq.s32.totalorder %v1419, 1
      %vm1452 = vcmp.eq.s32.totalorder %v1420, 1
      %vm1453 = vcmp.eq.s32.totalorder %v1421, 1
      %vm1454 = vcmp.eq.s32.totalorder %v1422, 1
      %vm1455 = vcmp.eq.s32.totalorder %v1423, 1
      %vm1456 = vcmp.eq.s32.totalorder %v1424, 1
      %vm1457 = vcmp.eq.s32.totalorder %v1425, 1
      %vm1458 = vcmp.eq.s32.totalorder %v1426, 1
      %vm1459 = vmpackc.low %vm1427, %vm1427
      %vm1460 = vmpackc.low %vm1428, %vm1428
      %vm1461 = vmpackc.low %vm1429, %vm1429
      %vm1462 = vmpackc.low %vm1430, %vm1430
      %vm1463 = vmpackc.low %vm1431, %vm1431
      %vm1464 = vmpackc.low %vm1432, %vm1432
      %vm1465 = vmpackc.low %vm1433, %vm1433
      %vm1466 = vmpackc.low %vm1434, %vm1434
      %vm1467 = vmpackc.low %vm1435, %vm1435
      %vm1468 = vmpackc.low %vm1436, %vm1436
      %vm1469 = vmpackc.low %vm1437, %vm1437
      %vm1470 = vmpackc.low %vm1438, %vm1438
      %vm1471 = vmpackc.low %vm1439, %vm1439
      %vm1472 = vmpackc.low %vm1440, %vm1440
      %vm1473 = vmpackc.low %vm1441, %vm1441
      %vm1474 = vmpackc.low %vm1442, %vm1442
      %vm1475 = vmpackc.low %vm1443, %vm1443
      %vm1476 = vmpackc.low %vm1444, %vm1444
      %vm1477 = vmpackc.low %vm1445, %vm1445
      %vm1478 = vmpackc.low %vm1446, %vm1446
      %vm1479 = vmpackc.low %vm1447, %vm1447
      %vm1480 = vmpackc.low %vm1448, %vm1448
      %vm1481 = vmpackc.low %vm1449, %vm1449
      %vm1482 = vmpackc.low %vm1450, %vm1450
      %vm1483 = vmpackc.low %vm1451, %vm1451
      %vm1484 = vmpackc.low %vm1452, %vm1452
      %vm1485 = vmpackc.low %vm1453, %vm1453
      %vm1486 = vmpackc.low %vm1454, %vm1454
      %vm1487 = vmpackc.low %vm1455, %vm1455
      %vm1488 = vmpackc.low %vm1456, %vm1456
      %vm1489 = vmpackc.low %vm1457, %vm1457
      %vm1490 = vmpackc.low %vm1458, %vm1458
      %v1491 = vsel %vm1459, 65537, 0
      %v1492 = vsel %vm1460, 65537, 0
      %v1493 = vsel %vm1461, 65537, 0
      %v1494 = vsel %vm1462, 65537, 0
      %v1495 = vsel %vm1463, 65537, 0
      %v1496 = vsel %vm1464, 65537, 0
      %v1497 = vsel %vm1465, 65537, 0
      %v1498 = vsel %vm1466, 65537, 0
      %v1499 = vsel %vm1467, 65537, 0
      %v1500 = vsel %vm1468, 65537, 0
      %v1501 = vsel %vm1469, 65537, 0
      %v1502 = vsel %vm1470, 65537, 0
      %v1503 = vsel %vm1471, 65537, 0
      %v1504 = vsel %vm1472, 65537, 0
      %v1505 = vsel %vm1473, 65537, 0
      %v1506 = vsel %vm1474, 65537, 0
      %v1507 = vsel %vm1475, 65537, 0
      %v1508 = vsel %vm1476, 65537, 0
      %v1509 = vsel %vm1477, 65537, 0
      %v1510 = vsel %vm1478, 65537, 0
      %v1511 = vsel %vm1479, 65537, 0
      %v1512 = vsel %vm1480, 65537, 0
      %v1513 = vsel %vm1481, 65537, 0
      %v1514 = vsel %vm1482, 65537, 0
      %v1515 = vsel %vm1483, 65537, 0
      %v1516 = vsel %vm1484, 65537, 0
      %v1517 = vsel %vm1485, 65537, 0
      %v1518 = vsel %vm1486, 65537, 0
      %v1519 = vsel %vm1487, 65537, 0
      %v1520 = vsel %vm1488, 65537, 0
      %v1521 = vsel %vm1489, 65537, 0
      %v1522 = vsel %vm1490, 65537, 0
      %vm1523 = vsmask.f32 3328
      %vm1524 = vsmask.f32 7440
      %vm1525 = vmor %vm1523, %vm1524
      %v1527 = vshll.u32 %v1491, 16
      %v1529 = vrot.slane %v1527, 5
      %v1530 = vshrl.u32 %v1491, 16
      %v1532 = vrot.slane %v1530, 4
      %v1533 = vor.u32 %v1532, %v1529
      %v1534 = vrot.slane %v1533, 4
      %v1536 = vshll.u32 %v1492, 16
      %v1538 = vrot.slane %v1536, 5
      %v1539 = vsel %vm1525, %v1534, %v1538
      %v1540 = vshrl.u32 %v1492, 16
      %v1542 = vrot.slane %v1540, 4
      %v1543 = vor.u32 %v1542, %v1538
      %v1544 = vrot.slane %v1543, 4
      %v1546 = vshll.u32 %v1493, 16
      %v1548 = vrot.slane %v1546, 5
      %v1549 = vsel %vm1525, %v1544, %v1548
      %v1550 = vshrl.u32 %v1493, 16
      %v1552 = vrot.slane %v1550, 4
      %v1553 = vor.u32 %v1552, %v1548
      %v1554 = vrot.slane %v1553, 4
      %v1556 = vshll.u32 %v1494, 16
      %v1558 = vrot.slane %v1556, 5
      %v1559 = vsel %vm1525, %v1554, %v1558
      %v1560 = vshrl.u32 %v1494, 16
      %v1562 = vrot.slane %v1560, 4
      %v1563 = vor.u32 %v1562, %v1558
      %v1564 = vrot.slane %v1563, 4
      %v1566 = vshll.u32 %v1495, 16
      %v1568 = vrot.slane %v1566, 5
      %v1569 = vsel %vm1525, %v1564, %v1568
      %v1570 = vshrl.u32 %v1495, 16
      %v1572 = vrot.slane %v1570, 4
      %v1573 = vor.u32 %v1572, %v1568
      %v1574 = vrot.slane %v1573, 4
      %v1576 = vshll.u32 %v1496, 16
      %v1578 = vrot.slane %v1576, 5
      %v1579 = vsel %vm1525, %v1574, %v1578
      %v1580 = vshrl.u32 %v1496, 16
      %v1582 = vrot.slane %v1580, 4
      %v1583 = vor.u32 %v1582, %v1578
      %v1584 = vrot.slane %v1583, 4
      %v1586 = vshll.u32 %v1497, 16
      %v1588 = vrot.slane %v1586, 5
      %v1589 = vsel %vm1525, %v1584, %v1588
      %v1590 = vshrl.u32 %v1497, 16
      %v1592 = vrot.slane %v1590, 4
      %v1593 = vor.u32 %v1592, %v1588
      %v1594 = vrot.slane %v1593, 4
      %v1596 = vshll.u32 %v1498, 16
      %v1598 = vrot.slane %v1596, 5
      %v1599 = vsel %vm1525, %v1594, %v1598
      %v1600 = vshrl.u32 %v1498, 16
      %v1602 = vrot.slane %v1600, 4
      %v1603 = vor.u32 %v1602, %v1598
      %v1604 = vrot.slane %v1603, 4
      %v1606 = vshll.u32 %v1499, 16
      %v1608 = vrot.slane %v1606, 5
      %v1609 = vsel %vm1525, %v1604, %v1608
      %v1610 = vshrl.u32 %v1499, 16
      %v1612 = vrot.slane %v1610, 4
      %v1613 = vor.u32 %v1612, %v1608
      %v1614 = vrot.slane %v1613, 4
      %v1616 = vshll.u32 %v1500, 16
      %v1618 = vrot.slane %v1616, 5
      %v1619 = vsel %vm1525, %v1614, %v1618
      %v1620 = vshrl.u32 %v1500, 16
      %v1622 = vrot.slane %v1620, 4
      %v1623 = vor.u32 %v1622, %v1618
      %v1624 = vrot.slane %v1623, 4
      %v1626 = vshll.u32 %v1501, 16
      %v1628 = vrot.slane %v1626, 5
      %v1629 = vsel %vm1525, %v1624, %v1628
      %v1630 = vshrl.u32 %v1501, 16
      %v1632 = vrot.slane %v1630, 4
      %v1633 = vor.u32 %v1632, %v1628
      %v1634 = vrot.slane %v1633, 4
      %v1636 = vshll.u32 %v1502, 16
      %v1638 = vrot.slane %v1636, 5
      %v1639 = vsel %vm1525, %v1634, %v1638
      %v1640 = vshrl.u32 %v1502, 16
      %v1642 = vrot.slane %v1640, 4
      %v1643 = vor.u32 %v1642, %v1638
      %v1644 = vrot.slane %v1643, 4
      %v1646 = vshll.u32 %v1503, 16
      %v1648 = vrot.slane %v1646, 5
      %v1649 = vsel %vm1525, %v1644, %v1648
      %v1650 = vshrl.u32 %v1503, 16
      %v1652 = vrot.slane %v1650, 4
      %v1653 = vor.u32 %v1652, %v1648
      %v1654 = vrot.slane %v1653, 4
      %v1656 = vshll.u32 %v1504, 16
      %v1658 = vrot.slane %v1656, 5
      %v1659 = vsel %vm1525, %v1654, %v1658
      %v1660 = vshrl.u32 %v1504, 16
      %v1662 = vrot.slane %v1660, 4
      %v1663 = vor.u32 %v1662, %v1658
      %v1664 = vrot.slane %v1663, 4
      %v1666 = vshll.u32 %v1505, 16
      %v1668 = vrot.slane %v1666, 5
      %v1669 = vsel %vm1525, %v1664, %v1668
      %v1670 = vshrl.u32 %v1505, 16
      %v1672 = vrot.slane %v1670, 4
      %v1673 = vor.u32 %v1672, %v1668
      %v1674 = vrot.slane %v1673, 4
      %v1676 = vshll.u32 %v1506, 16
      %v1678 = vrot.slane %v1676, 5
      %v1679 = vsel %vm1525, %v1674, %v1678
      %v1680 = vshrl.u32 %v1506, 16
      %v1682 = vrot.slane %v1680, 4
      %v1683 = vor.u32 %v1682, %v1678
      %v1684 = vrot.slane %v1683, 4
      %v1686 = vshll.u32 %v1507, 16
      %v1688 = vrot.slane %v1686, 5
      %v1689 = vsel %vm1525, %v1684, %v1688
      %v1690 = vshrl.u32 %v1507, 16
      %v1692 = vrot.slane %v1690, 4
      %v1693 = vor.u32 %v1692, %v1688
      %v1694 = vrot.slane %v1693, 4
      %v1696 = vshll.u32 %v1508, 16
      %v1698 = vrot.slane %v1696, 5
      %v1699 = vsel %vm1525, %v1694, %v1698
      %v1700 = vshrl.u32 %v1508, 16
      %v1702 = vrot.slane %v1700, 4
      %v1703 = vor.u32 %v1702, %v1698
      %v1704 = vrot.slane %v1703, 4
      %v1706 = vshll.u32 %v1509, 16
      %v1708 = vrot.slane %v1706, 5
      %v1709 = vsel %vm1525, %v1704, %v1708
      %v1710 = vshrl.u32 %v1509, 16
      %v1712 = vrot.slane %v1710, 4
      %v1713 = vor.u32 %v1712, %v1708
      %v1714 = vrot.slane %v1713, 4
      %v1716 = vshll.u32 %v1510, 16
      %v1718 = vrot.slane %v1716, 5
      %v1719 = vsel %vm1525, %v1714, %v1718
      %v1720 = vshrl.u32 %v1510, 16
      %v1722 = vrot.slane %v1720, 4
      %v1723 = vor.u32 %v1722, %v1718
      %v1724 = vrot.slane %v1723, 4
      %v1726 = vshll.u32 %v1511, 16
      %v1728 = vrot.slane %v1726, 5
      %v1729 = vsel %vm1525, %v1724, %v1728
      %v1730 = vshrl.u32 %v1511, 16
      %v1732 = vrot.slane %v1730, 4
      %v1733 = vor.u32 %v1732, %v1728
      %v1734 = vrot.slane %v1733, 4
      %v1736 = vshll.u32 %v1512, 16
      %v1738 = vrot.slane %v1736, 5
      %v1739 = vsel %vm1525, %v1734, %v1738
      %v1740 = vshrl.u32 %v1512, 16
      %v1742 = vrot.slane %v1740, 4
      %v1743 = vor.u32 %v1742, %v1738
      %v1744 = vrot.slane %v1743, 4
      %v1746 = vshll.u32 %v1513, 16
      %v1748 = vrot.slane %v1746, 5
      %v1749 = vsel %vm1525, %v1744, %v1748
      %v1750 = vshrl.u32 %v1513, 16
      %v1752 = vrot.slane %v1750, 4
      %v1753 = vor.u32 %v1752, %v1748
      %v1754 = vrot.slane %v1753, 4
      %v1756 = vshll.u32 %v1514, 16
      %v1758 = vrot.slane %v1756, 5
      %v1759 = vsel %vm1525, %v1754, %v1758
      %v1760 = vshrl.u32 %v1514, 16
      %v1762 = vrot.slane %v1760, 4
      %v1763 = vor.u32 %v1762, %v1758
      %v1764 = vrot.slane %v1763, 4
      %v1766 = vshll.u32 %v1515, 16
      %v1768 = vrot.slane %v1766, 5
      %v1769 = vsel %vm1525, %v1764, %v1768
      %v1770 = vshrl.u32 %v1515, 16
      %v1772 = vrot.slane %v1770, 4
      %v1773 = vor.u32 %v1772, %v1768
      %v1774 = vrot.slane %v1773, 4
      %v1776 = vshll.u32 %v1516, 16
      %v1778 = vrot.slane %v1776, 5
      %v1779 = vsel %vm1525, %v1774, %v1778
      %v1780 = vshrl.u32 %v1516, 16
      %v1782 = vrot.slane %v1780, 4
      %v1783 = vor.u32 %v1782, %v1778
      %v1784 = vrot.slane %v1783, 4
      %v1786 = vshll.u32 %v1517, 16
      %v1788 = vrot.slane %v1786, 5
      %v1789 = vsel %vm1525, %v1784, %v1788
      %v1790 = vshrl.u32 %v1517, 16
      %v1792 = vrot.slane %v1790, 4
      %v1793 = vor.u32 %v1792, %v1788
      %v1794 = vrot.slane %v1793, 4
      %v1796 = vshll.u32 %v1518, 16
      %v1798 = vrot.slane %v1796, 5
      %v1799 = vsel %vm1525, %v1794, %v1798
      %v1800 = vshrl.u32 %v1518, 16
      %v1802 = vrot.slane %v1800, 4
      %v1803 = vor.u32 %v1802, %v1798
      %v1804 = vrot.slane %v1803, 4
      %v1806 = vshll.u32 %v1519, 16
      %v1808 = vrot.slane %v1806, 5
      %v1809 = vsel %vm1525, %v1804, %v1808
      %v1810 = vshrl.u32 %v1519, 16
      %v1812 = vrot.slane %v1810, 4
      %v1813 = vor.u32 %v1812, %v1808
      %v1814 = vrot.slane %v1813, 4
      %v1816 = vshll.u32 %v1520, 16
      %v1818 = vrot.slane %v1816, 5
      %v1819 = vsel %vm1525, %v1814, %v1818
      %v1820 = vshrl.u32 %v1520, 16
      %v1822 = vrot.slane %v1820, 4
      %v1823 = vor.u32 %v1822, %v1818
      %v1824 = vrot.slane %v1823, 4
      %v1826 = vshll.u32 %v1521, 16
      %v1828 = vrot.slane %v1826, 5
      %v1829 = vsel %vm1525, %v1824, %v1828
      %v1830 = vshrl.u32 %v1521, 16
      %v1832 = vrot.slane %v1830, 4
      %v1833 = vor.u32 %v1832, %v1828
      %v1834 = vrot.slane %v1833, 4
      %v1836 = vshll.u32 %v1522, 16
      %v1838 = vrot.slane %v1836, 5
      %v1839 = vsel %vm1525, %v1834, %v1838
      %v1840 = vshrl.u32 %v1522, 16
      %v1842 = vrot.slane %v1840, 4
      %v1843 = vor.u32 %v1842, %v1838
      %v1844 = vrot.slane %v1843, 4
      %vm1845 = vcmp.ne.s16.totalorder %v1529, 0
      %vm1846 = vcmp.ne.s16.totalorder %v1539, 0
      %vm1847 = vcmp.ne.s16.totalorder %v1549, 0
      %vm1848 = vcmp.ne.s16.totalorder %v1559, 0
      %vm1849 = vcmp.ne.s16.totalorder %v1569, 0
      %vm1850 = vcmp.ne.s16.totalorder %v1579, 0
      %vm1851 = vcmp.ne.s16.totalorder %v1589, 0
      %vm1852 = vcmp.ne.s16.totalorder %v1599, 0
      %vm1853 = vcmp.ne.s16.totalorder %v1609, 0
      %vm1854 = vcmp.ne.s16.totalorder %v1619, 0
      %vm1855 = vcmp.ne.s16.totalorder %v1629, 0
      %vm1856 = vcmp.ne.s16.totalorder %v1639, 0
      %vm1857 = vcmp.ne.s16.totalorder %v1649, 0
      %vm1858 = vcmp.ne.s16.totalorder %v1659, 0
      %vm1859 = vcmp.ne.s16.totalorder %v1669, 0
      %vm1860 = vcmp.ne.s16.totalorder %v1679, 0
      %vm1861 = vcmp.ne.s16.totalorder %v1689, 0
      %vm1862 = vcmp.ne.s16.totalorder %v1699, 0
      %vm1863 = vcmp.ne.s16.totalorder %v1709, 0
      %vm1864 = vcmp.ne.s16.totalorder %v1719, 0
      %vm1865 = vcmp.ne.s16.totalorder %v1729, 0
      %vm1866 = vcmp.ne.s16.totalorder %v1739, 0
      %vm1867 = vcmp.ne.s16.totalorder %v1749, 0
      %vm1868 = vcmp.ne.s16.totalorder %v1759, 0
      %vm1869 = vcmp.ne.s16.totalorder %v1769, 0
      %vm1870 = vcmp.ne.s16.totalorder %v1779, 0
      %vm1871 = vcmp.ne.s16.totalorder %v1789, 0
      %vm1872 = vcmp.ne.s16.totalorder %v1799, 0
      %vm1873 = vcmp.ne.s16.totalorder %v1809, 0
      %vm1874 = vcmp.ne.s16.totalorder %v1819, 0
      %vm1875 = vcmp.ne.s16.totalorder %v1829, 0
      %vm1876 = vcmp.ne.s16.totalorder %v1839, 0
      %vm1877 = vcmp.ne.s16.totalorder %v1844, 0
      %v1878 = vsel %vm1845, %v1362, 0
      %v1879 = vsel %vm1846, %v1363, 0
      %v1880 = vsel %vm1847, %v1364, 0
      %v1881 = vsel %vm1848, %v1365, 0
      %v1882 = vsel %vm1849, %v1366, 0
      %v1883 = vsel %vm1850, %v1367, 0
      %v1884 = vsel %vm1851, %v1368, 0
      %v1885 = vsel %vm1852, %v1369, 0
      %v1886 = vsel %vm1853, %v1370, 0
      %v1887 = vsel %vm1854, %v1371, 0
      %v1888 = vsel %vm1855, %v1372, 0
      %v1889 = vsel %vm1856, %v1373, 0
      %v1890 = vsel %vm1857, %v1374, 0
      %v1891 = vsel %vm1858, %v1375, 0
      %v1892 = vsel %vm1859, %v1376, 0
      %v1893 = vsel %vm1860, %v1377, 0
      %v1894 = vsel %vm1861, %v1378, 0
      %v1895 = vsel %vm1862, %v1379, 0
      %v1896 = vsel %vm1863, %v1380, 0
      %v1897 = vsel %vm1864, %v1381, 0
      %v1898 = vsel %vm1865, %v1382, 0
      %v1899 = vsel %vm1866, %v1383, 0
      %v1900 = vsel %vm1867, %v1384, 0
      %v1901 = vsel %vm1868, %v1385, 0
      %v1902 = vsel %vm1869, %v1386, 0
      %v1903 = vsel %vm1870, %v1387, 0
      %v1904 = vsel %vm1871, %v1388, 0
      %v1905 = vsel %vm1872, %v1389, 0
      %v1906 = vsel %vm1873, %v1390, 0
      %v1907 = vsel %vm1874, %v1391, 0
      %v1908 = vsel %vm1875, %v1392, 0
      %v1909 = vsel %vm1876, %v1393, 0
      %v1910 = vsel %vm1877, %v1394, 0
      %vm1911 = vsmask.f32 256
      %vm1912 = vsmask.f32 4368
      %vm1913 = vmor %vm1911, %vm1912
      %v1915 = vshrl.u32 %v1878, 16
      %v1917 = vrot.slane %v1915, 7
      %v1918 = vrot.slane %v1917, 4
      %v1920 = vshrl.u32 %v1879, 16
      %v1922 = vrot.slane %v1920, 7
      %v1923 = vshll.u32 %v1879, 16
      %v1925 = vor.u32 %v1922, %v1923
      %v1926 = vsel %vm1913, %v1918, %v1925
      %v1927 = vrot.slane %v1922, 4
      %v1929 = vshrl.u32 %v1880, 16
      %v1931 = vrot.slane %v1929, 7
      %v1932 = vshll.u32 %v1880, 16
      %v1934 = vor.u32 %v1931, %v1932
      %v1935 = vsel %vm1913, %v1927, %v1934
      %v1936 = vrot.slane %v1931, 4
      %v1938 = vshrl.u32 %v1881, 16
      %v1940 = vrot.slane %v1938, 7
      %v1941 = vshll.u32 %v1881, 16
      %v1943 = vor.u32 %v1940, %v1941
      %v1944 = vsel %vm1913, %v1936, %v1943
      %v1945 = vrot.slane %v1940, 4
      %v1947 = vshrl.u32 %v1882, 16
      %v1949 = vrot.slane %v1947, 7
      %v1950 = vshll.u32 %v1882, 16
      %v1952 = vor.u32 %v1949, %v1950
      %v1953 = vsel %vm1913, %v1945, %v1952
      %v1954 = vrot.slane %v1949, 4
      %v1956 = vshrl.u32 %v1883, 16
      %v1958 = vrot.slane %v1956, 7
      %v1959 = vshll.u32 %v1883, 16
      %v1961 = vor.u32 %v1958, %v1959
      %v1962 = vsel %vm1913, %v1954, %v1961
      %v1963 = vrot.slane %v1958, 4
      %v1965 = vshrl.u32 %v1884, 16
      %v1967 = vrot.slane %v1965, 7
      %v1968 = vshll.u32 %v1884, 16
      %v1970 = vor.u32 %v1967, %v1968
      %v1971 = vsel %vm1913, %v1963, %v1970
      %v1972 = vrot.slane %v1967, 4
      %v1974 = vshrl.u32 %v1885, 16
      %v1976 = vrot.slane %v1974, 7
      %v1977 = vshll.u32 %v1885, 16
      %v1979 = vor.u32 %v1976, %v1977
      %v1980 = vsel %vm1913, %v1972, %v1979
      %v1981 = vrot.slane %v1976, 4
      %v1983 = vshrl.u32 %v1886, 16
      %v1985 = vrot.slane %v1983, 7
      %v1986 = vshll.u32 %v1886, 16
      %v1988 = vor.u32 %v1985, %v1986
      %v1989 = vsel %vm1913, %v1981, %v1988
      %v1990 = vrot.slane %v1985, 4
      %v1992 = vshrl.u32 %v1887, 16
      %v1994 = vrot.slane %v1992, 7
      %v1995 = vshll.u32 %v1887, 16
      %v1997 = vor.u32 %v1994, %v1995
      %v1998 = vsel %vm1913, %v1990, %v1997
      %v1999 = vrot.slane %v1994, 4
      %v2001 = vshrl.u32 %v1888, 16
      %v2003 = vrot.slane %v2001, 7
      %v2004 = vshll.u32 %v1888, 16
      %v2006 = vor.u32 %v2003, %v2004
      %v2007 = vsel %vm1913, %v1999, %v2006
      %v2008 = vrot.slane %v2003, 4
      %v2010 = vshrl.u32 %v1889, 16
      %v2012 = vrot.slane %v2010, 7
      %v2013 = vshll.u32 %v1889, 16
      %v2015 = vor.u32 %v2012, %v2013
      %v2016 = vsel %vm1913, %v2008, %v2015
      %v2017 = vrot.slane %v2012, 4
      %v2019 = vshrl.u32 %v1890, 16
      %v2021 = vrot.slane %v2019, 7
      %v2022 = vshll.u32 %v1890, 16
      %v2024 = vor.u32 %v2021, %v2022
      %v2025 = vsel %vm1913, %v2017, %v2024
      %v2026 = vrot.slane %v2021, 4
      %v2028 = vshrl.u32 %v1891, 16
      %v2030 = vrot.slane %v2028, 7
      %v2031 = vshll.u32 %v1891, 16
      %v2033 = vor.u32 %v2030, %v2031
      %v2034 = vsel %vm1913, %v2026, %v2033
      %v2035 = vrot.slane %v2030, 4
      %v2037 = vshrl.u32 %v1892, 16
      %v2039 = vrot.slane %v2037, 7
      %v2040 = vshll.u32 %v1892, 16
      %v2042 = vor.u32 %v2039, %v2040
      %v2043 = vsel %vm1913, %v2035, %v2042
      %v2044 = vrot.slane %v2039, 4
      %v2046 = vshrl.u32 %v1893, 16
      %v2048 = vrot.slane %v2046, 7
      %v2049 = vshll.u32 %v1893, 16
      %v2051 = vor.u32 %v2048, %v2049
      %v2052 = vsel %vm1913, %v2044, %v2051
      %v2053 = vrot.slane %v2048, 4
      %v2055 = vshrl.u32 %v1894, 16
      %v2057 = vrot.slane %v2055, 7
      %v2058 = vshll.u32 %v1894, 16
      %v2060 = vor.u32 %v2057, %v2058
      %v2061 = vsel %vm1913, %v2053, %v2060
      %v2062 = vrot.slane %v2057, 4
      %v2064 = vshrl.u32 %v1895, 16
      %v2066 = vrot.slane %v2064, 7
      %v2067 = vshll.u32 %v1895, 16
      %v2069 = vor.u32 %v2066, %v2067
      %v2070 = vsel %vm1913, %v2062, %v2069
      %v2071 = vrot.slane %v2066, 4
      %v2073 = vshrl.u32 %v1896, 16
      %v2075 = vrot.slane %v2073, 7
      %v2076 = vshll.u32 %v1896, 16
      %v2078 = vor.u32 %v2075, %v2076
      %v2079 = vsel %vm1913, %v2071, %v2078
      %v2080 = vrot.slane %v2075, 4
      %v2082 = vshrl.u32 %v1897, 16
      %v2084 = vrot.slane %v2082, 7
      %v2085 = vshll.u32 %v1897, 16
      %v2087 = vor.u32 %v2084, %v2085
      %v2088 = vsel %vm1913, %v2080, %v2087
      %v2089 = vrot.slane %v2084, 4
      %v2091 = vshrl.u32 %v1898, 16
      %v2093 = vrot.slane %v2091, 7
      %v2094 = vshll.u32 %v1898, 16
      %v2096 = vor.u32 %v2093, %v2094
      %v2097 = vsel %vm1913, %v2089, %v2096
      %v2098 = vrot.slane %v2093, 4
      %v2100 = vshrl.u32 %v1899, 16
      %v2102 = vrot.slane %v2100, 7
      %v2103 = vshll.u32 %v1899, 16
      %v2105 = vor.u32 %v2102, %v2103
      %v2106 = vsel %vm1913, %v2098, %v2105
      %v2107 = vrot.slane %v2102, 4
      %v2109 = vshrl.u32 %v1900, 16
      %v2111 = vrot.slane %v2109, 7
      %v2112 = vshll.u32 %v1900, 16
      %v2114 = vor.u32 %v2111, %v2112
      %v2115 = vsel %vm1913, %v2107, %v2114
      %v2116 = vrot.slane %v2111, 4
      %v2118 = vshrl.u32 %v1901, 16
      %v2120 = vrot.slane %v2118, 7
      %v2121 = vshll.u32 %v1901, 16
      %v2123 = vor.u32 %v2120, %v2121
      %v2124 = vsel %vm1913, %v2116, %v2123
      %v2125 = vrot.slane %v2120, 4
      %v2127 = vshrl.u32 %v1902, 16
      %v2129 = vrot.slane %v2127, 7
      %v2130 = vshll.u32 %v1902, 16
      %v2132 = vor.u32 %v2129, %v2130
      %v2133 = vsel %vm1913, %v2125, %v2132
      %v2134 = vrot.slane %v2129, 4
      %v2136 = vshrl.u32 %v1903, 16
      %v2138 = vrot.slane %v2136, 7
      %v2139 = vshll.u32 %v1903, 16
      %v2141 = vor.u32 %v2138, %v2139
      %v2142 = vsel %vm1913, %v2134, %v2141
      %v2143 = vrot.slane %v2138, 4
      %v2145 = vshrl.u32 %v1904, 16
      %v2147 = vrot.slane %v2145, 7
      %v2148 = vshll.u32 %v1904, 16
      %v2150 = vor.u32 %v2147, %v2148
      %v2151 = vsel %vm1913, %v2143, %v2150
      %v2152 = vrot.slane %v2147, 4
      %v2154 = vshrl.u32 %v1905, 16
      %v2156 = vrot.slane %v2154, 7
      %v2157 = vshll.u32 %v1905, 16
      %v2159 = vor.u32 %v2156, %v2157
      %v2160 = vsel %vm1913, %v2152, %v2159
      %v2161 = vrot.slane %v2156, 4
      %v2163 = vshrl.u32 %v1906, 16
      %v2165 = vrot.slane %v2163, 7
      %v2166 = vshll.u32 %v1906, 16
      %v2168 = vor.u32 %v2165, %v2166
      %v2169 = vsel %vm1913, %v2161, %v2168
      %v2170 = vrot.slane %v2165, 4
      %v2172 = vshrl.u32 %v1907, 16
      %v2174 = vrot.slane %v2172, 7
      %v2175 = vshll.u32 %v1907, 16
      %v2177 = vor.u32 %v2174, %v2175
      %v2178 = vsel %vm1913, %v2170, %v2177
      %v2179 = vrot.slane %v2174, 4
      %v2181 = vshrl.u32 %v1908, 16
      %v2183 = vrot.slane %v2181, 7
      %v2184 = vshll.u32 %v1908, 16
      %v2186 = vor.u32 %v2183, %v2184
      %v2187 = vsel %vm1913, %v2179, %v2186
      %v2188 = vrot.slane %v2183, 4
      %v2190 = vshrl.u32 %v1909, 16
      %v2192 = vrot.slane %v2190, 7
      %v2193 = vshll.u32 %v1909, 16
      %v2195 = vor.u32 %v2192, %v2193
      %v2196 = vsel %vm1913, %v2188, %v2195
      %v2197 = vrot.slane %v2192, 4
      %v2199 = vshrl.u32 %v1910, 16
      %v2201 = vrot.slane %v2199, 7
      %v2202 = vshll.u32 %v1910, 16
      %v2204 = vor.u32 %v2201, %v2202
      %v2205 = vsel %vm1913, %v2197, %v2204
      %2238 = vst.msk [vmem:[#allocation3] sm:$0xf] %vm282, %v1926
      %2239 = vst.msk [vmem:[#allocation3 + $0x4] sm:$0xf] %vm282, %v1935
      %2240 = vst.msk [vmem:[#allocation3 + $0x8] sm:$0xf] %vm282, %v1944
      %2241 = vst.msk [vmem:[#allocation3 + $0xc] sm:$0xf] %vm282, %v1953
      %2242 = vst.msk [vmem:[#allocation3 + $0x10] sm:$0xf] %vm282, %v1962
      %2243 = vst.msk [vmem:[#allocation3 + $0x14] sm:$0xf] %vm282, %v1971
      %2244 = vst.msk [vmem:[#allocation3 + $0x18] sm:$0xf] %vm282, %v1980
      %2245 = vst.msk [vmem:[#allocation3 + $0x1c] sm:$0xf] %vm282, %v1989
      %2246 = vst.msk [vmem:[#allocation3 + $0x20] sm:$0xf] %vm282, %v1998
      %2247 = vst.msk [vmem:[#allocation3 + $0x24] sm:$0xf] %vm282, %v2007
      %2248 = vst.msk [vmem:[#allocation3 + $0x28] sm:$0xf] %vm282, %v2016
      %2249 = vst.msk [vmem:[#allocation3 + $0x2c] sm:$0xf] %vm282, %v2025
      %2250 = vst.msk [vmem:[#allocation3 + $0x30] sm:$0xf] %vm282, %v2034
      %2251 = vst.msk [vmem:[#allocation3 + $0x34] sm:$0xf] %vm282, %v2043
      %2252 = vst.msk [vmem:[#allocation3 + $0x38] sm:$0xf] %vm282, %v2052
      %2253 = vst.msk [vmem:[#allocation3 + $0x3c] sm:$0xf] %vm282, %v2061
      %2254 = vst.msk [vmem:[#allocation3 + $0x40] sm:$0xf] %vm282, %v2070
      %2255 = vst.msk [vmem:[#allocation3 + $0x44] sm:$0xf] %vm282, %v2079
      %2256 = vst.msk [vmem:[#allocation3 + $0x48] sm:$0xf] %vm282, %v2088
      %2257 = vst.msk [vmem:[#allocation3 + $0x4c] sm:$0xf] %vm282, %v2097
      %2258 = vst.msk [vmem:[#allocation3 + $0x50] sm:$0xf] %vm282, %v2106
      %2259 = vst.msk [vmem:[#allocation3 + $0x54] sm:$0xf] %vm282, %v2115
      %2260 = vst.msk [vmem:[#allocation3 + $0x58] sm:$0xf] %vm282, %v2124
      %2261 = vst.msk [vmem:[#allocation3 + $0x5c] sm:$0xf] %vm282, %v2133
      %2262 = vst.msk [vmem:[#allocation3 + $0x60] sm:$0xf] %vm282, %v2142
      %2263 = vst.msk [vmem:[#allocation3 + $0x64] sm:$0xf] %vm282, %v2151
      %2264 = vst.msk [vmem:[#allocation3 + $0x68] sm:$0xf] %vm282, %v2160
      %2265 = vst.msk [vmem:[#allocation3 + $0x6c] sm:$0xf] %vm282, %v2169
      %2266 = vst.msk [vmem:[#allocation3 + $0x70] sm:$0xf] %vm282, %v2178
      %2267 = vst.msk [vmem:[#allocation3 + $0x74] sm:$0xf] %vm282, %v2187
      %2268 = vst.msk [vmem:[#allocation3 + $0x78] sm:$0xf] %vm282, %v2196
      %2269 = vst.msk [vmem:[#allocation3 + $0x7c] sm:$0xf] %vm282, %v2205
      %v2270 = vld [vmem:[#allocation2 + $0x8] sm:$0xf]
      %v2271 = vld [vmem:[#allocation2 + $0xc] sm:$0xf]
      %v2272 = vld [vmem:[#allocation2 + $0x10] sm:$0xf]
      %v2273 = vld [vmem:[#allocation2 + $0x14] sm:$0xf]
      %v2274 = vld [vmem:[#allocation2 + $0x18] sm:$0xf]
      %v2275 = vld [vmem:[#allocation2 + $0x1c] sm:$0xf]
      %v2276 = vld [vmem:[#allocation2 + $0x20] sm:$0xf]
      %v2277 = vld [vmem:[#allocation2 + $0x24] sm:$0xf]
      %v2278 = vld [vmem:[#allocation2 + $0x28] sm:$0xf]
      %v2279 = vld [vmem:[#allocation2 + $0x2c] sm:$0xf]
      %v2280 = vld [vmem:[#allocation2 + $0x30] sm:$0xf]
      %v2281 = vld [vmem:[#allocation2 + $0x34] sm:$0xf]
      %v2282 = vld [vmem:[#allocation2 + $0x38] sm:$0xf]
      %v2283 = vld [vmem:[#allocation2 + $0x3c] sm:$0xf]
      %v2284 = vld [vmem:[#allocation2 + $0x40] sm:$0xf]
      %v2285 = vld [vmem:[#allocation2 + $0x44] sm:$0xf]
      %v2286 = vld [vmem:[#allocation2 + $0x48] sm:$0xf]
      %v2287 = vld [vmem:[#allocation2 + $0x4c] sm:$0xf]
      %v2288 = vld [vmem:[#allocation2 + $0x50] sm:$0xf]
      %v2289 = vld [vmem:[#allocation2 + $0x54] sm:$0xf]
      %v2290 = vld [vmem:[#allocation2 + $0x58] sm:$0xf]
      %v2291 = vld [vmem:[#allocation2 + $0x5c] sm:$0xf]
      %v2292 = vld [vmem:[#allocation2 + $0x60] sm:$0xf]
      %v2293 = vld [vmem:[#allocation2 + $0x64] sm:$0xf]
      %v2294 = vld [vmem:[#allocation2 + $0x68] sm:$0xf]
      %v2295 = vld [vmem:[#allocation2 + $0x6c] sm:$0xf]
      %v2296 = vld [vmem:[#allocation2 + $0x70] sm:$0xf]
      %v2297 = vld [vmem:[#allocation2 + $0x74] sm:$0xf]
      %v2298 = vld [vmem:[#allocation2 + $0x78] sm:$0xf]
      %v2299 = vld [vmem:[#allocation2 + $0x7c] sm:$0xf]
      %v2300 = vld [vmem:[#allocation2 + $0x80] sm:$0xf]
      %v2301 = vld [vmem:[#allocation2 + $0x84] sm:$0xf]
      %2334 = vrot.lane.b32.xlu0 %v2270, 4
      %v2335 = vpop.permute.xlu0 %2334
      %2336 = vrot.lane.b32.xlu0 %v2271, 4
      %v2337 = vpop.permute.xlu0 %2336
      %2338 = vrot.lane.b32.xlu0 %v2272, 4
      %v2339 = vpop.permute.xlu0 %2338
      %2340 = vrot.lane.b32.xlu0 %v2273, 4
      %v2341 = vpop.permute.xlu0 %2340
      %2342 = vrot.lane.b32.xlu0 %v2274, 4
      %v2343 = vpop.permute.xlu0 %2342
      %2344 = vrot.lane.b32.xlu0 %v2275, 4
      %v2345 = vpop.permute.xlu0 %2344
      %2346 = vrot.lane.b32.xlu0 %v2276, 4
      %v2347 = vpop.permute.xlu0 %2346
      %2348 = vrot.lane.b32.xlu0 %v2277, 4
      %v2349 = vpop.permute.xlu0 %2348
      %2350 = vrot.lane.b32.xlu0 %v2278, 4
      %v2351 = vpop.permute.xlu0 %2350
      %2352 = vrot.lane.b32.xlu0 %v2279, 4
      %v2353 = vpop.permute.xlu0 %2352
      %2354 = vrot.lane.b32.xlu0 %v2280, 4
      %v2355 = vpop.permute.xlu0 %2354
      %2356 = vrot.lane.b32.xlu0 %v2281, 4
      %v2357 = vpop.permute.xlu0 %2356
      %2358 = vrot.lane.b32.xlu0 %v2282, 4
      %v2359 = vpop.permute.xlu0 %2358
      %2360 = vrot.lane.b32.xlu0 %v2283, 4
      %v2361 = vpop.permute.xlu0 %2360
      %2362 = vrot.lane.b32.xlu0 %v2284, 4
      %v2363 = vpop.permute.xlu0 %2362
      %2364 = vrot.lane.b32.xlu0 %v2285, 4
      %v2365 = vpop.permute.xlu0 %2364
      %2366 = vrot.lane.b32.xlu0 %v2286, 4
      %v2367 = vpop.permute.xlu0 %2366
      %2368 = vrot.lane.b32.xlu0 %v2287, 4
      %v2369 = vpop.permute.xlu0 %2368
      %2370 = vrot.lane.b32.xlu0 %v2288, 4
      %v2371 = vpop.permute.xlu0 %2370
      %2372 = vrot.lane.b32.xlu0 %v2289, 4
      %v2373 = vpop.permute.xlu0 %2372
      %2374 = vrot.lane.b32.xlu0 %v2290, 4
      %v2375 = vpop.permute.xlu0 %2374
      %2376 = vrot.lane.b32.xlu0 %v2291, 4
      %v2377 = vpop.permute.xlu0 %2376
      %2378 = vrot.lane.b32.xlu0 %v2292, 4
      %v2379 = vpop.permute.xlu0 %2378
      %2380 = vrot.lane.b32.xlu0 %v2293, 4
      %v2381 = vpop.permute.xlu0 %2380
      %2382 = vrot.lane.b32.xlu0 %v2294, 4
      %v2383 = vpop.permute.xlu0 %2382
      %2384 = vrot.lane.b32.xlu0 %v2295, 4
      %v2385 = vpop.permute.xlu0 %2384
      %2386 = vrot.lane.b32.xlu0 %v2296, 4
      %v2387 = vpop.permute.xlu0 %2386
      %2388 = vrot.lane.b32.xlu0 %v2297, 4
      %v2389 = vpop.permute.xlu0 %2388
      %2390 = vrot.lane.b32.xlu0 %v2298, 4
      %v2391 = vpop.permute.xlu0 %2390
      %2392 = vrot.lane.b32.xlu0 %v2299, 4
      %v2393 = vpop.permute.xlu0 %2392
      %2394 = vrot.lane.b32.xlu0 %v2300, 4
      %v2395 = vpop.permute.xlu0 %2394
      %2396 = vrot.lane.b32.xlu0 %v2301, 4
      %v2397 = vpop.permute.xlu0 %2396
      %vm2430 = vcmask 60448
      %2431 = vst.msk [vmem:[#allocation3] sm:$0xf] %vm2430, %v2335
      %2432 = vst.msk [vmem:[#allocation3 + $0x4] sm:$0xf] %vm2430, %v2337
      %2433 = vst.msk [vmem:[#allocation3 + $0x8] sm:$0xf] %vm2430, %v2339
      %2434 = vst.msk [vmem:[#allocation3 + $0xc] sm:$0xf] %vm2430, %v2341
      %2435 = vst.msk [vmem:[#allocation3 + $0x10] sm:$0xf] %vm2430, %v2343
      %2436 = vst.msk [vmem:[#allocation3 + $0x14] sm:$0xf] %vm2430, %v2345
      %2437 = vst.msk [vmem:[#allocation3 + $0x18] sm:$0xf] %vm2430, %v2347
      %2438 = vst.msk [vmem:[#allocation3 + $0x1c] sm:$0xf] %vm2430, %v2349
      %2439 = vst.msk [vmem:[#allocation3 + $0x20] sm:$0xf] %vm2430, %v2351
      %2440 = vst.msk [vmem:[#allocation3 + $0x24] sm:$0xf] %vm2430, %v2353
      %2441 = vst.msk [vmem:[#allocation3 + $0x28] sm:$0xf] %vm2430, %v2355
      %2442 = vst.msk [vmem:[#allocation3 + $0x2c] sm:$0xf] %vm2430, %v2357
      %2443 = vst.msk [vmem:[#allocation3 + $0x30] sm:$0xf] %vm2430, %v2359
      %2444 = vst.msk [vmem:[#allocation3 + $0x34] sm:$0xf] %vm2430, %v2361
      %2445 = vst.msk [vmem:[#allocation3 + $0x38] sm:$0xf] %vm2430, %v2363
      %2446 = vst.msk [vmem:[#allocation3 + $0x3c] sm:$0xf] %vm2430, %v2365
      %2447 = vst.msk [vmem:[#allocation3 + $0x40] sm:$0xf] %vm2430, %v2367
      %2448 = vst.msk [vmem:[#allocation3 + $0x44] sm:$0xf] %vm2430, %v2369
      %2449 = vst.msk [vmem:[#allocation3 + $0x48] sm:$0xf] %vm2430, %v2371
      %2450 = vst.msk [vmem:[#allocation3 + $0x4c] sm:$0xf] %vm2430, %v2373
      %2451 = vst.msk [vmem:[#allocation3 + $0x50] sm:$0xf] %vm2430, %v2375
      %2452 = vst.msk [vmem:[#allocation3 + $0x54] sm:$0xf] %vm2430, %v2377
      %2453 = vst.msk [vmem:[#allocation3 + $0x58] sm:$0xf] %vm2430, %v2379
      %2454 = vst.msk [vmem:[#allocation3 + $0x5c] sm:$0xf] %vm2430, %v2381
      %2455 = vst.msk [vmem:[#allocation3 + $0x60] sm:$0xf] %vm2430, %v2383
      %2456 = vst.msk [vmem:[#allocation3 + $0x64] sm:$0xf] %vm2430, %v2385
      %2457 = vst.msk [vmem:[#allocation3 + $0x68] sm:$0xf] %vm2430, %v2387
      %2458 = vst.msk [vmem:[#allocation3 + $0x6c] sm:$0xf] %vm2430, %v2389
      %2459 = vst.msk [vmem:[#allocation3 + $0x70] sm:$0xf] %vm2430, %v2391
      %2460 = vst.msk [vmem:[#allocation3 + $0x74] sm:$0xf] %vm2430, %v2393
      %2461 = vst.msk [vmem:[#allocation3 + $0x78] sm:$0xf] %vm2430, %v2395
      %2462 = vst.msk [vmem:[#allocation3 + $0x7c] sm:$0xf] %vm2430, %v2397
      %v2463 = vld [vmem:[#allocation2 + $0x8] sm:$0xf]
      %v2464 = vld [vmem:[#allocation2 + $0xc] sm:$0xf]
      %v2465 = vld [vmem:[#allocation2 + $0x10] sm:$0xf]
      %v2466 = vld [vmem:[#allocation2 + $0x14] sm:$0xf]
      %v2467 = vld [vmem:[#allocation2 + $0x18] sm:$0xf]
      %v2468 = vld [vmem:[#allocation2 + $0x1c] sm:$0xf]
      %v2469 = vld [vmem:[#allocation2 + $0x20] sm:$0xf]
      %v2470 = vld [vmem:[#allocation2 + $0x24] sm:$0xf]
      %v2471 = vld [vmem:[#allocation2 + $0x28] sm:$0xf]
      %v2472 = vld [vmem:[#allocation2 + $0x2c] sm:$0xf]
      %v2473 = vld [vmem:[#allocation2 + $0x30] sm:$0xf]
      %v2474 = vld [vmem:[#allocation2 + $0x34] sm:$0xf]
      %v2475 = vld [vmem:[#allocation2 + $0x38] sm:$0xf]
      %v2476 = vld [vmem:[#allocation2 + $0x3c] sm:$0xf]
      %v2477 = vld [vmem:[#allocation2 + $0x40] sm:$0xf]
      %v2478 = vld [vmem:[#allocation2 + $0x44] sm:$0xf]
      %v2479 = vld [vmem:[#allocation2 + $0x48] sm:$0xf]
      %v2480 = vld [vmem:[#allocation2 + $0x4c] sm:$0xf]
      %v2481 = vld [vmem:[#allocation2 + $0x50] sm:$0xf]
      %v2482 = vld [vmem:[#allocation2 + $0x54] sm:$0xf]
      %v2483 = vld [vmem:[#allocation2 + $0x58] sm:$0xf]
      %v2484 = vld [vmem:[#allocation2 + $0x5c] sm:$0xf]
      %v2485 = vld [vmem:[#allocation2 + $0x60] sm:$0xf]
      %v2486 = vld [vmem:[#allocation2 + $0x64] sm:$0xf]
      %v2487 = vld [vmem:[#allocation2 + $0x68] sm:$0xf]
      %v2488 = vld [vmem:[#allocation2 + $0x6c] sm:$0xf]
      %v2489 = vld [vmem:[#allocation2 + $0x70] sm:$0xf]
      %v2490 = vld [vmem:[#allocation2 + $0x74] sm:$0xf]
      %v2491 = vld [vmem:[#allocation2 + $0x78] sm:$0xf]
      %v2492 = vld [vmem:[#allocation2 + $0x7c] sm:$0xf]
      %v2493 = vld [vmem:[#allocation2 + $0x80] sm:$0xf]
      %v2494 = vld [vmem:[#allocation2 + $0x84] sm:$0xf]
      %v2495 = vld [vmem:[#allocation2 + $0x88] sm:$0x1]
      %v2496 = vsel %vm1330, 1, 0
      %v2497 = vsel %vm1331, 1, 0
      %v2498 = vsel %vm1332, 1, 0
      %v2499 = vsel %vm1333, 1, 0
      %v2500 = vsel %vm1334, 1, 0
      %v2501 = vsel %vm1335, 1, 0
      %v2502 = vsel %vm1336, 1, 0
      %v2503 = vsel %vm1337, 1, 0
      %v2504 = vsel %vm1338, 1, 0
      %v2505 = vsel %vm1339, 1, 0
      %v2506 = vsel %vm1340, 1, 0
      %v2507 = vsel %vm1341, 1, 0
      %v2508 = vsel %vm1342, 1, 0
      %v2509 = vsel %vm1343, 1, 0
      %v2510 = vsel %vm1344, 1, 0
      %v2511 = vsel %vm1345, 1, 0
      %v2512 = vsel %vm1346, 1, 0
      %v2513 = vsel %vm1347, 1, 0
      %v2514 = vsel %vm1348, 1, 0
      %v2515 = vsel %vm1349, 1, 0
      %v2516 = vsel %vm1350, 1, 0
      %v2517 = vsel %vm1351, 1, 0
      %v2518 = vsel %vm1352, 1, 0
      %v2519 = vsel %vm1353, 1, 0
      %v2520 = vsel %vm1354, 1, 0
      %v2521 = vsel %vm1355, 1, 0
      %v2522 = vsel %vm1356, 1, 0
      %v2523 = vsel %vm1357, 1, 0
      %v2524 = vsel %vm1358, 1, 0
      %v2525 = vsel %vm1359, 1, 0
      %v2526 = vsel %vm1360, 1, 0
      %v2527 = vsel %vm1361, 1, 0
      %vm2528 = vcmp.eq.s32.totalorder %v2496, 1
      %vm2529 = vcmp.eq.s32.totalorder %v2497, 1
      %vm2530 = vcmp.eq.s32.totalorder %v2498, 1
      %vm2531 = vcmp.eq.s32.totalorder %v2499, 1
      %vm2532 = vcmp.eq.s32.totalorder %v2500, 1
      %vm2533 = vcmp.eq.s32.totalorder %v2501, 1
      %vm2534 = vcmp.eq.s32.totalorder %v2502, 1
      %vm2535 = vcmp.eq.s32.totalorder %v2503, 1
      %vm2536 = vcmp.eq.s32.totalorder %v2504, 1
      %vm2537 = vcmp.eq.s32.totalorder %v2505, 1
      %vm2538 = vcmp.eq.s32.totalorder %v2506, 1
      %vm2539 = vcmp.eq.s32.totalorder %v2507, 1
      %vm2540 = vcmp.eq.s32.totalorder %v2508, 1
      %vm2541 = vcmp.eq.s32.totalorder %v2509, 1
      %vm2542 = vcmp.eq.s32.totalorder %v2510, 1
      %vm2543 = vcmp.eq.s32.totalorder %v2511, 1
      %vm2544 = vcmp.eq.s32.totalorder %v2512, 1
      %vm2545 = vcmp.eq.s32.totalorder %v2513, 1
      %vm2546 = vcmp.eq.s32.totalorder %v2514, 1
      %vm2547 = vcmp.eq.s32.totalorder %v2515, 1
      %vm2548 = vcmp.eq.s32.totalorder %v2516, 1
      %vm2549 = vcmp.eq.s32.totalorder %v2517, 1
      %vm2550 = vcmp.eq.s32.totalorder %v2518, 1
      %vm2551 = vcmp.eq.s32.totalorder %v2519, 1
      %vm2552 = vcmp.eq.s32.totalorder %v2520, 1
      %vm2553 = vcmp.eq.s32.totalorder %v2521, 1
      %vm2554 = vcmp.eq.s32.totalorder %v2522, 1
      %vm2555 = vcmp.eq.s32.totalorder %v2523, 1
      %vm2556 = vcmp.eq.s32.totalorder %v2524, 1
      %vm2557 = vcmp.eq.s32.totalorder %v2525, 1
      %vm2558 = vcmp.eq.s32.totalorder %v2526, 1
      %vm2559 = vcmp.eq.s32.totalorder %v2527, 1
      %vm2560 = vmpackc.low %vm2528, %vm2528
      %vm2561 = vmpackc.low %vm2529, %vm2529
      %vm2562 = vmpackc.low %vm2530, %vm2530
      %vm2563 = vmpackc.low %vm2531, %vm2531
      %vm2564 = vmpackc.low %vm2532, %vm2532
      %vm2565 = vmpackc.low %vm2533, %vm2533
      %vm2566 = vmpackc.low %vm2534, %vm2534
      %vm2567 = vmpackc.low %vm2535, %vm2535
      %vm2568 = vmpackc.low %vm2536, %vm2536
      %vm2569 = vmpackc.low %vm2537, %vm2537
      %vm2570 = vmpackc.low %vm2538, %vm2538
      %vm2571 = vmpackc.low %vm2539, %vm2539
      %vm2572 = vmpackc.low %vm2540, %vm2540
      %vm2573 = vmpackc.low %vm2541, %vm2541
      %vm2574 = vmpackc.low %vm2542, %vm2542
      %vm2575 = vmpackc.low %vm2543, %vm2543
      %vm2576 = vmpackc.low %vm2544, %vm2544
      %vm2577 = vmpackc.low %vm2545, %vm2545
      %vm2578 = vmpackc.low %vm2546, %vm2546
      %vm2579 = vmpackc.low %vm2547, %vm2547
      %vm2580 = vmpackc.low %vm2548, %vm2548
      %vm2581 = vmpackc.low %vm2549, %vm2549
      %vm2582 = vmpackc.low %vm2550, %vm2550
      %vm2583 = vmpackc.low %vm2551, %vm2551
      %vm2584 = vmpackc.low %vm2552, %vm2552
      %vm2585 = vmpackc.low %vm2553, %vm2553
      %vm2586 = vmpackc.low %vm2554, %vm2554
      %vm2587 = vmpackc.low %vm2555, %vm2555
      %vm2588 = vmpackc.low %vm2556, %vm2556
      %vm2589 = vmpackc.low %vm2557, %vm2557
      %vm2590 = vmpackc.low %vm2558, %vm2558
      %vm2591 = vmpackc.low %vm2559, %vm2559
      %v2592 = vsel %vm2560, 65537, 0
      %v2593 = vsel %vm2561, 65537, 0
      %v2594 = vsel %vm2562, 65537, 0
      %v2595 = vsel %vm2563, 65537, 0
      %v2596 = vsel %vm2564, 65537, 0
      %v2597 = vsel %vm2565, 65537, 0
      %v2598 = vsel %vm2566, 65537, 0
      %v2599 = vsel %vm2567, 65537, 0
      %v2600 = vsel %vm2568, 65537, 0
      %v2601 = vsel %vm2569, 65537, 0
      %v2602 = vsel %vm2570, 65537, 0
      %v2603 = vsel %vm2571, 65537, 0
      %v2604 = vsel %vm2572, 65537, 0
      %v2605 = vsel %vm2573, 65537, 0
      %v2606 = vsel %vm2574, 65537, 0
      %v2607 = vsel %vm2575, 65537, 0
      %v2608 = vsel %vm2576, 65537, 0
      %v2609 = vsel %vm2577, 65537, 0
      %v2610 = vsel %vm2578, 65537, 0
      %v2611 = vsel %vm2579, 65537, 0
      %v2612 = vsel %vm2580, 65537, 0
      %v2613 = vsel %vm2581, 65537, 0
      %v2614 = vsel %vm2582, 65537, 0
      %v2615 = vsel %vm2583, 65537, 0
      %v2616 = vsel %vm2584, 65537, 0
      %v2617 = vsel %vm2585, 65537, 0
      %v2618 = vsel %vm2586, 65537, 0
      %v2619 = vsel %vm2587, 65537, 0
      %v2620 = vsel %vm2588, 65537, 0
      %v2621 = vsel %vm2589, 65537, 0
      %v2622 = vsel %vm2590, 65537, 0
      %v2623 = vsel %vm2591, 65537, 0
      %v2625 = vshrl.u32 %v2592, 16
      %v2627 = vrot.slane %v2625, 7
      %v2628 = vshll.u32 %v2592, 16
      %v2630 = vor.u32 %v2627, %v2628
      %v2631 = vrot.slane %v2627, 4
      %v2633 = vshrl.u32 %v2593, 16
      %v2635 = vrot.slane %v2633, 7
      %v2636 = vshll.u32 %v2593, 16
      %v2638 = vor.u32 %v2635, %v2636
      %v2639 = vsel %vm1913, %v2631, %v2638
      %v2640 = vrot.slane %v2635, 4
      %v2642 = vshrl.u32 %v2594, 16
      %v2644 = vrot.slane %v2642, 7
      %v2645 = vshll.u32 %v2594, 16
      %v2647 = vor.u32 %v2644, %v2645
      %v2648 = vsel %vm1913, %v2640, %v2647
      %v2649 = vrot.slane %v2644, 4
      %v2651 = vshrl.u32 %v2595, 16
      %v2653 = vrot.slane %v2651, 7
      %v2654 = vshll.u32 %v2595, 16
      %v2656 = vor.u32 %v2653, %v2654
      %v2657 = vsel %vm1913, %v2649, %v2656
      %v2658 = vrot.slane %v2653, 4
      %v2660 = vshrl.u32 %v2596, 16
      %v2662 = vrot.slane %v2660, 7
      %v2663 = vshll.u32 %v2596, 16
      %v2665 = vor.u32 %v2662, %v2663
      %v2666 = vsel %vm1913, %v2658, %v2665
      %v2667 = vrot.slane %v2662, 4
      %v2669 = vshrl.u32 %v2597, 16
      %v2671 = vrot.slane %v2669, 7
      %v2672 = vshll.u32 %v2597, 16
      %v2674 = vor.u32 %v2671, %v2672
      %v2675 = vsel %vm1913, %v2667, %v2674
      %v2676 = vrot.slane %v2671, 4
      %v2678 = vshrl.u32 %v2598, 16
      %v2680 = vrot.slane %v2678, 7
      %v2681 = vshll.u32 %v2598, 16
      %v2683 = vor.u32 %v2680, %v2681
      %v2684 = vsel %vm1913, %v2676, %v2683
      %v2685 = vrot.slane %v2680, 4
      %v2687 = vshrl.u32 %v2599, 16
      %v2689 = vrot.slane %v2687, 7
      %v2690 = vshll.u32 %v2599, 16
      %v2692 = vor.u32 %v2689, %v2690
      %v2693 = vsel %vm1913, %v2685, %v2692
      %v2694 = vrot.slane %v2689, 4
      %v2696 = vshrl.u32 %v2600, 16
      %v2698 = vrot.slane %v2696, 7
      %v2699 = vshll.u32 %v2600, 16
      %v2701 = vor.u32 %v2698, %v2699
      %v2702 = vsel %vm1913, %v2694, %v2701
      %v2703 = vrot.slane %v2698, 4
      %v2705 = vshrl.u32 %v2601, 16
      %v2707 = vrot.slane %v2705, 7
      %v2708 = vshll.u32 %v2601, 16
      %v2710 = vor.u32 %v2707, %v2708
      %v2711 = vsel %vm1913, %v2703, %v2710
      %v2712 = vrot.slane %v2707, 4
      %v2714 = vshrl.u32 %v2602, 16
      %v2716 = vrot.slane %v2714, 7
      %v2717 = vshll.u32 %v2602, 16
      %v2719 = vor.u32 %v2716, %v2717
      %v2720 = vsel %vm1913, %v2712, %v2719
      %v2721 = vrot.slane %v2716, 4
      %v2723 = vshrl.u32 %v2603, 16
      %v2725 = vrot.slane %v2723, 7
      %v2726 = vshll.u32 %v2603, 16
      %v2728 = vor.u32 %v2725, %v2726
      %v2729 = vsel %vm1913, %v2721, %v2728
      %v2730 = vrot.slane %v2725, 4
      %v2732 = vshrl.u32 %v2604, 16
      %v2734 = vrot.slane %v2732, 7
      %v2735 = vshll.u32 %v2604, 16
      %v2737 = vor.u32 %v2734, %v2735
      %v2738 = vsel %vm1913, %v2730, %v2737
      %v2739 = vrot.slane %v2734, 4
      %v2741 = vshrl.u32 %v2605, 16
      %v2743 = vrot.slane %v2741, 7
      %v2744 = vshll.u32 %v2605, 16
      %v2746 = vor.u32 %v2743, %v2744
      %v2747 = vsel %vm1913, %v2739, %v2746
      %v2748 = vrot.slane %v2743, 4
      %v2750 = vshrl.u32 %v2606, 16
      %v2752 = vrot.slane %v2750, 7
      %v2753 = vshll.u32 %v2606, 16
      %v2755 = vor.u32 %v2752, %v2753
      %v2756 = vsel %vm1913, %v2748, %v2755
      %v2757 = vrot.slane %v2752, 4
      %v2759 = vshrl.u32 %v2607, 16
      %v2761 = vrot.slane %v2759, 7
      %v2762 = vshll.u32 %v2607, 16
      %v2764 = vor.u32 %v2761, %v2762
      %v2765 = vsel %vm1913, %v2757, %v2764
      %v2766 = vrot.slane %v2761, 4
      %v2768 = vshrl.u32 %v2608, 16
      %v2770 = vrot.slane %v2768, 7
      %v2771 = vshll.u32 %v2608, 16
      %v2773 = vor.u32 %v2770, %v2771
      %v2774 = vsel %vm1913, %v2766, %v2773
      %v2775 = vrot.slane %v2770, 4
      %v2777 = vshrl.u32 %v2609, 16
      %v2779 = vrot.slane %v2777, 7
      %v2780 = vshll.u32 %v2609, 16
      %v2782 = vor.u32 %v2779, %v2780
      %v2783 = vsel %vm1913, %v2775, %v2782
      %v2784 = vrot.slane %v2779, 4
      %v2786 = vshrl.u32 %v2610, 16
      %v2788 = vrot.slane %v2786, 7
      %v2789 = vshll.u32 %v2610, 16
      %v2791 = vor.u32 %v2788, %v2789
      %v2792 = vsel %vm1913, %v2784, %v2791
      %v2793 = vrot.slane %v2788, 4
      %v2795 = vshrl.u32 %v2611, 16
      %v2797 = vrot.slane %v2795, 7
      %v2798 = vshll.u32 %v2611, 16
      %v2800 = vor.u32 %v2797, %v2798
      %v2801 = vsel %vm1913, %v2793, %v2800
      %v2802 = vrot.slane %v2797, 4
      %v2804 = vshrl.u32 %v2612, 16
      %v2806 = vrot.slane %v2804, 7
      %v2807 = vshll.u32 %v2612, 16
      %v2809 = vor.u32 %v2806, %v2807
      %v2810 = vsel %vm1913, %v2802, %v2809
      %v2811 = vrot.slane %v2806, 4
      %v2813 = vshrl.u32 %v2613, 16
      %v2815 = vrot.slane %v2813, 7
      %v2816 = vshll.u32 %v2613, 16
      %v2818 = vor.u32 %v2815, %v2816
      %v2819 = vsel %vm1913, %v2811, %v2818
      %v2820 = vrot.slane %v2815, 4
      %v2822 = vshrl.u32 %v2614, 16
      %v2824 = vrot.slane %v2822, 7
      %v2825 = vshll.u32 %v2614, 16
      %v2827 = vor.u32 %v2824, %v2825
      %v2828 = vsel %vm1913, %v2820, %v2827
      %v2829 = vrot.slane %v2824, 4
      %v2831 = vshrl.u32 %v2615, 16
      %v2833 = vrot.slane %v2831, 7
      %v2834 = vshll.u32 %v2615, 16
      %v2836 = vor.u32 %v2833, %v2834
      %v2837 = vsel %vm1913, %v2829, %v2836
      %v2838 = vrot.slane %v2833, 4
      %v2840 = vshrl.u32 %v2616, 16
      %v2842 = vrot.slane %v2840, 7
      %v2843 = vshll.u32 %v2616, 16
      %v2845 = vor.u32 %v2842, %v2843
      %v2846 = vsel %vm1913, %v2838, %v2845
      %v2847 = vrot.slane %v2842, 4
      %v2849 = vshrl.u32 %v2617, 16
      %v2851 = vrot.slane %v2849, 7
      %v2852 = vshll.u32 %v2617, 16
      %v2854 = vor.u32 %v2851, %v2852
      %v2855 = vsel %vm1913, %v2847, %v2854
      %v2856 = vrot.slane %v2851, 4
      %v2858 = vshrl.u32 %v2618, 16
      %v2860 = vrot.slane %v2858, 7
      %v2861 = vshll.u32 %v2618, 16
      %v2863 = vor.u32 %v2860, %v2861
      %v2864 = vsel %vm1913, %v2856, %v2863
      %v2865 = vrot.slane %v2860, 4
      %v2867 = vshrl.u32 %v2619, 16
      %v2869 = vrot.slane %v2867, 7
      %v2870 = vshll.u32 %v2619, 16
      %v2872 = vor.u32 %v2869, %v2870
      %v2873 = vsel %vm1913, %v2865, %v2872
      %v2874 = vrot.slane %v2869, 4
      %v2876 = vshrl.u32 %v2620, 16
      %v2878 = vrot.slane %v2876, 7
      %v2879 = vshll.u32 %v2620, 16
      %v2881 = vor.u32 %v2878, %v2879
      %v2882 = vsel %vm1913, %v2874, %v2881
      %v2883 = vrot.slane %v2878, 4
      %v2885 = vshrl.u32 %v2621, 16
      %v2887 = vrot.slane %v2885, 7
      %v2888 = vshll.u32 %v2621, 16
      %v2890 = vor.u32 %v2887, %v2888
      %v2891 = vsel %vm1913, %v2883, %v2890
      %v2892 = vrot.slane %v2887, 4
      %v2894 = vshrl.u32 %v2622, 16
      %v2896 = vrot.slane %v2894, 7
      %v2897 = vshll.u32 %v2622, 16
      %v2899 = vor.u32 %v2896, %v2897
      %v2900 = vsel %vm1913, %v2892, %v2899
      %v2901 = vrot.slane %v2896, 4
      %v2903 = vshrl.u32 %v2623, 16
      %v2905 = vrot.slane %v2903, 7
      %v2906 = vshll.u32 %v2623, 16
      %v2908 = vor.u32 %v2905, %v2906
      %v2909 = vsel %vm1913, %v2901, %v2908
      %v2910 = vrot.slane %v2905, 4
      %vm2911 = vcmp.ne.s16.totalorder %v2630, 0
      %vm2912 = vcmp.ne.s16.totalorder %v2639, 0
      %vm2913 = vcmp.ne.s16.totalorder %v2648, 0
      %vm2914 = vcmp.ne.s16.totalorder %v2657, 0
      %vm2915 = vcmp.ne.s16.totalorder %v2666, 0
      %vm2916 = vcmp.ne.s16.totalorder %v2675, 0
      %vm2917 = vcmp.ne.s16.totalorder %v2684, 0
      %vm2918 = vcmp.ne.s16.totalorder %v2693, 0
      %vm2919 = vcmp.ne.s16.totalorder %v2702, 0
      %vm2920 = vcmp.ne.s16.totalorder %v2711, 0
      %vm2921 = vcmp.ne.s16.totalorder %v2720, 0
      %vm2922 = vcmp.ne.s16.totalorder %v2729, 0
      %vm2923 = vcmp.ne.s16.totalorder %v2738, 0
      %vm2924 = vcmp.ne.s16.totalorder %v2747, 0
      %vm2925 = vcmp.ne.s16.totalorder %v2756, 0
      %vm2926 = vcmp.ne.s16.totalorder %v2765, 0
      %vm2927 = vcmp.ne.s16.totalorder %v2774, 0
      %vm2928 = vcmp.ne.s16.totalorder %v2783, 0
      %vm2929 = vcmp.ne.s16.totalorder %v2792, 0
      %vm2930 = vcmp.ne.s16.totalorder %v2801, 0
      %vm2931 = vcmp.ne.s16.totalorder %v2810, 0
      %vm2932 = vcmp.ne.s16.totalorder %v2819, 0
      %vm2933 = vcmp.ne.s16.totalorder %v2828, 0
      %vm2934 = vcmp.ne.s16.totalorder %v2837, 0
      %vm2935 = vcmp.ne.s16.totalorder %v2846, 0
      %vm2936 = vcmp.ne.s16.totalorder %v2855, 0
      %vm2937 = vcmp.ne.s16.totalorder %v2864, 0
      %vm2938 = vcmp.ne.s16.totalorder %v2873, 0
      %vm2939 = vcmp.ne.s16.totalorder %v2882, 0
      %vm2940 = vcmp.ne.s16.totalorder %v2891, 0
      %vm2941 = vcmp.ne.s16.totalorder %v2900, 0
      %vm2942 = vcmp.ne.s16.totalorder %v2909, 0
      %vm2943 = vcmp.ne.s16.totalorder %v2910, 0
      %v2944 = vsel %vm2911, %v2463, 0
      %v2945 = vsel %vm2912, %v2464, 0
      %v2946 = vsel %vm2913, %v2465, 0
      %v2947 = vsel %vm2914, %v2466, 0
      %v2948 = vsel %vm2915, %v2467, 0
      %v2949 = vsel %vm2916, %v2468, 0
      %v2950 = vsel %vm2917, %v2469, 0
      %v2951 = vsel %vm2918, %v2470, 0
      %v2952 = vsel %vm2919, %v2471, 0
      %v2953 = vsel %vm2920, %v2472, 0
      %v2954 = vsel %vm2921, %v2473, 0
      %v2955 = vsel %vm2922, %v2474, 0
      %v2956 = vsel %vm2923, %v2475, 0
      %v2957 = vsel %vm2924, %v2476, 0
      %v2958 = vsel %vm2925, %v2477, 0
      %v2959 = vsel %vm2926, %v2478, 0
      %v2960 = vsel %vm2927, %v2479, 0
      %v2961 = vsel %vm2928, %v2480, 0
      %v2962 = vsel %vm2929, %v2481, 0
      %v2963 = vsel %vm2930, %v2482, 0
      %v2964 = vsel %vm2931, %v2483, 0
      %v2965 = vsel %vm2932, %v2484, 0
      %v2966 = vsel %vm2933, %v2485, 0
      %v2967 = vsel %vm2934, %v2486, 0
      %v2968 = vsel %vm2935, %v2487, 0
      %v2969 = vsel %vm2936, %v2488, 0
      %v2970 = vsel %vm2937, %v2489, 0
      %v2971 = vsel %vm2938, %v2490, 0
      %v2972 = vsel %vm2939, %v2491, 0
      %v2973 = vsel %vm2940, %v2492, 0
      %v2974 = vsel %vm2941, %v2493, 0
      %v2975 = vsel %vm2942, %v2494, 0
      %v2976 = vsel %vm2943, %v2495, 0
      %v2978 = vshrl.u32 %v2944, 16
      %v2980 = vrot.slane %v2978, 4
      %v2981 = vshll.u32 %v2944, 16
      %v2983 = vrot.slane %v2981, 5
      %v2984 = vor.u32 %v2980, %v2983
      %v2985 = vrot.slane %v2984, 4
      %v2987 = vshll.u32 %v2945, 16
      %v2989 = vrot.slane %v2987, 5
      %v2990 = vsel %vm1525, %v2985, %v2989
      %v2991 = vshrl.u32 %v2945, 16
      %v2993 = vrot.slane %v2991, 4
      %v2994 = vor.u32 %v2993, %v2989
      %v2995 = vrot.slane %v2994, 4
      %v2997 = vshll.u32 %v2946, 16
      %v2999 = vrot.slane %v2997, 5
      %v3000 = vsel %vm1525, %v2995, %v2999
      %v3001 = vshrl.u32 %v2946, 16
      %v3003 = vrot.slane %v3001, 4
      %v3004 = vor.u32 %v3003, %v2999
      %v3005 = vrot.slane %v3004, 4
      %v3007 = vshll.u32 %v2947, 16
      %v3009 = vrot.slane %v3007, 5
      %v3010 = vsel %vm1525, %v3005, %v3009
      %v3011 = vshrl.u32 %v2947, 16
      %v3013 = vrot.slane %v3011, 4
      %v3014 = vor.u32 %v3013, %v3009
      %v3015 = vrot.slane %v3014, 4
      %v3017 = vshll.u32 %v2948, 16
      %v3019 = vrot.slane %v3017, 5
      %v3020 = vsel %vm1525, %v3015, %v3019
      %v3021 = vshrl.u32 %v2948, 16
      %v3023 = vrot.slane %v3021, 4
      %v3024 = vor.u32 %v3023, %v3019
      %v3025 = vrot.slane %v3024, 4
      %v3027 = vshll.u32 %v2949, 16
      %v3029 = vrot.slane %v3027, 5
      %v3030 = vsel %vm1525, %v3025, %v3029
      %v3031 = vshrl.u32 %v2949, 16
      %v3033 = vrot.slane %v3031, 4
      %v3034 = vor.u32 %v3033, %v3029
      %v3035 = vrot.slane %v3034, 4
      %v3037 = vshll.u32 %v2950, 16
      %v3039 = vrot.slane %v3037, 5
      %v3040 = vsel %vm1525, %v3035, %v3039
      %v3041 = vshrl.u32 %v2950, 16
      %v3043 = vrot.slane %v3041, 4
      %v3044 = vor.u32 %v3043, %v3039
      %v3045 = vrot.slane %v3044, 4
      %v3047 = vshll.u32 %v2951, 16
      %v3049 = vrot.slane %v3047, 5
      %v3050 = vsel %vm1525, %v3045, %v3049
      %v3051 = vshrl.u32 %v2951, 16
      %v3053 = vrot.slane %v3051, 4
      %v3054 = vor.u32 %v3053, %v3049
      %v3055 = vrot.slane %v3054, 4
      %v3057 = vshll.u32 %v2952, 16
      %v3059 = vrot.slane %v3057, 5
      %v3060 = vsel %vm1525, %v3055, %v3059
      %v3061 = vshrl.u32 %v2952, 16
      %v3063 = vrot.slane %v3061, 4
      %v3064 = vor.u32 %v3063, %v3059
      %v3065 = vrot.slane %v3064, 4
      %v3067 = vshll.u32 %v2953, 16
      %v3069 = vrot.slane %v3067, 5
      %v3070 = vsel %vm1525, %v3065, %v3069
      %v3071 = vshrl.u32 %v2953, 16
      %v3073 = vrot.slane %v3071, 4
      %v3074 = vor.u32 %v3073, %v3069
      %v3075 = vrot.slane %v3074, 4
      %v3077 = vshll.u32 %v2954, 16
      %v3079 = vrot.slane %v3077, 5
      %v3080 = vsel %vm1525, %v3075, %v3079
      %v3081 = vshrl.u32 %v2954, 16
      %v3083 = vrot.slane %v3081, 4
      %v3084 = vor.u32 %v3083, %v3079
      %v3085 = vrot.slane %v3084, 4
      %v3087 = vshll.u32 %v2955, 16
      %v3089 = vrot.slane %v3087, 5
      %v3090 = vsel %vm1525, %v3085, %v3089
      %v3091 = vshrl.u32 %v2955, 16
      %v3093 = vrot.slane %v3091, 4
      %v3094 = vor.u32 %v3093, %v3089
      %v3095 = vrot.slane %v3094, 4
      %v3097 = vshll.u32 %v2956, 16
      %v3099 = vrot.slane %v3097, 5
      %v3100 = vsel %vm1525, %v3095, %v3099
      %v3101 = vshrl.u32 %v2956, 16
      %v3103 = vrot.slane %v3101, 4
      %v3104 = vor.u32 %v3103, %v3099
      %v3105 = vrot.slane %v3104, 4
      %v3107 = vshll.u32 %v2957, 16
      %v3109 = vrot.slane %v3107, 5
      %v3110 = vsel %vm1525, %v3105, %v3109
      %v3111 = vshrl.u32 %v2957, 16
      %v3113 = vrot.slane %v3111, 4
      %v3114 = vor.u32 %v3113, %v3109
      %v3115 = vrot.slane %v3114, 4
      %v3117 = vshll.u32 %v2958, 16
      %v3119 = vrot.slane %v3117, 5
      %v3120 = vsel %vm1525, %v3115, %v3119
      %v3121 = vshrl.u32 %v2958, 16
      %v3123 = vrot.slane %v3121, 4
      %v3124 = vor.u32 %v3123, %v3119
      %v3125 = vrot.slane %v3124, 4
      %v3127 = vshll.u32 %v2959, 16
      %v3129 = vrot.slane %v3127, 5
      %v3130 = vsel %vm1525, %v3125, %v3129
      %v3131 = vshrl.u32 %v2959, 16
      %v3133 = vrot.slane %v3131, 4
      %v3134 = vor.u32 %v3133, %v3129
      %v3135 = vrot.slane %v3134, 4
      %v3137 = vshll.u32 %v2960, 16
      %v3139 = vrot.slane %v3137, 5
      %v3140 = vsel %vm1525, %v3135, %v3139
      %v3141 = vshrl.u32 %v2960, 16
      %v3143 = vrot.slane %v3141, 4
      %v3144 = vor.u32 %v3143, %v3139
      %v3145 = vrot.slane %v3144, 4
      %v3147 = vshll.u32 %v2961, 16
      %v3149 = vrot.slane %v3147, 5
      %v3150 = vsel %vm1525, %v3145, %v3149
      %v3151 = vshrl.u32 %v2961, 16
      %v3153 = vrot.slane %v3151, 4
      %v3154 = vor.u32 %v3153, %v3149
      %v3155 = vrot.slane %v3154, 4
      %v3157 = vshll.u32 %v2962, 16
      %v3159 = vrot.slane %v3157, 5
      %v3160 = vsel %vm1525, %v3155, %v3159
      %v3161 = vshrl.u32 %v2962, 16
      %v3163 = vrot.slane %v3161, 4
      %v3164 = vor.u32 %v3163, %v3159
      %v3165 = vrot.slane %v3164, 4
      %v3167 = vshll.u32 %v2963, 16
      %v3169 = vrot.slane %v3167, 5
      %v3170 = vsel %vm1525, %v3165, %v3169
      %v3171 = vshrl.u32 %v2963, 16
      %v3173 = vrot.slane %v3171, 4
      %v3174 = vor.u32 %v3173, %v3169
      %v3175 = vrot.slane %v3174, 4
      %v3177 = vshll.u32 %v2964, 16
      %v3179 = vrot.slane %v3177, 5
      %v3180 = vsel %vm1525, %v3175, %v3179
      %v3181 = vshrl.u32 %v2964, 16
      %v3183 = vrot.slane %v3181, 4
      %v3184 = vor.u32 %v3183, %v3179
      %v3185 = vrot.slane %v3184, 4
      %v3187 = vshll.u32 %v2965, 16
      %v3189 = vrot.slane %v3187, 5
      %v3190 = vsel %vm1525, %v3185, %v3189
      %v3191 = vshrl.u32 %v2965, 16
      %v3193 = vrot.slane %v3191, 4
      %v3194 = vor.u32 %v3193, %v3189
      %v3195 = vrot.slane %v3194, 4
      %v3197 = vshll.u32 %v2966, 16
      %v3199 = vrot.slane %v3197, 5
      %v3200 = vsel %vm1525, %v3195, %v3199
      %v3201 = vshrl.u32 %v2966, 16
      %v3203 = vrot.slane %v3201, 4
      %v3204 = vor.u32 %v3203, %v3199
      %v3205 = vrot.slane %v3204, 4
      %v3207 = vshll.u32 %v2967, 16
      %v3209 = vrot.slane %v3207, 5
      %v3210 = vsel %vm1525, %v3205, %v3209
      %v3211 = vshrl.u32 %v2967, 16
      %v3213 = vrot.slane %v3211, 4
      %v3214 = vor.u32 %v3213, %v3209
      %v3215 = vrot.slane %v3214, 4
      %v3217 = vshll.u32 %v2968, 16
      %v3219 = vrot.slane %v3217, 5
      %v3220 = vsel %vm1525, %v3215, %v3219
      %v3221 = vshrl.u32 %v2968, 16
      %v3223 = vrot.slane %v3221, 4
      %v3224 = vor.u32 %v3223, %v3219
      %v3225 = vrot.slane %v3224, 4
      %v3227 = vshll.u32 %v2969, 16
      %v3229 = vrot.slane %v3227, 5
      %v3230 = vsel %vm1525, %v3225, %v3229
      %v3231 = vshrl.u32 %v2969, 16
      %v3233 = vrot.slane %v3231, 4
      %v3234 = vor.u32 %v3233, %v3229
      %v3235 = vrot.slane %v3234, 4
      %v3237 = vshll.u32 %v2970, 16
      %v3239 = vrot.slane %v3237, 5
      %v3240 = vsel %vm1525, %v3235, %v3239
      %v3241 = vshrl.u32 %v2970, 16
      %v3243 = vrot.slane %v3241, 4
      %v3244 = vor.u32 %v3243, %v3239
      %v3245 = vrot.slane %v3244, 4
      %v3247 = vshll.u32 %v2971, 16
      %v3249 = vrot.slane %v3247, 5
      %v3250 = vsel %vm1525, %v3245, %v3249
      %v3251 = vshrl.u32 %v2971, 16
      %v3253 = vrot.slane %v3251, 4
      %v3254 = vor.u32 %v3253, %v3249
      %v3255 = vrot.slane %v3254, 4
      %v3257 = vshll.u32 %v2972, 16
      %v3259 = vrot.slane %v3257, 5
      %v3260 = vsel %vm1525, %v3255, %v3259
      %v3261 = vshrl.u32 %v2972, 16
      %v3263 = vrot.slane %v3261, 4
      %v3264 = vor.u32 %v3263, %v3259
      %v3265 = vrot.slane %v3264, 4
      %v3267 = vshll.u32 %v2973, 16
      %v3269 = vrot.slane %v3267, 5
      %v3270 = vsel %vm1525, %v3265, %v3269
      %v3271 = vshrl.u32 %v2973, 16
      %v3273 = vrot.slane %v3271, 4
      %v3274 = vor.u32 %v3273, %v3269
      %v3275 = vrot.slane %v3274, 4
      %v3277 = vshll.u32 %v2974, 16
      %v3279 = vrot.slane %v3277, 5
      %v3280 = vsel %vm1525, %v3275, %v3279
      %v3281 = vshrl.u32 %v2974, 16
      %v3283 = vrot.slane %v3281, 4
      %v3284 = vor.u32 %v3283, %v3279
      %v3285 = vrot.slane %v3284, 4
      %v3287 = vshll.u32 %v2975, 16
      %v3289 = vrot.slane %v3287, 5
      %v3290 = vsel %vm1525, %v3285, %v3289
      %v3291 = vshrl.u32 %v2975, 16
      %v3293 = vrot.slane %v3291, 4
      %v3294 = vor.u32 %v3293, %v3289
      %v3295 = vrot.slane %v3294, 4
      %v3297 = vshll.u32 %v2976, 16
      %v3299 = vrot.slane %v3297, 5
      %v3300 = vsel %vm1525, %v3295, %v3299
      %3301 = vrot.lane.b32.xlu0 %v2990, 8
      %v3302 = vpop.permute.xlu0 %3301
      %3303 = vrot.lane.b32.xlu0 %v3000, 8
      %v3304 = vpop.permute.xlu0 %3303
      %3305 = vrot.lane.b32.xlu0 %v3010, 8
      %v3306 = vpop.permute.xlu0 %3305
      %3307 = vrot.lane.b32.xlu0 %v3020, 8
      %v3308 = vpop.permute.xlu0 %3307
      %3309 = vrot.lane.b32.xlu0 %v3030, 8
      %v3310 = vpop.permute.xlu0 %3309
      %3311 = vrot.lane.b32.xlu0 %v3040, 8
      %v3312 = vpop.permute.xlu0 %3311
      %3313 = vrot.lane.b32.xlu0 %v3050, 8
      %v3314 = vpop.permute.xlu0 %3313
      %3315 = vrot.lane.b32.xlu0 %v3060, 8
      %v3316 = vpop.permute.xlu0 %3315
      %3317 = vrot.lane.b32.xlu0 %v3070, 8
      %v3318 = vpop.permute.xlu0 %3317
      %3319 = vrot.lane.b32.xlu0 %v3080, 8
      %v3320 = vpop.permute.xlu0 %3319
      %3321 = vrot.lane.b32.xlu0 %v3090, 8
      %v3322 = vpop.permute.xlu0 %3321
      %3323 = vrot.lane.b32.xlu0 %v3100, 8
      %v3324 = vpop.permute.xlu0 %3323
      %3325 = vrot.lane.b32.xlu0 %v3110, 8
      %v3326 = vpop.permute.xlu0 %3325
      %3327 = vrot.lane.b32.xlu0 %v3120, 8
      %v3328 = vpop.permute.xlu0 %3327
      %3329 = vrot.lane.b32.xlu0 %v3130, 8
      %v3330 = vpop.permute.xlu0 %3329
      %3331 = vrot.lane.b32.xlu0 %v3140, 8
      %v3332 = vpop.permute.xlu0 %3331
      %3333 = vrot.lane.b32.xlu0 %v3150, 8
      %v3334 = vpop.permute.xlu0 %3333
      %3335 = vrot.lane.b32.xlu0 %v3160, 8
      %v3336 = vpop.permute.xlu0 %3335
      %3337 = vrot.lane.b32.xlu0 %v3170, 8
      %v3338 = vpop.permute.xlu0 %3337
      %3339 = vrot.lane.b32.xlu0 %v3180, 8
      %v3340 = vpop.permute.xlu0 %3339
      %3341 = vrot.lane.b32.xlu0 %v3190, 8
      %v3342 = vpop.permute.xlu0 %3341
      %3343 = vrot.lane.b32.xlu0 %v3200, 8
      %v3344 = vpop.permute.xlu0 %3343
      %3345 = vrot.lane.b32.xlu0 %v3210, 8
      %v3346 = vpop.permute.xlu0 %3345
      %3347 = vrot.lane.b32.xlu0 %v3220, 8
      %v3348 = vpop.permute.xlu0 %3347
      %3349 = vrot.lane.b32.xlu0 %v3230, 8
      %v3350 = vpop.permute.xlu0 %3349
      %3351 = vrot.lane.b32.xlu0 %v3240, 8
      %v3352 = vpop.permute.xlu0 %3351
      %3353 = vrot.lane.b32.xlu0 %v3250, 8
      %v3354 = vpop.permute.xlu0 %3353
      %3355 = vrot.lane.b32.xlu0 %v3260, 8
      %v3356 = vpop.permute.xlu0 %3355
      %3357 = vrot.lane.b32.xlu0 %v3270, 8
      %v3358 = vpop.permute.xlu0 %3357
      %3359 = vrot.lane.b32.xlu0 %v3280, 8
      %v3360 = vpop.permute.xlu0 %3359
      %3361 = vrot.lane.b32.xlu0 %v3290, 8
      %v3362 = vpop.permute.xlu0 %3361
      %3363 = vrot.lane.b32.xlu0 %v3300, 8
      %v3364 = vpop.permute.xlu0 %3363
      %vm3397 = vcmask 93248
      %3398 = vst.msk [vmem:[#allocation3] sm:$0xf] %vm3397, %v3302
      %3399 = vst.msk [vmem:[#allocation3 + $0x4] sm:$0xf] %vm3397, %v3304
      %3400 = vst.msk [vmem:[#allocation3 + $0x8] sm:$0xf] %vm3397, %v3306
      %3401 = vst.msk [vmem:[#allocation3 + $0xc] sm:$0xf] %vm3397, %v3308
      %3402 = vst.msk [vmem:[#allocation3 + $0x10] sm:$0xf] %vm3397, %v3310
      %3403 = vst.msk [vmem:[#allocation3 + $0x14] sm:$0xf] %vm3397, %v3312
      %3404 = vst.msk [vmem:[#allocation3 + $0x18] sm:$0xf] %vm3397, %v3314
      %3405 = vst.msk [vmem:[#allocation3 + $0x1c] sm:$0xf] %vm3397, %v3316
      %3406 = vst.msk [vmem:[#allocation3 + $0x20] sm:$0xf] %vm3397, %v3318
      %3407 = vst.msk [vmem:[#allocation3 + $0x24] sm:$0xf] %vm3397, %v3320
      %3408 = vst.msk [vmem:[#allocation3 + $0x28] sm:$0xf] %vm3397, %v3322
      %3409 = vst.msk [vmem:[#allocation3 + $0x2c] sm:$0xf] %vm3397, %v3324
      %3410 = vst.msk [vmem:[#allocation3 + $0x30] sm:$0xf] %vm3397, %v3326
      %3411 = vst.msk [vmem:[#allocation3 + $0x34] sm:$0xf] %vm3397, %v3328
      %3412 = vst.msk [vmem:[#allocation3 + $0x38] sm:$0xf] %vm3397, %v3330
      %3413 = vst.msk [vmem:[#allocation3 + $0x3c] sm:$0xf] %vm3397, %v3332
      %3414 = vst.msk [vmem:[#allocation3 + $0x40] sm:$0xf] %vm3397, %v3334
      %3415 = vst.msk [vmem:[#allocation3 + $0x44] sm:$0xf] %vm3397, %v3336
      %3416 = vst.msk [vmem:[#allocation3 + $0x48] sm:$0xf] %vm3397, %v3338
      %3417 = vst.msk [vmem:[#allocation3 + $0x4c] sm:$0xf] %vm3397, %v3340
      %3418 = vst.msk [vmem:[#allocation3 + $0x50] sm:$0xf] %vm3397, %v3342
      %3419 = vst.msk [vmem:[#allocation3 + $0x54] sm:$0xf] %vm3397, %v3344
      %3420 = vst.msk [vmem:[#allocation3 + $0x58] sm:$0xf] %vm3397, %v3346
      %3421 = vst.msk [vmem:[#allocation3 + $0x5c] sm:$0xf] %vm3397, %v3348
      %3422 = vst.msk [vmem:[#allocation3 + $0x60] sm:$0xf] %vm3397, %v3350
      %3423 = vst.msk [vmem:[#allocation3 + $0x64] sm:$0xf] %vm3397, %v3352
      %3424 = vst.msk [vmem:[#allocation3 + $0x68] sm:$0xf] %vm3397, %v3354
      %3425 = vst.msk [vmem:[#allocation3 + $0x6c] sm:$0xf] %vm3397, %v3356
      %3426 = vst.msk [vmem:[#allocation3 + $0x70] sm:$0xf] %vm3397, %v3358
      %3427 = vst.msk [vmem:[#allocation3 + $0x74] sm:$0xf] %vm3397, %v3360
      %3428 = vst.msk [vmem:[#allocation3 + $0x78] sm:$0xf] %vm3397, %v3362
      %3429 = vst.msk [vmem:[#allocation3 + $0x7c] sm:$0xf] %vm3397, %v3364
      %v3430 = vld [vmem:[#allocation2 + $0xc] sm:$0x8]
      %v3431 = vld [vmem:[#allocation2 + $0x10] sm:$0xf]
      %v3432 = vld [vmem:[#allocation2 + $0x14] sm:$0xf]
      %v3433 = vld [vmem:[#allocation2 + $0x18] sm:$0xf]
      %v3434 = vld [vmem:[#allocation2 + $0x1c] sm:$0xf]
      %v3435 = vld [vmem:[#allocation2 + $0x20] sm:$0xf]
      %v3436 = vld [vmem:[#allocation2 + $0x24] sm:$0xf]
      %v3437 = vld [vmem:[#allocation2 + $0x28] sm:$0xf]
      %v3438 = vld [vmem:[#allocation2 + $0x2c] sm:$0xf]
      %v3439 = vld [vmem:[#allocation2 + $0x30] sm:$0xf]
      %v3440 = vld [vmem:[#allocation2 + $0x34] sm:$0xf]
      %v3441 = vld [vmem:[#allocation2 + $0x38] sm:$0xf]
      %v3442 = vld [vmem:[#allocation2 + $0x3c] sm:$0xf]
      %v3443 = vld [vmem:[#allocation2 + $0x40] sm:$0xf]
      %v3444 = vld [vmem:[#allocation2 + $0x44] sm:$0xf]
      %v3445 = vld [vmem:[#allocation2 + $0x48] sm:$0xf]
      %v3446 = vld [vmem:[#allocation2 + $0x4c] sm:$0xf]
      %v3447 = vld [vmem:[#allocation2 + $0x50] sm:$0xf]
      %v3448 = vld [vmem:[#allocation2 + $0x54] sm:$0xf]
      %v3449 = vld [vmem:[#allocation2 + $0x58] sm:$0xf]
      %v3450 = vld [vmem:[#allocation2 + $0x5c] sm:$0xf]
      %v3451 = vld [vmem:[#allocation2 + $0x60] sm:$0xf]
      %v3452 = vld [vmem:[#allocation2 + $0x64] sm:$0xf]
      %v3453 = vld [vmem:[#allocation2 + $0x68] sm:$0xf]
      %v3454 = vld [vmem:[#allocation2 + $0x6c] sm:$0xf]
      %v3455 = vld [vmem:[#allocation2 + $0x70] sm:$0xf]
      %v3456 = vld [vmem:[#allocation2 + $0x74] sm:$0xf]
      %v3457 = vld [vmem:[#allocation2 + $0x78] sm:$0xf]
      %v3458 = vld [vmem:[#allocation2 + $0x7c] sm:$0xf]
      %v3459 = vld [vmem:[#allocation2 + $0x80] sm:$0xf]
      %v3460 = vld [vmem:[#allocation2 + $0x84] sm:$0xf]
      %v3461 = vld [vmem:[#allocation2 + $0x88] sm:$0xf]
      %v3462 = vld [vmem:[#allocation2 + $0x8c] sm:$0xf]
      %v3463 = vsel %vm1845, %v3430, 0
      %v3464 = vsel %vm1846, %v3431, 0
      %v3465 = vsel %vm1847, %v3432, 0
      %v3466 = vsel %vm1848, %v3433, 0
      %v3467 = vsel %vm1849, %v3434, 0
      %v3468 = vsel %vm1850, %v3435, 0
      %v3469 = vsel %vm1851, %v3436, 0
      %v3470 = vsel %vm1852, %v3437, 0
      %v3471 = vsel %vm1853, %v3438, 0
      %v3472 = vsel %vm1854, %v3439, 0
      %v3473 = vsel %vm1855, %v3440, 0
      %v3474 = vsel %vm1856, %v3441, 0
      %v3475 = vsel %vm1857, %v3442, 0
      %v3476 = vsel %vm1858, %v3443, 0
      %v3477 = vsel %vm1859, %v3444, 0
      %v3478 = vsel %vm1860, %v3445, 0
      %v3479 = vsel %vm1861, %v3446, 0
      %v3480 = vsel %vm1862, %v3447, 0
      %v3481 = vsel %vm1863, %v3448, 0
      %v3482 = vsel %vm1864, %v3449, 0
      %v3483 = vsel %vm1865, %v3450, 0
      %v3484 = vsel %vm1866, %v3451, 0
      %v3485 = vsel %vm1867, %v3452, 0
      %v3486 = vsel %vm1868, %v3453, 0
      %v3487 = vsel %vm1869, %v3454, 0
      %v3488 = vsel %vm1870, %v3455, 0
      %v3489 = vsel %vm1871, %v3456, 0
      %v3490 = vsel %vm1872, %v3457, 0
      %v3491 = vsel %vm1873, %v3458, 0
      %v3492 = vsel %vm1874, %v3459, 0
      %v3493 = vsel %vm1875, %v3460, 0
      %v3494 = vsel %vm1876, %v3461, 0
      %v3495 = vsel %vm1877, %v3462, 0
      %v3497 = vshrl.u32 %v3463, 16
      %v3499 = vrot.slane %v3497, 7
      %v3500 = vrot.slane %v3499, 4
      %v3502 = vshrl.u32 %v3464, 16
      %v3504 = vrot.slane %v3502, 7
      %v3505 = vshll.u32 %v3464, 16
      %v3507 = vor.u32 %v3504, %v3505
      %v3508 = vsel %vm1913, %v3500, %v3507
      %v3509 = vrot.slane %v3504, 4
      %v3511 = vshrl.u32 %v3465, 16
      %v3513 = vrot.slane %v3511, 7
      %v3514 = vshll.u32 %v3465, 16
      %v3516 = vor.u32 %v3513, %v3514
      %v3517 = vsel %vm1913, %v3509, %v3516
      %v3518 = vrot.slane %v3513, 4
      %v3520 = vshrl.u32 %v3466, 16
      %v3522 = vrot.slane %v3520, 7
      %v3523 = vshll.u32 %v3466, 16
      %v3525 = vor.u32 %v3522, %v3523
      %v3526 = vsel %vm1913, %v3518, %v3525
      %v3527 = vrot.slane %v3522, 4
      %v3529 = vshrl.u32 %v3467, 16
      %v3531 = vrot.slane %v3529, 7
      %v3532 = vshll.u32 %v3467, 16
      %v3534 = vor.u32 %v3531, %v3532
      %v3535 = vsel %vm1913, %v3527, %v3534
      %v3536 = vrot.slane %v3531, 4
      %v3538 = vshrl.u32 %v3468, 16
      %v3540 = vrot.slane %v3538, 7
      %v3541 = vshll.u32 %v3468, 16
      %v3543 = vor.u32 %v3540, %v3541
      %v3544 = vsel %vm1913, %v3536, %v3543
      %v3545 = vrot.slane %v3540, 4
      %v3547 = vshrl.u32 %v3469, 16
      %v3549 = vrot.slane %v3547, 7
      %v3550 = vshll.u32 %v3469, 16
      %v3552 = vor.u32 %v3549, %v3550
      %v3553 = vsel %vm1913, %v3545, %v3552
      %v3554 = vrot.slane %v3549, 4
      %v3556 = vshrl.u32 %v3470, 16
      %v3558 = vrot.slane %v3556, 7
      %v3559 = vshll.u32 %v3470, 16
      %v3561 = vor.u32 %v3558, %v3559
      %v3562 = vsel %vm1913, %v3554, %v3561
      %v3563 = vrot.slane %v3558, 4
      %v3565 = vshrl.u32 %v3471, 16
      %v3567 = vrot.slane %v3565, 7
      %v3568 = vshll.u32 %v3471, 16
      %v3570 = vor.u32 %v3567, %v3568
      %v3571 = vsel %vm1913, %v3563, %v3570
      %v3572 = vrot.slane %v3567, 4
      %v3574 = vshrl.u32 %v3472, 16
      %v3576 = vrot.slane %v3574, 7
      %v3577 = vshll.u32 %v3472, 16
      %v3579 = vor.u32 %v3576, %v3577
      %v3580 = vsel %vm1913, %v3572, %v3579
      %v3581 = vrot.slane %v3576, 4
      %v3583 = vshrl.u32 %v3473, 16
      %v3585 = vrot.slane %v3583, 7
      %v3586 = vshll.u32 %v3473, 16
      %v3588 = vor.u32 %v3585, %v3586
      %v3589 = vsel %vm1913, %v3581, %v3588
      %v3590 = vrot.slane %v3585, 4
      %v3592 = vshrl.u32 %v3474, 16
      %v3594 = vrot.slane %v3592, 7
      %v3595 = vshll.u32 %v3474, 16
      %v3597 = vor.u32 %v3594, %v3595
      %v3598 = vsel %vm1913, %v3590, %v3597
      %v3599 = vrot.slane %v3594, 4
      %v3601 = vshrl.u32 %v3475, 16
      %v3603 = vrot.slane %v3601, 7
      %v3604 = vshll.u32 %v3475, 16
      %v3606 = vor.u32 %v3603, %v3604
      %v3607 = vsel %vm1913, %v3599, %v3606
      %v3608 = vrot.slane %v3603, 4
      %v3610 = vshrl.u32 %v3476, 16
      %v3612 = vrot.slane %v3610, 7
      %v3613 = vshll.u32 %v3476, 16
      %v3615 = vor.u32 %v3612, %v3613
      %v3616 = vsel %vm1913, %v3608, %v3615
      %v3617 = vrot.slane %v3612, 4
      %v3619 = vshrl.u32 %v3477, 16
      %v3621 = vrot.slane %v3619, 7
      %v3622 = vshll.u32 %v3477, 16
      %v3624 = vor.u32 %v3621, %v3622
      %v3625 = vsel %vm1913, %v3617, %v3624
      %v3626 = vrot.slane %v3621, 4
      %v3628 = vshrl.u32 %v3478, 16
      %v3630 = vrot.slane %v3628, 7
      %v3631 = vshll.u32 %v3478, 16
      %v3633 = vor.u32 %v3630, %v3631
      %v3634 = vsel %vm1913, %v3626, %v3633
      %v3635 = vrot.slane %v3630, 4
      %v3637 = vshrl.u32 %v3479, 16
      %v3639 = vrot.slane %v3637, 7
      %v3640 = vshll.u32 %v3479, 16
      %v3642 = vor.u32 %v3639, %v3640
      %v3643 = vsel %vm1913, %v3635, %v3642
      %v3644 = vrot.slane %v3639, 4
      %v3646 = vshrl.u32 %v3480, 16
      %v3648 = vrot.slane %v3646, 7
      %v3649 = vshll.u32 %v3480, 16
      %v3651 = vor.u32 %v3648, %v3649
      %v3652 = vsel %vm1913, %v3644, %v3651
      %v3653 = vrot.slane %v3648, 4
      %v3655 = vshrl.u32 %v3481, 16
      %v3657 = vrot.slane %v3655, 7
      %v3658 = vshll.u32 %v3481, 16
      %v3660 = vor.u32 %v3657, %v3658
      %v3661 = vsel %vm1913, %v3653, %v3660
      %v3662 = vrot.slane %v3657, 4
      %v3664 = vshrl.u32 %v3482, 16
      %v3666 = vrot.slane %v3664, 7
      %v3667 = vshll.u32 %v3482, 16
      %v3669 = vor.u32 %v3666, %v3667
      %v3670 = vsel %vm1913, %v3662, %v3669
      %v3671 = vrot.slane %v3666, 4
      %v3673 = vshrl.u32 %v3483, 16
      %v3675 = vrot.slane %v3673, 7
      %v3676 = vshll.u32 %v3483, 16
      %v3678 = vor.u32 %v3675, %v3676
      %v3679 = vsel %vm1913, %v3671, %v3678
      %v3680 = vrot.slane %v3675, 4
      %v3682 = vshrl.u32 %v3484, 16
      %v3684 = vrot.slane %v3682, 7
      %v3685 = vshll.u32 %v3484, 16
      %v3687 = vor.u32 %v3684, %v3685
      %v3688 = vsel %vm1913, %v3680, %v3687
      %v3689 = vrot.slane %v3684, 4
      %v3691 = vshrl.u32 %v3485, 16
      %v3693 = vrot.slane %v3691, 7
      %v3694 = vshll.u32 %v3485, 16
      %v3696 = vor.u32 %v3693, %v3694
      %v3697 = vsel %vm1913, %v3689, %v3696
      %v3698 = vrot.slane %v3693, 4
      %v3700 = vshrl.u32 %v3486, 16
      %v3702 = vrot.slane %v3700, 7
      %v3703 = vshll.u32 %v3486, 16
      %v3705 = vor.u32 %v3702, %v3703
      %v3706 = vsel %vm1913, %v3698, %v3705
      %v3707 = vrot.slane %v3702, 4
      %v3709 = vshrl.u32 %v3487, 16
      %v3711 = vrot.slane %v3709, 7
      %v3712 = vshll.u32 %v3487, 16
      %v3714 = vor.u32 %v3711, %v3712
      %v3715 = vsel %vm1913, %v3707, %v3714
      %v3716 = vrot.slane %v3711, 4
      %v3718 = vshrl.u32 %v3488, 16
      %v3720 = vrot.slane %v3718, 7
      %v3721 = vshll.u32 %v3488, 16
      %v3723 = vor.u32 %v3720, %v3721
      %v3724 = vsel %vm1913, %v3716, %v3723
      %v3725 = vrot.slane %v3720, 4
      %v3727 = vshrl.u32 %v3489, 16
      %v3729 = vrot.slane %v3727, 7
      %v3730 = vshll.u32 %v3489, 16
      %v3732 = vor.u32 %v3729, %v3730
      %v3733 = vsel %vm1913, %v3725, %v3732
      %v3734 = vrot.slane %v3729, 4
      %v3736 = vshrl.u32 %v3490, 16
      %v3738 = vrot.slane %v3736, 7
      %v3739 = vshll.u32 %v3490, 16
      %v3741 = vor.u32 %v3738, %v3739
      %v3742 = vsel %vm1913, %v3734, %v3741
      %v3743 = vrot.slane %v3738, 4
      %v3745 = vshrl.u32 %v3491, 16
      %v3747 = vrot.slane %v3745, 7
      %v3748 = vshll.u32 %v3491, 16
      %v3750 = vor.u32 %v3747, %v3748
      %v3751 = vsel %vm1913, %v3743, %v3750
      %v3752 = vrot.slane %v3747, 4
      %v3754 = vshrl.u32 %v3492, 16
      %v3756 = vrot.slane %v3754, 7
      %v3757 = vshll.u32 %v3492, 16
      %v3759 = vor.u32 %v3756, %v3757
      %v3760 = vsel %vm1913, %v3752, %v3759
      %v3761 = vrot.slane %v3756, 4
      %v3763 = vshrl.u32 %v3493, 16
      %v3765 = vrot.slane %v3763, 7
      %v3766 = vshll.u32 %v3493, 16
      %v3768 = vor.u32 %v3765, %v3766
      %v3769 = vsel %vm1913, %v3761, %v3768
      %v3770 = vrot.slane %v3765, 4
      %v3772 = vshrl.u32 %v3494, 16
      %v3774 = vrot.slane %v3772, 7
      %v3775 = vshll.u32 %v3494, 16
      %v3777 = vor.u32 %v3774, %v3775
      %v3778 = vsel %vm1913, %v3770, %v3777
      %v3779 = vrot.slane %v3774, 4
      %v3781 = vshrl.u32 %v3495, 16
      %v3783 = vrot.slane %v3781, 7
      %v3784 = vshll.u32 %v3495, 16
      %v3786 = vor.u32 %v3783, %v3784
      %v3787 = vsel %vm1913, %v3779, %v3786
      %3788 = vrot.lane.b32.xlu0 %v3508, 12
      %v3789 = vpop.permute.xlu0 %3788
      %3790 = vrot.lane.b32.xlu0 %v3517, 12
      %v3791 = vpop.permute.xlu0 %3790
      %3792 = vrot.lane.b32.xlu0 %v3526, 12
      %v3793 = vpop.permute.xlu0 %3792
      %3794 = vrot.lane.b32.xlu0 %v3535, 12
      %v3795 = vpop.permute.xlu0 %3794
      %3796 = vrot.lane.b32.xlu0 %v3544, 12
      %v3797 = vpop.permute.xlu0 %3796
      %3798 = vrot.lane.b32.xlu0 %v3553, 12
      %v3799 = vpop.permute.xlu0 %3798
      %3800 = vrot.lane.b32.xlu0 %v3562, 12
      %v3801 = vpop.permute.xlu0 %3800
      %3802 = vrot.lane.b32.xlu0 %v3571, 12
      %v3803 = vpop.permute.xlu0 %3802
      %3804 = vrot.lane.b32.xlu0 %v3580, 12
      %v3805 = vpop.permute.xlu0 %3804
      %3806 = vrot.lane.b32.xlu0 %v3589, 12
      %v3807 = vpop.permute.xlu0 %3806
      %3808 = vrot.lane.b32.xlu0 %v3598, 12
      %v3809 = vpop.permute.xlu0 %3808
      %3810 = vrot.lane.b32.xlu0 %v3607, 12
      %v3811 = vpop.permute.xlu0 %3810
      %3812 = vrot.lane.b32.xlu0 %v3616, 12
      %v3813 = vpop.permute.xlu0 %3812
      %3814 = vrot.lane.b32.xlu0 %v3625, 12
      %v3815 = vpop.permute.xlu0 %3814
      %3816 = vrot.lane.b32.xlu0 %v3634, 12
      %v3817 = vpop.permute.xlu0 %3816
      %3818 = vrot.lane.b32.xlu0 %v3643, 12
      %v3819 = vpop.permute.xlu0 %3818
      %3820 = vrot.lane.b32.xlu0 %v3652, 12
      %v3821 = vpop.permute.xlu0 %3820
      %3822 = vrot.lane.b32.xlu0 %v3661, 12
      %v3823 = vpop.permute.xlu0 %3822
      %3824 = vrot.lane.b32.xlu0 %v3670, 12
      %v3825 = vpop.permute.xlu0 %3824
      %3826 = vrot.lane.b32.xlu0 %v3679, 12
      %v3827 = vpop.permute.xlu0 %3826
      %3828 = vrot.lane.b32.xlu0 %v3688, 12
      %v3829 = vpop.permute.xlu0 %3828
      %3830 = vrot.lane.b32.xlu0 %v3697, 12
      %v3831 = vpop.permute.xlu0 %3830
      %3832 = vrot.lane.b32.xlu0 %v3706, 12
      %v3833 = vpop.permute.xlu0 %3832
      %3834 = vrot.lane.b32.xlu0 %v3715, 12
      %v3835 = vpop.permute.xlu0 %3834
      %3836 = vrot.lane.b32.xlu0 %v3724, 12
      %v3837 = vpop.permute.xlu0 %3836
      %3838 = vrot.lane.b32.xlu0 %v3733, 12
      %v3839 = vpop.permute.xlu0 %3838
      %3840 = vrot.lane.b32.xlu0 %v3742, 12
      %v3841 = vpop.permute.xlu0 %3840
      %3842 = vrot.lane.b32.xlu0 %v3751, 12
      %v3843 = vpop.permute.xlu0 %3842
      %3844 = vrot.lane.b32.xlu0 %v3760, 12
      %v3845 = vpop.permute.xlu0 %3844
      %3846 = vrot.lane.b32.xlu0 %v3769, 12
      %v3847 = vpop.permute.xlu0 %3846
      %3848 = vrot.lane.b32.xlu0 %v3778, 12
      %v3849 = vpop.permute.xlu0 %3848
      %3850 = vrot.lane.b32.xlu0 %v3787, 12
      %v3851 = vpop.permute.xlu0 %3850
      %vm3884 = vcmask 126048
      %3885 = vst.msk [vmem:[#allocation3] sm:$0xf] %vm3884, %v3789
      %3886 = vst.msk [vmem:[#allocation3 + $0x4] sm:$0xf] %vm3884, %v3791
      %3887 = vst.msk [vmem:[#allocation3 + $0x8] sm:$0xf] %vm3884, %v3793
      %3888 = vst.msk [vmem:[#allocation3 + $0xc] sm:$0xf] %vm3884, %v3795
      %3889 = vst.msk [vmem:[#allocation3 + $0x10] sm:$0xf] %vm3884, %v3797
      %3890 = vst.msk [vmem:[#allocation3 + $0x14] sm:$0xf] %vm3884, %v3799
      %3891 = vst.msk [vmem:[#allocation3 + $0x18] sm:$0xf] %vm3884, %v3801
      %3892 = vst.msk [vmem:[#allocation3 + $0x1c] sm:$0xf] %vm3884, %v3803
      %3893 = vst.msk [vmem:[#allocation3 + $0x20] sm:$0xf] %vm3884, %v3805
      %3894 = vst.msk [vmem:[#allocation3 + $0x24] sm:$0xf] %vm3884, %v3807
      %3895 = vst.msk [vmem:[#allocation3 + $0x28] sm:$0xf] %vm3884, %v3809
      %3896 = vst.msk [vmem:[#allocation3 + $0x2c] sm:$0xf] %vm3884, %v3811
      %3897 = vst.msk [vmem:[#allocation3 + $0x30] sm:$0xf] %vm3884, %v3813
      %3898 = vst.msk [vmem:[#allocation3 + $0x34] sm:$0xf] %vm3884, %v3815
      %3899 = vst.msk [vmem:[#allocation3 + $0x38] sm:$0xf] %vm3884, %v3817
      %3900 = vst.msk [vmem:[#allocation3 + $0x3c] sm:$0xf] %vm3884, %v3819
      %3901 = vst.msk [vmem:[#allocation3 + $0x40] sm:$0xf] %vm3884, %v3821
      %3902 = vst.msk [vmem:[#allocation3 + $0x44] sm:$0xf] %vm3884, %v3823
      %3903 = vst.msk [vmem:[#allocation3 + $0x48] sm:$0xf] %vm3884, %v3825
      %3904 = vst.msk [vmem:[#allocation3 + $0x4c] sm:$0xf] %vm3884, %v3827
      %3905 = vst.msk [vmem:[#allocation3 + $0x50] sm:$0xf] %vm3884, %v3829
      %3906 = vst.msk [vmem:[#allocation3 + $0x54] sm:$0xf] %vm3884, %v3831
      %3907 = vst.msk [vmem:[#allocation3 + $0x58] sm:$0xf] %vm3884, %v3833
      %3908 = vst.msk [vmem:[#allocation3 + $0x5c] sm:$0xf] %vm3884, %v3835
      %3909 = vst.msk [vmem:[#allocation3 + $0x60] sm:$0xf] %vm3884, %v3837
      %3910 = vst.msk [vmem:[#allocation3 + $0x64] sm:$0xf] %vm3884, %v3839
      %3911 = vst.msk [vmem:[#allocation3 + $0x68] sm:$0xf] %vm3884, %v3841
      %3912 = vst.msk [vmem:[#allocation3 + $0x6c] sm:$0xf] %vm3884, %v3843
      %3913 = vst.msk [vmem:[#allocation3 + $0x70] sm:$0xf] %vm3884, %v3845
      %3914 = vst.msk [vmem:[#allocation3 + $0x74] sm:$0xf] %vm3884, %v3847
      %3915 = vst.msk [vmem:[#allocation3 + $0x78] sm:$0xf] %vm3884, %v3849
      %3916 = vst.msk [vmem:[#allocation3 + $0x7c] sm:$0xf] %vm3884, %v3851
      %v3917 = vld [vmem:[#allocation2 + $0x10] sm:$0xf]
      %v3918 = vld [vmem:[#allocation2 + $0x14] sm:$0xf]
      %v3919 = vld [vmem:[#allocation2 + $0x18] sm:$0xf]
      %v3920 = vld [vmem:[#allocation2 + $0x1c] sm:$0xf]
      %v3921 = vld [vmem:[#allocation2 + $0x20] sm:$0xf]
      %v3922 = vld [vmem:[#allocation2 + $0x24] sm:$0xf]
      %v3923 = vld [vmem:[#allocation2 + $0x28] sm:$0xf]
      %v3924 = vld [vmem:[#allocation2 + $0x2c] sm:$0xf]
      %v3925 = vld [vmem:[#allocation2 + $0x30] sm:$0xf]
      %v3926 = vld [vmem:[#allocation2 + $0x34] sm:$0xf]
      %v3927 = vld [vmem:[#allocation2 + $0x38] sm:$0xf]
      %v3928 = vld [vmem:[#allocation2 + $0x3c] sm:$0xf]
      %v3929 = vld [vmem:[#allocation2 + $0x40] sm:$0xf]
      %v3930 = vld [vmem:[#allocation2 + $0x44] sm:$0xf]
      %v3931 = vld [vmem:[#allocation2 + $0x48] sm:$0xf]
      %v3932 = vld [vmem:[#allocation2 + $0x4c] sm:$0xf]
      %v3933 = vld [vmem:[#allocation2 + $0x50] sm:$0xf]
      %v3934 = vld [vmem:[#allocation2 + $0x54] sm:$0xf]
      %v3935 = vld [vmem:[#allocation2 + $0x58] sm:$0xf]
      %v3936 = vld [vmem:[#allocation2 + $0x5c] sm:$0xf]
      %v3937 = vld [vmem:[#allocation2 + $0x60] sm:$0xf]
      %v3938 = vld [vmem:[#allocation2 + $0x64] sm:$0xf]
      %v3939 = vld [vmem:[#allocation2 + $0x68] sm:$0xf]
      %v3940 = vld [vmem:[#allocation2 + $0x6c] sm:$0xf]
      %v3941 = vld [vmem:[#allocation2 + $0x70] sm:$0xf]
      %v3942 = vld [vmem:[#allocation2 + $0x74] sm:$0xf]
      %v3943 = vld [vmem:[#allocation2 + $0x78] sm:$0xf]
      %v3944 = vld [vmem:[#allocation2 + $0x7c] sm:$0xf]
      %v3945 = vld [vmem:[#allocation2 + $0x80] sm:$0xf]
      %v3946 = vld [vmem:[#allocation2 + $0x84] sm:$0xf]
      %v3947 = vld [vmem:[#allocation2 + $0x88] sm:$0xf]
      %v3948 = vld [vmem:[#allocation2 + $0x8c] sm:$0xf]
      %3981 = vrot.lane.b32.xlu0 %v3917, 16
      %v3982 = vpop.permute.xlu0 %3981
      %3983 = vrot.lane.b32.xlu0 %v3918, 16
      %v3984 = vpop.permute.xlu0 %3983
      %3985 = vrot.lane.b32.xlu0 %v3919, 16
      %v3986 = vpop.permute.xlu0 %3985
      %3987 = vrot.lane.b32.xlu0 %v3920, 16
      %v3988 = vpop.permute.xlu0 %3987
      %3989 = vrot.lane.b32.xlu0 %v3921, 16
      %v3990 = vpop.permute.xlu0 %3989
      %3991 = vrot.lane.b32.xlu0 %v3922, 16
      %v3992 = vpop.permute.xlu0 %3991
      %3993 = vrot.lane.b32.xlu0 %v3923, 16
      %v3994 = vpop.permute.xlu0 %3993
      %3995 = vrot.lane.b32.xlu0 %v3924, 16
      %v3996 = vpop.permute.xlu0 %3995
      %3997 = vrot.lane.b32.xlu0 %v3925, 16
      %v3998 = vpop.permute.xlu0 %3997
      %3999 = vrot.lane.b32.xlu0 %v3926, 16
      %v4000 = vpop.permute.xlu0 %3999
      %4001 = vrot.lane.b32.xlu0 %v3927, 16
      %v4002 = vpop.permute.xlu0 %4001
      %4003 = vrot.lane.b32.xlu0 %v3928, 16
      %v4004 = vpop.permute.xlu0 %4003
      %4005 = vrot.lane.b32.xlu0 %v3929, 16
      %v4006 = vpop.permute.xlu0 %4005
      %4007 = vrot.lane.b32.xlu0 %v3930, 16
      %v4008 = vpop.permute.xlu0 %4007
      %4009 = vrot.lane.b32.xlu0 %v3931, 16
      %v4010 = vpop.permute.xlu0 %4009
      %4011 = vrot.lane.b32.xlu0 %v3932, 16
      %v4012 = vpop.permute.xlu0 %4011
      %4013 = vrot.lane.b32.xlu0 %v3933, 16
      %v4014 = vpop.permute.xlu0 %4013
      %4015 = vrot.lane.b32.xlu0 %v3934, 16
      %v4016 = vpop.permute.xlu0 %4015
      %4017 = vrot.lane.b32.xlu0 %v3935, 16
      %v4018 = vpop.permute.xlu0 %4017
      %4019 = vrot.lane.b32.xlu0 %v3936, 16
      %v4020 = vpop.permute.xlu0 %4019
      %4021 = vrot.lane.b32.xlu0 %v3937, 16
      %v4022 = vpop.permute.xlu0 %4021
      %4023 = vrot.lane.b32.xlu0 %v3938, 16
      %v4024 = vpop.permute.xlu0 %4023
      %4025 = vrot.lane.b32.xlu0 %v3939, 16
      %v4026 = vpop.permute.xlu0 %4025
      %4027 = vrot.lane.b32.xlu0 %v3940, 16
      %v4028 = vpop.permute.xlu0 %4027
      %4029 = vrot.lane.b32.xlu0 %v3941, 16
      %v4030 = vpop.permute.xlu0 %4029
      %4031 = vrot.lane.b32.xlu0 %v3942, 16
      %v4032 = vpop.permute.xlu0 %4031
      %4033 = vrot.lane.b32.xlu0 %v3943, 16
      %v4034 = vpop.permute.xlu0 %4033
      %4035 = vrot.lane.b32.xlu0 %v3944, 16
      %v4036 = vpop.permute.xlu0 %4035
      %4037 = vrot.lane.b32.xlu0 %v3945, 16
      %v4038 = vpop.permute.xlu0 %4037
      %4039 = vrot.lane.b32.xlu0 %v3946, 16
      %v4040 = vpop.permute.xlu0 %4039
      %4041 = vrot.lane.b32.xlu0 %v3947, 16
      %v4042 = vpop.permute.xlu0 %4041
      %4043 = vrot.lane.b32.xlu0 %v3948, 16
      %v4044 = vpop.permute.xlu0 %4043
      %vm4077 = vcmask 158848
      %4078 = vst.msk [vmem:[#allocation3] sm:$0xf] %vm4077, %v3982
      %4079 = vst.msk [vmem:[#allocation3 + $0x4] sm:$0xf] %vm4077, %v3984
      %4080 = vst.msk [vmem:[#allocation3 + $0x8] sm:$0xf] %vm4077, %v3986
      %4081 = vst.msk [vmem:[#allocation3 + $0xc] sm:$0xf] %vm4077, %v3988
      %4082 = vst.msk [vmem:[#allocation3 + $0x10] sm:$0xf] %vm4077, %v3990
      %4083 = vst.msk [vmem:[#allocation3 + $0x14] sm:$0xf] %vm4077, %v3992
      %4084 = vst.msk [vmem:[#allocation3 + $0x18] sm:$0xf] %vm4077, %v3994
      %4085 = vst.msk [vmem:[#allocation3 + $0x1c] sm:$0xf] %vm4077, %v3996
      %4086 = vst.msk [vmem:[#allocation3 + $0x20] sm:$0xf] %vm4077, %v3998
      %4087 = vst.msk [vmem:[#allocation3 + $0x24] sm:$0xf] %vm4077, %v4000
      %4088 = vst.msk [vmem:[#allocation3 + $0x28] sm:$0xf] %vm4077, %v4002
      %4089 = vst.msk [vmem:[#allocation3 + $0x2c] sm:$0xf] %vm4077, %v4004
      %4090 = vst.msk [vmem:[#allocation3 + $0x30] sm:$0xf] %vm4077, %v4006
      %4091 = vst.msk [vmem:[#allocation3 + $0x34] sm:$0xf] %vm4077, %v4008
      %4092 = vst.msk [vmem:[#allocation3 + $0x38] sm:$0xf] %vm4077, %v4010
      %4093 = vst.msk [vmem:[#allocation3 + $0x3c] sm:$0xf] %vm4077, %v4012
      %4094 = vst.msk [vmem:[#allocation3 + $0x40] sm:$0xf] %vm4077, %v4014
      %4095 = vst.msk [vmem:[#allocation3 + $0x44] sm:$0xf] %vm4077, %v4016
      %4096 = vst.msk [vmem:[#allocation3 + $0x48] sm:$0xf] %vm4077, %v4018
      %4097 = vst.msk [vmem:[#allocation3 + $0x4c] sm:$0xf] %vm4077, %v4020
      %4098 = vst.msk [vmem:[#allocation3 + $0x50] sm:$0xf] %vm4077, %v4022
      %4099 = vst.msk [vmem:[#allocation3 + $0x54] sm:$0xf] %vm4077, %v4024
      %4100 = vst.msk [vmem:[#allocation3 + $0x58] sm:$0xf] %vm4077, %v4026
      %4101 = vst.msk [vmem:[#allocation3 + $0x5c] sm:$0xf] %vm4077, %v4028
      %4102 = vst.msk [vmem:[#allocation3 + $0x60] sm:$0xf] %vm4077, %v4030
      %4103 = vst.msk [vmem:[#allocation3 + $0x64] sm:$0xf] %vm4077, %v4032
      %4104 = vst.msk [vmem:[#allocation3 + $0x68] sm:$0xf] %vm4077, %v4034
      %4105 = vst.msk [vmem:[#allocation3 + $0x6c] sm:$0xf] %vm4077, %v4036
      %4106 = vst.msk [vmem:[#allocation3 + $0x70] sm:$0xf] %vm4077, %v4038
      %4107 = vst.msk [vmem:[#allocation3 + $0x74] sm:$0xf] %vm4077, %v4040
      %4108 = vst.msk [vmem:[#allocation3 + $0x78] sm:$0xf] %vm4077, %v4042
      %4109 = vst.msk [vmem:[#allocation3 + $0x7c] sm:$0xf] %vm4077, %v4044
      %v4110 = vld [vmem:[#allocation2 + $0x10] sm:$0xf]
      %v4111 = vld [vmem:[#allocation2 + $0x14] sm:$0xf]
      %v4112 = vld [vmem:[#allocation2 + $0x18] sm:$0xf]
      %v4113 = vld [vmem:[#allocation2 + $0x1c] sm:$0xf]
      %v4114 = vld [vmem:[#allocation2 + $0x20] sm:$0xf]
      %v4115 = vld [vmem:[#allocation2 + $0x24] sm:$0xf]
      %v4116 = vld [vmem:[#allocation2 + $0x28] sm:$0xf]
      %v4117 = vld [vmem:[#allocation2 + $0x2c] sm:$0xf]
      %v4118 = vld [vmem:[#allocation2 + $0x30] sm:$0xf]
      %v4119 = vld [vmem:[#allocation2 + $0x34] sm:$0xf]
      %v4120 = vld [vmem:[#allocation2 + $0x38] sm:$0xf]
      %v4121 = vld [vmem:[#allocation2 + $0x3c] sm:$0xf]
      %v4122 = vld [vmem:[#allocation2 + $0x40] sm:$0xf]
      %v4123 = vld [vmem:[#allocation2 + $0x44] sm:$0xf]
      %v4124 = vld [vmem:[#allocation2 + $0x48] sm:$0xf]
      %v4125 = vld [vmem:[#allocation2 + $0x4c] sm:$0xf]
      %v4126 = vld [vmem:[#allocation2 + $0x50] sm:$0xf]
      %v4127 = vld [vmem:[#allocation2 + $0x54] sm:$0xf]
      %v4128 = vld [vmem:[#allocation2 + $0x58] sm:$0xf]
      %v4129 = vld [vmem:[#allocation2 + $0x5c] sm:$0xf]
      %v4130 = vld [vmem:[#allocation2 + $0x60] sm:$0xf]
      %v4131 = vld [vmem:[#allocation2 + $0x64] sm:$0xf]
      %v4132 = vld [vmem:[#allocation2 + $0x68] sm:$0xf]
      %v4133 = vld [vmem:[#allocation2 + $0x6c] sm:$0xf]
      %v4134 = vld [vmem:[#allocation2 + $0x70] sm:$0xf]
      %v4135 = vld [vmem:[#allocation2 + $0x74] sm:$0xf]
      %v4136 = vld [vmem:[#allocation2 + $0x78] sm:$0xf]
      %v4137 = vld [vmem:[#allocation2 + $0x7c] sm:$0xf]
      %v4138 = vld [vmem:[#allocation2 + $0x80] sm:$0xf]
      %v4139 = vld [vmem:[#allocation2 + $0x84] sm:$0xf]
      %v4140 = vld [vmem:[#allocation2 + $0x88] sm:$0xf]
      %v4141 = vld [vmem:[#allocation2 + $0x8c] sm:$0xf]
      %v4142 = vld [vmem:[#allocation2 + $0x90] sm:$0x1]
      %v4143 = vsel %vm2911, %v4110, 0
      %v4144 = vsel %vm2912, %v4111, 0
      %v4145 = vsel %vm2913, %v4112, 0
      %v4146 = vsel %vm2914, %v4113, 0
      %v4147 = vsel %vm2915, %v4114, 0
      %v4148 = vsel %vm2916, %v4115, 0
      %v4149 = vsel %vm2917, %v4116, 0
      %v4150 = vsel %vm2918, %v4117, 0
      %v4151 = vsel %vm2919, %v4118, 0
      %v4152 = vsel %vm2920, %v4119, 0
      %v4153 = vsel %vm2921, %v4120, 0
      %v4154 = vsel %vm2922, %v4121, 0
      %v4155 = vsel %vm2923, %v4122, 0
      %v4156 = vsel %vm2924, %v4123, 0
      %v4157 = vsel %vm2925, %v4124, 0
      %v4158 = vsel %vm2926, %v4125, 0
      %v4159 = vsel %vm2927, %v4126, 0
      %v4160 = vsel %vm2928, %v4127, 0
      %v4161 = vsel %vm2929, %v4128, 0
      %v4162 = vsel %vm2930, %v4129, 0
      %v4163 = vsel %vm2931, %v4130, 0
      %v4164 = vsel %vm2932, %v4131, 0
      %v4165 = vsel %vm2933, %v4132, 0
      %v4166 = vsel %vm2934, %v4133, 0
      %v4167 = vsel %vm2935, %v4134, 0
      %v4168 = vsel %vm2936, %v4135, 0
      %v4169 = vsel %vm2937, %v4136, 0
      %v4170 = vsel %vm2938, %v4137, 0
      %v4171 = vsel %vm2939, %v4138, 0
      %v4172 = vsel %vm2940, %v4139, 0
      %v4173 = vsel %vm2941, %v4140, 0
      %v4174 = vsel %vm2942, %v4141, 0
      %v4175 = vsel %vm2943, %v4142, 0
      %v4177 = vshrl.u32 %v4143, 16
      %v4179 = vrot.slane %v4177, 4
      %v4180 = vshll.u32 %v4143, 16
      %v4182 = vrot.slane %v4180, 5
      %v4183 = vor.u32 %v4179, %v4182
      %v4184 = vrot.slane %v4183, 4
      %v4186 = vshll.u32 %v4144, 16
      %v4188 = vrot.slane %v4186, 5
      %v4189 = vsel %vm1525, %v4184, %v4188
      %v4190 = vshrl.u32 %v4144, 16
      %v4192 = vrot.slane %v4190, 4
      %v4193 = vor.u32 %v4192, %v4188
      %v4194 = vrot.slane %v4193, 4
      %v4196 = vshll.u32 %v4145, 16
      %v4198 = vrot.slane %v4196, 5
      %v4199 = vsel %vm1525, %v4194, %v4198
      %v4200 = vshrl.u32 %v4145, 16
      %v4202 = vrot.slane %v4200, 4
      %v4203 = vor.u32 %v4202, %v4198
      %v4204 = vrot.slane %v4203, 4
      %v4206 = vshll.u32 %v4146, 16
      %v4208 = vrot.slane %v4206, 5
      %v4209 = vsel %vm1525, %v4204, %v4208
      %v4210 = vshrl.u32 %v4146, 16
      %v4212 = vrot.slane %v4210, 4
      %v4213 = vor.u32 %v4212, %v4208
      %v4214 = vrot.slane %v4213, 4
      %v4216 = vshll.u32 %v4147, 16
      %v4218 = vrot.slane %v4216, 5
      %v4219 = vsel %vm1525, %v4214, %v4218
      %v4220 = vshrl.u32 %v4147, 16
      %v4222 = vrot.slane %v4220, 4
      %v4223 = vor.u32 %v4222, %v4218
      %v4224 = vrot.slane %v4223, 4
      %v4226 = vshll.u32 %v4148, 16
      %v4228 = vrot.slane %v4226, 5
      %v4229 = vsel %vm1525, %v4224, %v4228
      %v4230 = vshrl.u32 %v4148, 16
      %v4232 = vrot.slane %v4230, 4
      %v4233 = vor.u32 %v4232, %v4228
      %v4234 = vrot.slane %v4233, 4
      %v4236 = vshll.u32 %v4149, 16
      %v4238 = vrot.slane %v4236, 5
      %v4239 = vsel %vm1525, %v4234, %v4238
      %v4240 = vshrl.u32 %v4149, 16
      %v4242 = vrot.slane %v4240, 4
      %v4243 = vor.u32 %v4242, %v4238
      %v4244 = vrot.slane %v4243, 4
      %v4246 = vshll.u32 %v4150, 16
      %v4248 = vrot.slane %v4246, 5
      %v4249 = vsel %vm1525, %v4244, %v4248
      %v4250 = vshrl.u32 %v4150, 16
      %v4252 = vrot.slane %v4250, 4
      %v4253 = vor.u32 %v4252, %v4248
      %v4254 = vrot.slane %v4253, 4
      %v4256 = vshll.u32 %v4151, 16
      %v4258 = vrot.slane %v4256, 5
      %v4259 = vsel %vm1525, %v4254, %v4258
      %v4260 = vshrl.u32 %v4151, 16
      %v4262 = vrot.slane %v4260, 4
      %v4263 = vor.u32 %v4262, %v4258
      %v4264 = vrot.slane %v4263, 4
      %v4266 = vshll.u32 %v4152, 16
      %v4268 = vrot.slane %v4266, 5
      %v4269 = vsel %vm1525, %v4264, %v4268
      %v4270 = vshrl.u32 %v4152, 16
      %v4272 = vrot.slane %v4270, 4
      %v4273 = vor.u32 %v4272, %v4268
      %v4274 = vrot.slane %v4273, 4
      %v4276 = vshll.u32 %v4153, 16
      %v4278 = vrot.slane %v4276, 5
      %v4279 = vsel %vm1525, %v4274, %v4278
      %v4280 = vshrl.u32 %v4153, 16
      %v4282 = vrot.slane %v4280, 4
      %v4283 = vor.u32 %v4282, %v4278
      %v4284 = vrot.slane %v4283, 4
      %v4286 = vshll.u32 %v4154, 16
      %v4288 = vrot.slane %v4286, 5
      %v4289 = vsel %vm1525, %v4284, %v4288
      %v4290 = vshrl.u32 %v4154, 16
      %v4292 = vrot.slane %v4290, 4
      %v4293 = vor.u32 %v4292, %v4288
      %v4294 = vrot.slane %v4293, 4
      %v4296 = vshll.u32 %v4155, 16
      %v4298 = vrot.slane %v4296, 5
      %v4299 = vsel %vm1525, %v4294, %v4298
      %v4300 = vshrl.u32 %v4155, 16
      %v4302 = vrot.slane %v4300, 4
      %v4303 = vor.u32 %v4302, %v4298
      %v4304 = vrot.slane %v4303, 4
      %v4306 = vshll.u32 %v4156, 16
      %v4308 = vrot.slane %v4306, 5
      %v4309 = vsel %vm1525, %v4304, %v4308
      %v4310 = vshrl.u32 %v4156, 16
      %v4312 = vrot.slane %v4310, 4
      %v4313 = vor.u32 %v4312, %v4308
      %v4314 = vrot.slane %v4313, 4
      %v4316 = vshll.u32 %v4157, 16
      %v4318 = vrot.slane %v4316, 5
      %v4319 = vsel %vm1525, %v4314, %v4318
      %v4320 = vshrl.u32 %v4157, 16
      %v4322 = vrot.slane %v4320, 4
      %v4323 = vor.u32 %v4322, %v4318
      %v4324 = vrot.slane %v4323, 4
      %v4326 = vshll.u32 %v4158, 16
      %v4328 = vrot.slane %v4326, 5
      %v4329 = vsel %vm1525, %v4324, %v4328
      %v4330 = vshrl.u32 %v4158, 16
      %v4332 = vrot.slane %v4330, 4
      %v4333 = vor.u32 %v4332, %v4328
      %v4334 = vrot.slane %v4333, 4
      %v4336 = vshll.u32 %v4159, 16
      %v4338 = vrot.slane %v4336, 5
      %v4339 = vsel %vm1525, %v4334, %v4338
      %v4340 = vshrl.u32 %v4159, 16
      %v4342 = vrot.slane %v4340, 4
      %v4343 = vor.u32 %v4342, %v4338
      %v4344 = vrot.slane %v4343, 4
      %v4346 = vshll.u32 %v4160, 16
      %v4348 = vrot.slane %v4346, 5
      %v4349 = vsel %vm1525, %v4344, %v4348
      %v4350 = vshrl.u32 %v4160, 16
      %v4352 = vrot.slane %v4350, 4
      %v4353 = vor.u32 %v4352, %v4348
      %v4354 = vrot.slane %v4353, 4
      %v4356 = vshll.u32 %v4161, 16
      %v4358 = vrot.slane %v4356, 5
      %v4359 = vsel %vm1525, %v4354, %v4358
      %v4360 = vshrl.u32 %v4161, 16
      %v4362 = vrot.slane %v4360, 4
      %v4363 = vor.u32 %v4362, %v4358
      %v4364 = vrot.slane %v4363, 4
      %v4366 = vshll.u32 %v4162, 16
      %v4368 = vrot.slane %v4366, 5
      %v4369 = vsel %vm1525, %v4364, %v4368
      %v4370 = vshrl.u32 %v4162, 16
      %v4372 = vrot.slane %v4370, 4
      %v4373 = vor.u32 %v4372, %v4368
      %v4374 = vrot.slane %v4373, 4
      %v4376 = vshll.u32 %v4163, 16
      %v4378 = vrot.slane %v4376, 5
      %v4379 = vsel %vm1525, %v4374, %v4378
      %v4380 = vshrl.u32 %v4163, 16
      %v4382 = vrot.slane %v4380, 4
      %v4383 = vor.u32 %v4382, %v4378
      %v4384 = vrot.slane %v4383, 4
      %v4386 = vshll.u32 %v4164, 16
      %v4388 = vrot.slane %v4386, 5
      %v4389 = vsel %vm1525, %v4384, %v4388
      %v4390 = vshrl.u32 %v4164, 16
      %v4392 = vrot.slane %v4390, 4
      %v4393 = vor.u32 %v4392, %v4388
      %v4394 = vrot.slane %v4393, 4
      %v4396 = vshll.u32 %v4165, 16
      %v4398 = vrot.slane %v4396, 5
      %v4399 = vsel %vm1525, %v4394, %v4398
      %v4400 = vshrl.u32 %v4165, 16
      %v4402 = vrot.slane %v4400, 4
      %v4403 = vor.u32 %v4402, %v4398
      %v4404 = vrot.slane %v4403, 4
      %v4406 = vshll.u32 %v4166, 16
      %v4408 = vrot.slane %v4406, 5
      %v4409 = vsel %vm1525, %v4404, %v4408
      %v4410 = vshrl.u32 %v4166, 16
      %v4412 = vrot.slane %v4410, 4
      %v4413 = vor.u32 %v4412, %v4408
      %v4414 = vrot.slane %v4413, 4
      %v4416 = vshll.u32 %v4167, 16
      %v4418 = vrot.slane %v4416, 5
      %v4419 = vsel %vm1525, %v4414, %v4418
      %v4420 = vshrl.u32 %v4167, 16
      %v4422 = vrot.slane %v4420, 4
      %v4423 = vor.u32 %v4422, %v4418
      %v4424 = vrot.slane %v4423, 4
      %v4426 = vshll.u32 %v4168, 16
      %v4428 = vrot.slane %v4426, 5
      %v4429 = vsel %vm1525, %v4424, %v4428
      %v4430 = vshrl.u32 %v4168, 16
      %v4432 = vrot.slane %v4430, 4
      %v4433 = vor.u32 %v4432, %v4428
      %v4434 = vrot.slane %v4433, 4
      %v4436 = vshll.u32 %v4169, 16
      %v4438 = vrot.slane %v4436, 5
      %v4439 = vsel %vm1525, %v4434, %v4438
      %v4440 = vshrl.u32 %v4169, 16
      %v4442 = vrot.slane %v4440, 4
      %v4443 = vor.u32 %v4442, %v4438
      %v4444 = vrot.slane %v4443, 4
      %v4446 = vshll.u32 %v4170, 16
      %v4448 = vrot.slane %v4446, 5
      %v4449 = vsel %vm1525, %v4444, %v4448
      %v4450 = vshrl.u32 %v4170, 16
      %v4452 = vrot.slane %v4450, 4
      %v4453 = vor.u32 %v4452, %v4448
      %v4454 = vrot.slane %v4453, 4
      %v4456 = vshll.u32 %v4171, 16
      %v4458 = vrot.slane %v4456, 5
      %v4459 = vsel %vm1525, %v4454, %v4458
      %v4460 = vshrl.u32 %v4171, 16
      %v4462 = vrot.slane %v4460, 4
      %v4463 = vor.u32 %v4462, %v4458
      %v4464 = vrot.slane %v4463, 4
      %v4466 = vshll.u32 %v4172, 16
      %v4468 = vrot.slane %v4466, 5
      %v4469 = vsel %vm1525, %v4464, %v4468
      %v4470 = vshrl.u32 %v4172, 16
      %v4472 = vrot.slane %v4470, 4
      %v4473 = vor.u32 %v4472, %v4468
      %v4474 = vrot.slane %v4473, 4
      %v4476 = vshll.u32 %v4173, 16
      %v4478 = vrot.slane %v4476, 5
      %v4479 = vsel %vm1525, %v4474, %v4478
      %v4480 = vshrl.u32 %v4173, 16
      %v4482 = vrot.slane %v4480, 4
      %v4483 = vor.u32 %v4482, %v4478
      %v4484 = vrot.slane %v4483, 4
      %v4486 = vshll.u32 %v4174, 16
      %v4488 = vrot.slane %v4486, 5
      %v4489 = vsel %vm1525, %v4484, %v4488
      %v4490 = vshrl.u32 %v4174, 16
      %v4492 = vrot.slane %v4490, 4
      %v4493 = vor.u32 %v4492, %v4488
      %v4494 = vrot.slane %v4493, 4
      %v4496 = vshll.u32 %v4175, 16
      %v4498 = vrot.slane %v4496, 5
      %v4499 = vsel %vm1525, %v4494, %v4498
      %4500 = vrot.lane.b32.xlu0 %v4189, 20
      %v4501 = vpop.permute.xlu0 %4500
      %4502 = vrot.lane.b32.xlu0 %v4199, 20
      %v4503 = vpop.permute.xlu0 %4502
      %4504 = vrot.lane.b32.xlu0 %v4209, 20
      %v4505 = vpop.permute.xlu0 %4504
      %4506 = vrot.lane.b32.xlu0 %v4219, 20
      %v4507 = vpop.permute.xlu0 %4506
      %4508 = vrot.lane.b32.xlu0 %v4229, 20
      %v4509 = vpop.permute.xlu0 %4508
      %4510 = vrot.lane.b32.xlu0 %v4239, 20
      %v4511 = vpop.permute.xlu0 %4510
      %4512 = vrot.lane.b32.xlu0 %v4249, 20
      %v4513 = vpop.permute.xlu0 %4512
      %4514 = vrot.lane.b32.xlu0 %v4259, 20
      %v4515 = vpop.permute.xlu0 %4514
      %4516 = vrot.lane.b32.xlu0 %v4269, 20
      %v4517 = vpop.permute.xlu0 %4516
      %4518 = vrot.lane.b32.xlu0 %v4279, 20
      %v4519 = vpop.permute.xlu0 %4518
      %4520 = vrot.lane.b32.xlu0 %v4289, 20
      %v4521 = vpop.permute.xlu0 %4520
      %4522 = vrot.lane.b32.xlu0 %v4299, 20
      %v4523 = vpop.permute.xlu0 %4522
      %4524 = vrot.lane.b32.xlu0 %v4309, 20
      %v4525 = vpop.permute.xlu0 %4524
      %4526 = vrot.lane.b32.xlu0 %v4319, 20
      %v4527 = vpop.permute.xlu0 %4526
      %4528 = vrot.lane.b32.xlu0 %v4329, 20
      %v4529 = vpop.permute.xlu0 %4528
      %4530 = vrot.lane.b32.xlu0 %v4339, 20
      %v4531 = vpop.permute.xlu0 %4530
      %4532 = vrot.lane.b32.xlu0 %v4349, 20
      %v4533 = vpop.permute.xlu0 %4532
      %4534 = vrot.lane.b32.xlu0 %v4359, 20
      %v4535 = vpop.permute.xlu0 %4534
      %4536 = vrot.lane.b32.xlu0 %v4369, 20
      %v4537 = vpop.permute.xlu0 %4536
      %4538 = vrot.lane.b32.xlu0 %v4379, 20
      %v4539 = vpop.permute.xlu0 %4538
      %4540 = vrot.lane.b32.xlu0 %v4389, 20
      %v4541 = vpop.permute.xlu0 %4540
      %4542 = vrot.lane.b32.xlu0 %v4399, 20
      %v4543 = vpop.permute.xlu0 %4542
      %4544 = vrot.lane.b32.xlu0 %v4409, 20
      %v4545 = vpop.permute.xlu0 %4544
      %4546 = vrot.lane.b32.xlu0 %v4419, 20
      %v4547 = vpop.permute.xlu0 %4546
      %4548 = vrot.lane.b32.xlu0 %v4429, 20
      %v4549 = vpop.permute.xlu0 %4548
      %4550 = vrot.lane.b32.xlu0 %v4439, 20
      %v4551 = vpop.permute.xlu0 %4550
      %4552 = vrot.lane.b32.xlu0 %v4449, 20
      %v4553 = vpop.permute.xlu0 %4552
      %4554 = vrot.lane.b32.xlu0 %v4459, 20
      %v4555 = vpop.permute.xlu0 %4554
      %4556 = vrot.lane.b32.xlu0 %v4469, 20
      %v4557 = vpop.permute.xlu0 %4556
      %4558 = vrot.lane.b32.xlu0 %v4479, 20
      %v4559 = vpop.permute.xlu0 %4558
      %4560 = vrot.lane.b32.xlu0 %v4489, 20
      %v4561 = vpop.permute.xlu0 %4560
      %4562 = vrot.lane.b32.xlu0 %v4499, 20
      %v4563 = vpop.permute.xlu0 %4562
      %vm4596 = vcmask 191648
      %4597 = vst.msk [vmem:[#allocation3] sm:$0xf] %vm4596, %v4501
      %4598 = vst.msk [vmem:[#allocation3 + $0x4] sm:$0xf] %vm4596, %v4503
      %4599 = vst.msk [vmem:[#allocation3 + $0x8] sm:$0xf] %vm4596, %v4505
      %4600 = vst.msk [vmem:[#allocation3 + $0xc] sm:$0xf] %vm4596, %v4507
      %4601 = vst.msk [vmem:[#allocation3 + $0x10] sm:$0xf] %vm4596, %v4509
      %4602 = vst.msk [vmem:[#allocation3 + $0x14] sm:$0xf] %vm4596, %v4511
      %4603 = vst.msk [vmem:[#allocation3 + $0x18] sm:$0xf] %vm4596, %v4513
      %4604 = vst.msk [vmem:[#allocation3 + $0x1c] sm:$0xf] %vm4596, %v4515
      %4605 = vst.msk [vmem:[#allocation3 + $0x20] sm:$0xf] %vm4596, %v4517
      %4606 = vst.msk [vmem:[#allocation3 + $0x24] sm:$0xf] %vm4596, %v4519
      %4607 = vst.msk [vmem:[#allocation3 + $0x28] sm:$0xf] %vm4596, %v4521
      %4608 = vst.msk [vmem:[#allocation3 + $0x2c] sm:$0xf] %vm4596, %v4523
      %4609 = vst.msk [vmem:[#allocation3 + $0x30] sm:$0xf] %vm4596, %v4525
      %4610 = vst.msk [vmem:[#allocation3 + $0x34] sm:$0xf] %vm4596, %v4527
      %4611 = vst.msk [vmem:[#allocation3 + $0x38] sm:$0xf] %vm4596, %v4529
      %4612 = vst.msk [vmem:[#allocation3 + $0x3c] sm:$0xf] %vm4596, %v4531
      %4613 = vst.msk [vmem:[#allocation3 + $0x40] sm:$0xf] %vm4596, %v4533
      %4614 = vst.msk [vmem:[#allocation3 + $0x44] sm:$0xf] %vm4596, %v4535
      %4615 = vst.msk [vmem:[#allocation3 + $0x48] sm:$0xf] %vm4596, %v4537
      %4616 = vst.msk [vmem:[#allocation3 + $0x4c] sm:$0xf] %vm4596, %v4539
      %4617 = vst.msk [vmem:[#allocation3 + $0x50] sm:$0xf] %vm4596, %v4541
      %4618 = vst.msk [vmem:[#allocation3 + $0x54] sm:$0xf] %vm4596, %v4543
      %4619 = vst.msk [vmem:[#allocation3 + $0x58] sm:$0xf] %vm4596, %v4545
      %4620 = vst.msk [vmem:[#allocation3 + $0x5c] sm:$0xf] %vm4596, %v4547
      %4621 = vst.msk [vmem:[#allocation3 + $0x60] sm:$0xf] %vm4596, %v4549
      %4622 = vst.msk [vmem:[#allocation3 + $0x64] sm:$0xf] %vm4596, %v4551
      %4623 = vst.msk [vmem:[#allocation3 + $0x68] sm:$0xf] %vm4596, %v4553
      %4624 = vst.msk [vmem:[#allocation3 + $0x6c] sm:$0xf] %vm4596, %v4555
      %4625 = vst.msk [vmem:[#allocation3 + $0x70] sm:$0xf] %vm4596, %v4557
      %4626 = vst.msk [vmem:[#allocation3 + $0x74] sm:$0xf] %vm4596, %v4559
      %4627 = vst.msk [vmem:[#allocation3 + $0x78] sm:$0xf] %vm4596, %v4561
      %4628 = vst.msk [vmem:[#allocation3 + $0x7c] sm:$0xf] %vm4596, %v4563
      %v4629 = vld [vmem:[#allocation2 + $0x14] sm:$0x8]
      %v4630 = vld [vmem:[#allocation2 + $0x18] sm:$0xf]
      %v4631 = vld [vmem:[#allocation2 + $0x1c] sm:$0xf]
      %v4632 = vld [vmem:[#allocation2 + $0x20] sm:$0xf]
      %v4633 = vld [vmem:[#allocation2 + $0x24] sm:$0xf]
      %v4634 = vld [vmem:[#allocation2 + $0x28] sm:$0xf]
      %v4635 = vld [vmem:[#allocation2 + $0x2c] sm:$0xf]
      %v4636 = vld [vmem:[#allocation2 + $0x30] sm:$0xf]
      %v4637 = vld [vmem:[#allocation2 + $0x34] sm:$0xf]
      %v4638 = vld [vmem:[#allocation2 + $0x38] sm:$0xf]
      %v4639 = vld [vmem:[#allocation2 + $0x3c] sm:$0xf]
      %v4640 = vld [vmem:[#allocation2 + $0x40] sm:$0xf]
      %v4641 = vld [vmem:[#allocation2 + $0x44] sm:$0xf]
      %v4642 = vld [vmem:[#allocation2 + $0x48] sm:$0xf]
      %v4643 = vld [vmem:[#allocation2 + $0x4c] sm:$0xf]
      %v4644 = vld [vmem:[#allocation2 + $0x50] sm:$0xf]
      %v4645 = vld [vmem:[#allocation2 + $0x54] sm:$0xf]
      %v4646 = vld [vmem:[#allocation2 + $0x58] sm:$0xf]
      %v4647 = vld [vmem:[#allocation2 + $0x5c] sm:$0xf]
      %v4648 = vld [vmem:[#allocation2 + $0x60] sm:$0xf]
      %v4649 = vld [vmem:[#allocation2 + $0x64] sm:$0xf]
      %v4650 = vld [vmem:[#allocation2 + $0x68] sm:$0xf]
      %v4651 = vld [vmem:[#allocation2 + $0x6c] sm:$0xf]
      %v4652 = vld [vmem:[#allocation2 + $0x70] sm:$0xf]
      %v4653 = vld [vmem:[#allocation2 + $0x74] sm:$0xf]
      %v4654 = vld [vmem:[#allocation2 + $0x78] sm:$0xf]
      %v4655 = vld [vmem:[#allocation2 + $0x7c] sm:$0xf]
      %v4656 = vld [vmem:[#allocation2 + $0x80] sm:$0xf]
      %v4657 = vld [vmem:[#allocation2 + $0x84] sm:$0xf]
      %v4658 = vld [vmem:[#allocation2 + $0x88] sm:$0xf]
      %v4659 = vld [vmem:[#allocation2 + $0x8c] sm:$0xf]
      %v4660 = vld [vmem:[#allocation2 + $0x90] sm:$0xf]
      %v4661 = vld [vmem:[#allocation2 + $0x94] sm:$0xf]
      %v4662 = vsel %vm1845, %v4629, 0
      %v4663 = vsel %vm1846, %v4630, 0
      %v4664 = vsel %vm1847, %v4631, 0
      %v4665 = vsel %vm1848, %v4632, 0
      %v4666 = vsel %vm1849, %v4633, 0
      %v4667 = vsel %vm1850, %v4634, 0
      %v4668 = vsel %vm1851, %v4635, 0
      %v4669 = vsel %vm1852, %v4636, 0
      %v4670 = vsel %vm1853, %v4637, 0
      %v4671 = vsel %vm1854, %v4638, 0
      %v4672 = vsel %vm1855, %v4639, 0
      %v4673 = vsel %vm1856, %v4640, 0
      %v4674 = vsel %vm1857, %v4641, 0
      %v4675 = vsel %vm1858, %v4642, 0
      %v4676 = vsel %vm1859, %v4643, 0
      %v4677 = vsel %vm1860, %v4644, 0
      %v4678 = vsel %vm1861, %v4645, 0
      %v4679 = vsel %vm1862, %v4646, 0
      %v4680 = vsel %vm1863, %v4647, 0
      %v4681 = vsel %vm1864, %v4648, 0
      %v4682 = vsel %vm1865, %v4649, 0
      %v4683 = vsel %vm1866, %v4650, 0
      %v4684 = vsel %vm1867, %v4651, 0
      %v4685 = vsel %vm1868, %v4652, 0
      %v4686 = vsel %vm1869, %v4653, 0
      %v4687 = vsel %vm1870, %v4654, 0
      %v4688 = vsel %vm1871, %v4655, 0
      %v4689 = vsel %vm1872, %v4656, 0
      %v4690 = vsel %vm1873, %v4657, 0
      %v4691 = vsel %vm1874, %v4658, 0
      %v4692 = vsel %vm1875, %v4659, 0
      %v4693 = vsel %vm1876, %v4660, 0
      %v4694 = vsel %vm1877, %v4661, 0
      %v4696 = vshrl.u32 %v4662, 16
      %v4698 = vrot.slane %v4696, 7
      %v4699 = vrot.slane %v4698, 4
      %v4701 = vshrl.u32 %v4663, 16
      %v4703 = vrot.slane %v4701, 7
      %v4704 = vshll.u32 %v4663, 16
      %v4706 = vor.u32 %v4703, %v4704
      %v4707 = vsel %vm1913, %v4699, %v4706
      %v4708 = vrot.slane %v4703, 4
      %v4710 = vshrl.u32 %v4664, 16
      %v4712 = vrot.slane %v4710, 7
      %v4713 = vshll.u32 %v4664, 16
      %v4715 = vor.u32 %v4712, %v4713
      %v4716 = vsel %vm1913, %v4708, %v4715
      %v4717 = vrot.slane %v4712, 4
      %v4719 = vshrl.u32 %v4665, 16
      %v4721 = vrot.slane %v4719, 7
      %v4722 = vshll.u32 %v4665, 16
      %v4724 = vor.u32 %v4721, %v4722
      %v4725 = vsel %vm1913, %v4717, %v4724
      %v4726 = vrot.slane %v4721, 4
      %v4728 = vshrl.u32 %v4666, 16
      %v4730 = vrot.slane %v4728, 7
      %v4731 = vshll.u32 %v4666, 16
      %v4733 = vor.u32 %v4730, %v4731
      %v4734 = vsel %vm1913, %v4726, %v4733
      %v4735 = vrot.slane %v4730, 4
      %v4737 = vshrl.u32 %v4667, 16
      %v4739 = vrot.slane %v4737, 7
      %v4740 = vshll.u32 %v4667, 16
      %v4742 = vor.u32 %v4739, %v4740
      %v4743 = vsel %vm1913, %v4735, %v4742
      %v4744 = vrot.slane %v4739, 4
      %v4746 = vshrl.u32 %v4668, 16
      %v4748 = vrot.slane %v4746, 7
      %v4749 = vshll.u32 %v4668, 16
      %v4751 = vor.u32 %v4748, %v4749
      %v4752 = vsel %vm1913, %v4744, %v4751
      %v4753 = vrot.slane %v4748, 4
      %v4755 = vshrl.u32 %v4669, 16
      %v4757 = vrot.slane %v4755, 7
      %v4758 = vshll.u32 %v4669, 16
      %v4760 = vor.u32 %v4757, %v4758
      %v4761 = vsel %vm1913, %v4753, %v4760
      %v4762 = vrot.slane %v4757, 4
      %v4764 = vshrl.u32 %v4670, 16
      %v4766 = vrot.slane %v4764, 7
      %v4767 = vshll.u32 %v4670, 16
      %v4769 = vor.u32 %v4766, %v4767
      %v4770 = vsel %vm1913, %v4762, %v4769
      %v4771 = vrot.slane %v4766, 4
      %v4773 = vshrl.u32 %v4671, 16
      %v4775 = vrot.slane %v4773, 7
      %v4776 = vshll.u32 %v4671, 16
      %v4778 = vor.u32 %v4775, %v4776
      %v4779 = vsel %vm1913, %v4771, %v4778
      %v4780 = vrot.slane %v4775, 4
      %v4782 = vshrl.u32 %v4672, 16
      %v4784 = vrot.slane %v4782, 7
      %v4785 = vshll.u32 %v4672, 16
      %v4787 = vor.u32 %v4784, %v4785
      %v4788 = vsel %vm1913, %v4780, %v4787
      %v4789 = vrot.slane %v4784, 4
      %v4791 = vshrl.u32 %v4673, 16
      %v4793 = vrot.slane %v4791, 7
      %v4794 = vshll.u32 %v4673, 16
      %v4796 = vor.u32 %v4793, %v4794
      %v4797 = vsel %vm1913, %v4789, %v4796
      %v4798 = vrot.slane %v4793, 4
      %v4800 = vshrl.u32 %v4674, 16
      %v4802 = vrot.slane %v4800, 7
      %v4803 = vshll.u32 %v4674, 16
      %v4805 = vor.u32 %v4802, %v4803
      %v4806 = vsel %vm1913, %v4798, %v4805
      %v4807 = vrot.slane %v4802, 4
      %v4809 = vshrl.u32 %v4675, 16
      %v4811 = vrot.slane %v4809, 7
      %v4812 = vshll.u32 %v4675, 16
      %v4814 = vor.u32 %v4811, %v4812
      %v4815 = vsel %vm1913, %v4807, %v4814
      %v4816 = vrot.slane %v4811, 4
      %v4818 = vshrl.u32 %v4676, 16
      %v4820 = vrot.slane %v4818, 7
      %v4821 = vshll.u32 %v4676, 16
      %v4823 = vor.u32 %v4820, %v4821
      %v4824 = vsel %vm1913, %v4816, %v4823
      %v4825 = vrot.slane %v4820, 4
      %v4827 = vshrl.u32 %v4677, 16
      %v4829 = vrot.slane %v4827, 7
      %v4830 = vshll.u32 %v4677, 16
      %v4832 = vor.u32 %v4829, %v4830
      %v4833 = vsel %vm1913, %v4825, %v4832
      %v4834 = vrot.slane %v4829, 4
      %v4836 = vshrl.u32 %v4678, 16
      %v4838 = vrot.slane %v4836, 7
      %v4839 = vshll.u32 %v4678, 16
      %v4841 = vor.u32 %v4838, %v4839
      %v4842 = vsel %vm1913, %v4834, %v4841
      %v4843 = vrot.slane %v4838, 4
      %v4845 = vshrl.u32 %v4679, 16
      %v4847 = vrot.slane %v4845, 7
      %v4848 = vshll.u32 %v4679, 16
      %v4850 = vor.u32 %v4847, %v4848
      %v4851 = vsel %vm1913, %v4843, %v4850
      %v4852 = vrot.slane %v4847, 4
      %v4854 = vshrl.u32 %v4680, 16
      %v4856 = vrot.slane %v4854, 7
      %v4857 = vshll.u32 %v4680, 16
      %v4859 = vor.u32 %v4856, %v4857
      %v4860 = vsel %vm1913, %v4852, %v4859
      %v4861 = vrot.slane %v4856, 4
      %v4863 = vshrl.u32 %v4681, 16
      %v4865 = vrot.slane %v4863, 7
      %v4866 = vshll.u32 %v4681, 16
      %v4868 = vor.u32 %v4865, %v4866
      %v4869 = vsel %vm1913, %v4861, %v4868
      %v4870 = vrot.slane %v4865, 4
      %v4872 = vshrl.u32 %v4682, 16
      %v4874 = vrot.slane %v4872, 7
      %v4875 = vshll.u32 %v4682, 16
      %v4877 = vor.u32 %v4874, %v4875
      %v4878 = vsel %vm1913, %v4870, %v4877
      %v4879 = vrot.slane %v4874, 4
      %v4881 = vshrl.u32 %v4683, 16
      %v4883 = vrot.slane %v4881, 7
      %v4884 = vshll.u32 %v4683, 16
      %v4886 = vor.u32 %v4883, %v4884
      %v4887 = vsel %vm1913, %v4879, %v4886
      %v4888 = vrot.slane %v4883, 4
      %v4890 = vshrl.u32 %v4684, 16
      %v4892 = vrot.slane %v4890, 7
      %v4893 = vshll.u32 %v4684, 16
      %v4895 = vor.u32 %v4892, %v4893
      %v4896 = vsel %vm1913, %v4888, %v4895
      %v4897 = vrot.slane %v4892, 4
      %v4899 = vshrl.u32 %v4685, 16
      %v4901 = vrot.slane %v4899, 7
      %v4902 = vshll.u32 %v4685, 16
      %v4904 = vor.u32 %v4901, %v4902
      %v4905 = vsel %vm1913, %v4897, %v4904
      %v4906 = vrot.slane %v4901, 4
      %v4908 = vshrl.u32 %v4686, 16
      %v4910 = vrot.slane %v4908, 7
      %v4911 = vshll.u32 %v4686, 16
      %v4913 = vor.u32 %v4910, %v4911
      %v4914 = vsel %vm1913, %v4906, %v4913
      %v4915 = vrot.slane %v4910, 4
      %v4917 = vshrl.u32 %v4687, 16
      %v4919 = vrot.slane %v4917, 7
      %v4920 = vshll.u32 %v4687, 16
      %v4922 = vor.u32 %v4919, %v4920
      %v4923 = vsel %vm1913, %v4915, %v4922
      %v4924 = vrot.slane %v4919, 4
      %v4926 = vshrl.u32 %v4688, 16
      %v4928 = vrot.slane %v4926, 7
      %v4929 = vshll.u32 %v4688, 16
      %v4931 = vor.u32 %v4928, %v4929
      %v4932 = vsel %vm1913, %v4924, %v4931
      %v4933 = vrot.slane %v4928, 4
      %v4935 = vshrl.u32 %v4689, 16
      %v4937 = vrot.slane %v4935, 7
      %v4938 = vshll.u32 %v4689, 16
      %v4940 = vor.u32 %v4937, %v4938
      %v4941 = vsel %vm1913, %v4933, %v4940
      %v4942 = vrot.slane %v4937, 4
      %v4944 = vshrl.u32 %v4690, 16
      %v4946 = vrot.slane %v4944, 7
      %v4947 = vshll.u32 %v4690, 16
      %v4949 = vor.u32 %v4946, %v4947
      %v4950 = vsel %vm1913, %v4942, %v4949
      %v4951 = vrot.slane %v4946, 4
      %v4953 = vshrl.u32 %v4691, 16
      %v4955 = vrot.slane %v4953, 7
      %v4956 = vshll.u32 %v4691, 16
      %v4958 = vor.u32 %v4955, %v4956
      %v4959 = vsel %vm1913, %v4951, %v4958
      %v4960 = vrot.slane %v4955, 4
      %v4962 = vshrl.u32 %v4692, 16
      %v4964 = vrot.slane %v4962, 7
      %v4965 = vshll.u32 %v4692, 16
      %v4967 = vor.u32 %v4964, %v4965
      %v4968 = vsel %vm1913, %v4960, %v4967
      %v4969 = vrot.slane %v4964, 4
      %v4971 = vshrl.u32 %v4693, 16
      %v4973 = vrot.slane %v4971, 7
      %v4974 = vshll.u32 %v4693, 16
      %v4976 = vor.u32 %v4973, %v4974
      %v4977 = vsel %vm1913, %v4969, %v4976
      %v4978 = vrot.slane %v4973, 4
      %v4980 = vshrl.u32 %v4694, 16
      %v4982 = vrot.slane %v4980, 7
      %v4983 = vshll.u32 %v4694, 16
      %v4985 = vor.u32 %v4982, %v4983
      %v4986 = vsel %vm1913, %v4978, %v4985
      %4987 = vrot.lane.b32.xlu0 %v4707, 24
      %v4988 = vpop.permute.xlu0 %4987
      %4989 = vrot.lane.b32.xlu0 %v4716, 24
      %v4990 = vpop.permute.xlu0 %4989
      %4991 = vrot.lane.b32.xlu0 %v4725, 24
      %v4992 = vpop.permute.xlu0 %4991
      %4993 = vrot.lane.b32.xlu0 %v4734, 24
      %v4994 = vpop.permute.xlu0 %4993
      %4995 = vrot.lane.b32.xlu0 %v4743, 24
      %v4996 = vpop.permute.xlu0 %4995
      %4997 = vrot.lane.b32.xlu0 %v4752, 24
      %v4998 = vpop.permute.xlu0 %4997
      %4999 = vrot.lane.b32.xlu0 %v4761, 24
      %v5000 = vpop.permute.xlu0 %4999
      %5001 = vrot.lane.b32.xlu0 %v4770, 24
      %v5002 = vpop.permute.xlu0 %5001
      %5003 = vrot.lane.b32.xlu0 %v4779, 24
      %v5004 = vpop.permute.xlu0 %5003
      %5005 = vrot.lane.b32.xlu0 %v4788, 24
      %v5006 = vpop.permute.xlu0 %5005
      %5007 = vrot.lane.b32.xlu0 %v4797, 24
      %v5008 = vpop.permute.xlu0 %5007
      %5009 = vrot.lane.b32.xlu0 %v4806, 24
      %v5010 = vpop.permute.xlu0 %5009
      %5011 = vrot.lane.b32.xlu0 %v4815, 24
      %v5012 = vpop.permute.xlu0 %5011
      %5013 = vrot.lane.b32.xlu0 %v4824, 24
      %v5014 = vpop.permute.xlu0 %5013
      %5015 = vrot.lane.b32.xlu0 %v4833, 24
      %v5016 = vpop.permute.xlu0 %5015
      %5017 = vrot.lane.b32.xlu0 %v4842, 24
      %v5018 = vpop.permute.xlu0 %5017
      %5019 = vrot.lane.b32.xlu0 %v4851, 24
      %v5020 = vpop.permute.xlu0 %5019
      %5021 = vrot.lane.b32.xlu0 %v4860, 24
      %v5022 = vpop.permute.xlu0 %5021
      %5023 = vrot.lane.b32.xlu0 %v4869, 24
      %v5024 = vpop.permute.xlu0 %5023
      %5025 = vrot.lane.b32.xlu0 %v4878, 24
      %v5026 = vpop.permute.xlu0 %5025
      %5027 = vrot.lane.b32.xlu0 %v4887, 24
      %v5028 = vpop.permute.xlu0 %5027
      %5029 = vrot.lane.b32.xlu0 %v4896, 24
      %v5030 = vpop.permute.xlu0 %5029
      %5031 = vrot.lane.b32.xlu0 %v4905, 24
      %v5032 = vpop.permute.xlu0 %5031
      %5033 = vrot.lane.b32.xlu0 %v4914, 24
      %v5034 = vpop.permute.xlu0 %5033
      %5035 = vrot.lane.b32.xlu0 %v4923, 24
      %v5036 = vpop.permute.xlu0 %5035
      %5037 = vrot.lane.b32.xlu0 %v4932, 24
      %v5038 = vpop.permute.xlu0 %5037
      %5039 = vrot.lane.b32.xlu0 %v4941, 24
      %v5040 = vpop.permute.xlu0 %5039
      %5041 = vrot.lane.b32.xlu0 %v4950, 24
      %v5042 = vpop.permute.xlu0 %5041
      %5043 = vrot.lane.b32.xlu0 %v4959, 24
      %v5044 = vpop.permute.xlu0 %5043
      %5045 = vrot.lane.b32.xlu0 %v4968, 24
      %v5046 = vpop.permute.xlu0 %5045
      %5047 = vrot.lane.b32.xlu0 %v4977, 24
      %v5048 = vpop.permute.xlu0 %5047
      %5049 = vrot.lane.b32.xlu0 %v4986, 24
      %v5050 = vpop.permute.xlu0 %5049
      %vm5083 = vcmask 224448
      %5084 = vst.msk [vmem:[#allocation3] sm:$0xf] %vm5083, %v4988
      %5085 = vst.msk [vmem:[#allocation3 + $0x4] sm:$0xf] %vm5083, %v4990
      %5086 = vst.msk [vmem:[#allocation3 + $0x8] sm:$0xf] %vm5083, %v4992
      %5087 = vst.msk [vmem:[#allocation3 + $0xc] sm:$0xf] %vm5083, %v4994
      %5088 = vst.msk [vmem:[#allocation3 + $0x10] sm:$0xf] %vm5083, %v4996
      %5089 = vst.msk [vmem:[#allocation3 + $0x14] sm:$0xf] %vm5083, %v4998
      %5090 = vst.msk [vmem:[#allocation3 + $0x18] sm:$0xf] %vm5083, %v5000
      %5091 = vst.msk [vmem:[#allocation3 + $0x1c] sm:$0xf] %vm5083, %v5002
      %5092 = vst.msk [vmem:[#allocation3 + $0x20] sm:$0xf] %vm5083, %v5004
      %5093 = vst.msk [vmem:[#allocation3 + $0x24] sm:$0xf] %vm5083, %v5006
      %5094 = vst.msk [vmem:[#allocation3 + $0x28] sm:$0xf] %vm5083, %v5008
      %5095 = vst.msk [vmem:[#allocation3 + $0x2c] sm:$0xf] %vm5083, %v5010
      %5096 = vst.msk [vmem:[#allocation3 + $0x30] sm:$0xf] %vm5083, %v5012
      %5097 = vst.msk [vmem:[#allocation3 + $0x34] sm:$0xf] %vm5083, %v5014
      %5098 = vst.msk [vmem:[#allocation3 + $0x38] sm:$0xf] %vm5083, %v5016
      %5099 = vst.msk [vmem:[#allocation3 + $0x3c] sm:$0xf] %vm5083, %v5018
      %5100 = vst.msk [vmem:[#allocation3 + $0x40] sm:$0xf] %vm5083, %v5020
      %5101 = vst.msk [vmem:[#allocation3 + $0x44] sm:$0xf] %vm5083, %v5022
      %5102 = vst.msk [vmem:[#allocation3 + $0x48] sm:$0xf] %vm5083, %v5024
      %5103 = vst.msk [vmem:[#allocation3 + $0x4c] sm:$0xf] %vm5083, %v5026
      %5104 = vst.msk [vmem:[#allocation3 + $0x50] sm:$0xf] %vm5083, %v5028
      %5105 = vst.msk [vmem:[#allocation3 + $0x54] sm:$0xf] %vm5083, %v5030
      %5106 = vst.msk [vmem:[#allocation3 + $0x58] sm:$0xf] %vm5083, %v5032
      %5107 = vst.msk [vmem:[#allocation3 + $0x5c] sm:$0xf] %vm5083, %v5034
      %5108 = vst.msk [vmem:[#allocation3 + $0x60] sm:$0xf] %vm5083, %v5036
      %5109 = vst.msk [vmem:[#allocation3 + $0x64] sm:$0xf] %vm5083, %v5038
      %5110 = vst.msk [vmem:[#allocation3 + $0x68] sm:$0xf] %vm5083, %v5040
      %5111 = vst.msk [vmem:[#allocation3 + $0x6c] sm:$0xf] %vm5083, %v5042
      %5112 = vst.msk [vmem:[#allocation3 + $0x70] sm:$0xf] %vm5083, %v5044
      %5113 = vst.msk [vmem:[#allocation3 + $0x74] sm:$0xf] %vm5083, %v5046
      %5114 = vst.msk [vmem:[#allocation3 + $0x78] sm:$0xf] %vm5083, %v5048
      %5115 = vst.msk [vmem:[#allocation3 + $0x7c] sm:$0xf] %vm5083, %v5050
      %v5116 = vld [vmem:[#allocation2 + $0x18] sm:$0xf]
      %v5117 = vld [vmem:[#allocation2 + $0x1c] sm:$0xf]
      %v5118 = vld [vmem:[#allocation2 + $0x20] sm:$0xf]
      %v5119 = vld [vmem:[#allocation2 + $0x24] sm:$0xf]
      %v5120 = vld [vmem:[#allocation2 + $0x28] sm:$0xf]
      %v5121 = vld [vmem:[#allocation2 + $0x2c] sm:$0xf]
      %v5122 = vld [vmem:[#allocation2 + $0x30] sm:$0xf]
      %v5123 = vld [vmem:[#allocation2 + $0x34] sm:$0xf]
      %v5124 = vld [vmem:[#allocation2 + $0x38] sm:$0xf]
      %v5125 = vld [vmem:[#allocation2 + $0x3c] sm:$0xf]
      %v5126 = vld [vmem:[#allocation2 + $0x40] sm:$0xf]
      %v5127 = vld [vmem:[#allocation2 + $0x44] sm:$0xf]
      %v5128 = vld [vmem:[#allocation2 + $0x48] sm:$0xf]
      %v5129 = vld [vmem:[#allocation2 + $0x4c] sm:$0xf]
      %v5130 = vld [vmem:[#allocation2 + $0x50] sm:$0xf]
      %v5131 = vld [vmem:[#allocation2 + $0x54] sm:$0xf]
      %v5132 = vld [vmem:[#allocation2 + $0x58] sm:$0xf]
      %v5133 = vld [vmem:[#allocation2 + $0x5c] sm:$0xf]
      %v5134 = vld [vmem:[#allocation2 + $0x60] sm:$0xf]
      %v5135 = vld [vmem:[#allocation2 + $0x64] sm:$0xf]
      %v5136 = vld [vmem:[#allocation2 + $0x68] sm:$0xf]
      %v5137 = vld [vmem:[#allocation2 + $0x6c] sm:$0xf]
      %v5138 = vld [vmem:[#allocation2 + $0x70] sm:$0xf]
      %v5139 = vld [vmem:[#allocation2 + $0x74] sm:$0xf]
      %v5140 = vld [vmem:[#allocation2 + $0x78] sm:$0xf]
      %v5141 = vld [vmem:[#allocation2 + $0x7c] sm:$0xf]
      %v5142 = vld [vmem:[#allocation2 + $0x80] sm:$0xf]
      %v5143 = vld [vmem:[#allocation2 + $0x84] sm:$0xf]
      %v5144 = vld [vmem:[#allocation2 + $0x88] sm:$0xf]
      %v5145 = vld [vmem:[#allocation2 + $0x8c] sm:$0xf]
      %v5146 = vld [vmem:[#allocation2 + $0x90] sm:$0xf]
      %v5147 = vld [vmem:[#allocation2 + $0x94] sm:$0xf]
      %5180 = vrot.lane.b32.xlu0 %v5116, 28
      %v5181 = vpop.permute.xlu0 %5180
      %5182 = vrot.lane.b32.xlu0 %v5117, 28
      %v5183 = vpop.permute.xlu0 %5182
      %5184 = vrot.lane.b32.xlu0 %v5118, 28
      %v5185 = vpop.permute.xlu0 %5184
      %5186 = vrot.lane.b32.xlu0 %v5119, 28
      %v5187 = vpop.permute.xlu0 %5186
      %5188 = vrot.lane.b32.xlu0 %v5120, 28
      %v5189 = vpop.permute.xlu0 %5188
      %5190 = vrot.lane.b32.xlu0 %v5121, 28
      %v5191 = vpop.permute.xlu0 %5190
      %5192 = vrot.lane.b32.xlu0 %v5122, 28
      %v5193 = vpop.permute.xlu0 %5192
      %5194 = vrot.lane.b32.xlu0 %v5123, 28
      %v5195 = vpop.permute.xlu0 %5194
      %5196 = vrot.lane.b32.xlu0 %v5124, 28
      %v5197 = vpop.permute.xlu0 %5196
      %5198 = vrot.lane.b32.xlu0 %v5125, 28
      %v5199 = vpop.permute.xlu0 %5198
      %5200 = vrot.lane.b32.xlu0 %v5126, 28
      %v5201 = vpop.permute.xlu0 %5200
      %5202 = vrot.lane.b32.xlu0 %v5127, 28
      %v5203 = vpop.permute.xlu0 %5202
      %5204 = vrot.lane.b32.xlu0 %v5128, 28
      %v5205 = vpop.permute.xlu0 %5204
      %5206 = vrot.lane.b32.xlu0 %v5129, 28
      %v5207 = vpop.permute.xlu0 %5206
      %5208 = vrot.lane.b32.xlu0 %v5130, 28
      %v5209 = vpop.permute.xlu0 %5208
      %5210 = vrot.lane.b32.xlu0 %v5131, 28
      %v5211 = vpop.permute.xlu0 %5210
      %5212 = vrot.lane.b32.xlu0 %v5132, 28
      %v5213 = vpop.permute.xlu0 %5212
      %5214 = vrot.lane.b32.xlu0 %v5133, 28
      %v5215 = vpop.permute.xlu0 %5214
      %5216 = vrot.lane.b32.xlu0 %v5134, 28
      %v5217 = vpop.permute.xlu0 %5216
      %5218 = vrot.lane.b32.xlu0 %v5135, 28
      %v5219 = vpop.permute.xlu0 %5218
      %5220 = vrot.lane.b32.xlu0 %v5136, 28
      %v5221 = vpop.permute.xlu0 %5220
      %5222 = vrot.lane.b32.xlu0 %v5137, 28
      %v5223 = vpop.permute.xlu0 %5222
      %5224 = vrot.lane.b32.xlu0 %v5138, 28
      %v5225 = vpop.permute.xlu0 %5224
      %5226 = vrot.lane.b32.xlu0 %v5139, 28
      %v5227 = vpop.permute.xlu0 %5226
      %5228 = vrot.lane.b32.xlu0 %v5140, 28
      %v5229 = vpop.permute.xlu0 %5228
      %5230 = vrot.lane.b32.xlu0 %v5141, 28
      %v5231 = vpop.permute.xlu0 %5230
      %5232 = vrot.lane.b32.xlu0 %v5142, 28
      %v5233 = vpop.permute.xlu0 %5232
      %5234 = vrot.lane.b32.xlu0 %v5143, 28
      %v5235 = vpop.permute.xlu0 %5234
      %5236 = vrot.lane.b32.xlu0 %v5144, 28
      %v5237 = vpop.permute.xlu0 %5236
      %5238 = vrot.lane.b32.xlu0 %v5145, 28
      %v5239 = vpop.permute.xlu0 %5238
      %5240 = vrot.lane.b32.xlu0 %v5146, 28
      %v5241 = vpop.permute.xlu0 %5240
      %5242 = vrot.lane.b32.xlu0 %v5147, 28
      %v5243 = vpop.permute.xlu0 %5242
      %vm5276 = vcmask 257248
      %5277 = vst.msk [vmem:[#allocation3] sm:$0xf] %vm5276, %v5181
      %5278 = vst.msk [vmem:[#allocation3 + $0x4] sm:$0xf] %vm5276, %v5183
      %5279 = vst.msk [vmem:[#allocation3 + $0x8] sm:$0xf] %vm5276, %v5185
      %5280 = vst.msk [vmem:[#allocation3 + $0xc] sm:$0xf] %vm5276, %v5187
      %5281 = vst.msk [vmem:[#allocation3 + $0x10] sm:$0xf] %vm5276, %v5189
      %5282 = vst.msk [vmem:[#allocation3 + $0x14] sm:$0xf] %vm5276, %v5191
      %5283 = vst.msk [vmem:[#allocation3 + $0x18] sm:$0xf] %vm5276, %v5193
      %5284 = vst.msk [vmem:[#allocation3 + $0x1c] sm:$0xf] %vm5276, %v5195
      %5285 = vst.msk [vmem:[#allocation3 + $0x20] sm:$0xf] %vm5276, %v5197
      %5286 = vst.msk [vmem:[#allocation3 + $0x24] sm:$0xf] %vm5276, %v5199
      %5287 = vst.msk [vmem:[#allocation3 + $0x28] sm:$0xf] %vm5276, %v5201
      %5288 = vst.msk [vmem:[#allocation3 + $0x2c] sm:$0xf] %vm5276, %v5203
      %5289 = vst.msk [vmem:[#allocation3 + $0x30] sm:$0xf] %vm5276, %v5205
      %5290 = vst.msk [vmem:[#allocation3 + $0x34] sm:$0xf] %vm5276, %v5207
      %5291 = vst.msk [vmem:[#allocation3 + $0x38] sm:$0xf] %vm5276, %v5209
      %5292 = vst.msk [vmem:[#allocation3 + $0x3c] sm:$0xf] %vm5276, %v5211
      %5293 = vst.msk [vmem:[#allocation3 + $0x40] sm:$0xf] %vm5276, %v5213
      %5294 = vst.msk [vmem:[#allocation3 + $0x44] sm:$0xf] %vm5276, %v5215
      %5295 = vst.msk [vmem:[#allocation3 + $0x48] sm:$0xf] %vm5276, %v5217
      %5296 = vst.msk [vmem:[#allocation3 + $0x4c] sm:$0xf] %vm5276, %v5219
      %5297 = vst.msk [vmem:[#allocation3 + $0x50] sm:$0xf] %vm5276, %v5221
      %5298 = vst.msk [vmem:[#allocation3 + $0x54] sm:$0xf] %vm5276, %v5223
      %5299 = vst.msk [vmem:[#allocation3 + $0x58] sm:$0xf] %vm5276, %v5225
      %5300 = vst.msk [vmem:[#allocation3 + $0x5c] sm:$0xf] %vm5276, %v5227
      %5301 = vst.msk [vmem:[#allocation3 + $0x60] sm:$0xf] %vm5276, %v5229
      %5302 = vst.msk [vmem:[#allocation3 + $0x64] sm:$0xf] %vm5276, %v5231
      %5303 = vst.msk [vmem:[#allocation3 + $0x68] sm:$0xf] %vm5276, %v5233
      %5304 = vst.msk [vmem:[#allocation3 + $0x6c] sm:$0xf] %vm5276, %v5235
      %5305 = vst.msk [vmem:[#allocation3 + $0x70] sm:$0xf] %vm5276, %v5237
      %5306 = vst.msk [vmem:[#allocation3 + $0x74] sm:$0xf] %vm5276, %v5239
      %5307 = vst.msk [vmem:[#allocation3 + $0x78] sm:$0xf] %vm5276, %v5241
      %5308 = vst.msk [vmem:[#allocation3 + $0x7c] sm:$0xf] %vm5276, %v5243
      %v5309 = vld [vmem:[#allocation2 + $0x18] sm:$0xf]
      %v5310 = vld [vmem:[#allocation2 + $0x1c] sm:$0xf]
      %v5311 = vld [vmem:[#allocation2 + $0x20] sm:$0xf]
      %v5312 = vld [vmem:[#allocation2 + $0x24] sm:$0xf]
      %v5313 = vld [vmem:[#allocation2 + $0x28] sm:$0xf]
      %v5314 = vld [vmem:[#allocation2 + $0x2c] sm:$0xf]
      %v5315 = vld [vmem:[#allocation2 + $0x30] sm:$0xf]
      %v5316 = vld [vmem:[#allocation2 + $0x34] sm:$0xf]
      %v5317 = vld [vmem:[#allocation2 + $0x38] sm:$0xf]
      %v5318 = vld [vmem:[#allocation2 + $0x3c] sm:$0xf]
      %v5319 = vld [vmem:[#allocation2 + $0x40] sm:$0xf]
      %v5320 = vld [vmem:[#allocation2 + $0x44] sm:$0xf]
      %v5321 = vld [vmem:[#allocation2 + $0x48] sm:$0xf]
      %v5322 = vld [vmem:[#allocation2 + $0x4c] sm:$0xf]
      %v5323 = vld [vmem:[#allocation2 + $0x50] sm:$0xf]
      %v5324 = vld [vmem:[#allocation2 + $0x54] sm:$0xf]
      %v5325 = vld [vmem:[#allocation2 + $0x58] sm:$0xf]
      %v5326 = vld [vmem:[#allocation2 + $0x5c] sm:$0xf]
      %v5327 = vld [vmem:[#allocation2 + $0x60] sm:$0xf]
      %v5328 = vld [vmem:[#allocation2 + $0x64] sm:$0xf]
      %v5329 = vld [vmem:[#allocation2 + $0x68] sm:$0xf]
      %v5330 = vld [vmem:[#allocation2 + $0x6c] sm:$0xf]
      %v5331 = vld [vmem:[#allocation2 + $0x70] sm:$0xf]
      %v5332 = vld [vmem:[#allocation2 + $0x74] sm:$0xf]
      %v5333 = vld [vmem:[#allocation2 + $0x78] sm:$0xf]
      %v5334 = vld [vmem:[#allocation2 + $0x7c] sm:$0xf]
      %v5335 = vld [vmem:[#allocation2 + $0x80] sm:$0xf]
      %v5336 = vld [vmem:[#allocation2 + $0x84] sm:$0xf]
      %v5337 = vld [vmem:[#allocation2 + $0x88] sm:$0xf]
      %v5338 = vld [vmem:[#allocation2 + $0x8c] sm:$0xf]
      %v5339 = vld [vmem:[#allocation2 + $0x90] sm:$0xf]
      %v5340 = vld [vmem:[#allocation2 + $0x94] sm:$0xf]
      %v5341 = vld [vmem:[#allocation2 + $0x98] sm:$0x1]
      %v5342 = vsel %vm2911, %v5309, 0
      %v5343 = vsel %vm2912, %v5310, 0
      %v5344 = vsel %vm2913, %v5311, 0
      %v5345 = vsel %vm2914, %v5312, 0
      %v5346 = vsel %vm2915, %v5313, 0
      %v5347 = vsel %vm2916, %v5314, 0
      %v5348 = vsel %vm2917, %v5315, 0
      %v5349 = vsel %vm2918, %v5316, 0
      %v5350 = vsel %vm2919, %v5317, 0
      %v5351 = vsel %vm2920, %v5318, 0
      %v5352 = vsel %vm2921, %v5319, 0
      %v5353 = vsel %vm2922, %v5320, 0
      %v5354 = vsel %vm2923, %v5321, 0
      %v5355 = vsel %vm2924, %v5322, 0
      %v5356 = vsel %vm2925, %v5323, 0
      %v5357 = vsel %vm2926, %v5324, 0
      %v5358 = vsel %vm2927, %v5325, 0
      %v5359 = vsel %vm2928, %v5326, 0
      %v5360 = vsel %vm2929, %v5327, 0
      %v5361 = vsel %vm2930, %v5328, 0
      %v5362 = vsel %vm2931, %v5329, 0
      %v5363 = vsel %vm2932, %v5330, 0
      %v5364 = vsel %vm2933, %v5331, 0
      %v5365 = vsel %vm2934, %v5332, 0
      %v5366 = vsel %vm2935, %v5333, 0
      %v5367 = vsel %vm2936, %v5334, 0
      %v5368 = vsel %vm2937, %v5335, 0
      %v5369 = vsel %vm2938, %v5336, 0
      %v5370 = vsel %vm2939, %v5337, 0
      %v5371 = vsel %vm2940, %v5338, 0
      %v5372 = vsel %vm2941, %v5339, 0
      %v5373 = vsel %vm2942, %v5340, 0
      %v5374 = vsel %vm2943, %v5341, 0
      %v5376 = vshrl.u32 %v5342, 16
      %v5378 = vrot.slane %v5376, 4
      %v5379 = vshll.u32 %v5342, 16
      %v5381 = vrot.slane %v5379, 5
      %v5382 = vor.u32 %v5378, %v5381
      %v5383 = vrot.slane %v5382, 4
      %v5385 = vshll.u32 %v5343, 16
      %v5387 = vrot.slane %v5385, 5
      %v5388 = vsel %vm1525, %v5383, %v5387
      %v5389 = vshrl.u32 %v5343, 16
      %v5391 = vrot.slane %v5389, 4
      %v5392 = vor.u32 %v5391, %v5387
      %v5393 = vrot.slane %v5392, 4
      %v5395 = vshll.u32 %v5344, 16
      %v5397 = vrot.slane %v5395, 5
      %v5398 = vsel %vm1525, %v5393, %v5397
      %v5399 = vshrl.u32 %v5344, 16
      %v5401 = vrot.slane %v5399, 4
      %v5402 = vor.u32 %v5401, %v5397
      %v5403 = vrot.slane %v5402, 4
      %v5405 = vshll.u32 %v5345, 16
      %v5407 = vrot.slane %v5405, 5
      %v5408 = vsel %vm1525, %v5403, %v5407
      %v5409 = vshrl.u32 %v5345, 16
      %v5411 = vrot.slane %v5409, 4
      %v5412 = vor.u32 %v5411, %v5407
      %v5413 = vrot.slane %v5412, 4
      %v5415 = vshll.u32 %v5346, 16
      %v5417 = vrot.slane %v5415, 5
      %v5418 = vsel %vm1525, %v5413, %v5417
      %v5419 = vshrl.u32 %v5346, 16
      %v5421 = vrot.slane %v5419, 4
      %v5422 = vor.u32 %v5421, %v5417
      %v5423 = vrot.slane %v5422, 4
      %v5425 = vshll.u32 %v5347, 16
      %v5427 = vrot.slane %v5425, 5
      %v5428 = vsel %vm1525, %v5423, %v5427
      %v5429 = vshrl.u32 %v5347, 16
      %v5431 = vrot.slane %v5429, 4
      %v5432 = vor.u32 %v5431, %v5427
      %v5433 = vrot.slane %v5432, 4
      %v5435 = vshll.u32 %v5348, 16
      %v5437 = vrot.slane %v5435, 5
      %v5438 = vsel %vm1525, %v5433, %v5437
      %v5439 = vshrl.u32 %v5348, 16
      %v5441 = vrot.slane %v5439, 4
      %v5442 = vor.u32 %v5441, %v5437
      %v5443 = vrot.slane %v5442, 4
      %v5445 = vshll.u32 %v5349, 16
      %v5447 = vrot.slane %v5445, 5
      %v5448 = vsel %vm1525, %v5443, %v5447
      %v5449 = vshrl.u32 %v5349, 16
      %v5451 = vrot.slane %v5449, 4
      %v5452 = vor.u32 %v5451, %v5447
      %v5453 = vrot.slane %v5452, 4
      %v5455 = vshll.u32 %v5350, 16
      %v5457 = vrot.slane %v5455, 5
      %v5458 = vsel %vm1525, %v5453, %v5457
      %v5459 = vshrl.u32 %v5350, 16
      %v5461 = vrot.slane %v5459, 4
      %v5462 = vor.u32 %v5461, %v5457
      %v5463 = vrot.slane %v5462, 4
      %v5465 = vshll.u32 %v5351, 16
      %v5467 = vrot.slane %v5465, 5
      %v5468 = vsel %vm1525, %v5463, %v5467
      %v5469 = vshrl.u32 %v5351, 16
      %v5471 = vrot.slane %v5469, 4
      %v5472 = vor.u32 %v5471, %v5467
      %v5473 = vrot.slane %v5472, 4
      %v5475 = vshll.u32 %v5352, 16
      %v5477 = vrot.slane %v5475, 5
      %v5478 = vsel %vm1525, %v5473, %v5477
      %v5479 = vshrl.u32 %v5352, 16
      %v5481 = vrot.slane %v5479, 4
      %v5482 = vor.u32 %v5481, %v5477
      %v5483 = vrot.slane %v5482, 4
      %v5485 = vshll.u32 %v5353, 16
      %v5487 = vrot.slane %v5485, 5
      %v5488 = vsel %vm1525, %v5483, %v5487
      %v5489 = vshrl.u32 %v5353, 16
      %v5491 = vrot.slane %v5489, 4
      %v5492 = vor.u32 %v5491, %v5487
      %v5493 = vrot.slane %v5492, 4
      %v5495 = vshll.u32 %v5354, 16
      %v5497 = vrot.slane %v5495, 5
      %v5498 = vsel %vm1525, %v5493, %v5497
      %v5499 = vshrl.u32 %v5354, 16
      %v5501 = vrot.slane %v5499, 4
      %v5502 = vor.u32 %v5501, %v5497
      %v5503 = vrot.slane %v5502, 4
      %v5505 = vshll.u32 %v5355, 16
      %v5507 = vrot.slane %v5505, 5
      %v5508 = vsel %vm1525, %v5503, %v5507
      %v5509 = vshrl.u32 %v5355, 16
      %v5511 = vrot.slane %v5509, 4
      %v5512 = vor.u32 %v5511, %v5507
      %v5513 = vrot.slane %v5512, 4
      %v5515 = vshll.u32 %v5356, 16
      %v5517 = vrot.slane %v5515, 5
      %v5518 = vsel %vm1525, %v5513, %v5517
      %v5519 = vshrl.u32 %v5356, 16
      %v5521 = vrot.slane %v5519, 4
      %v5522 = vor.u32 %v5521, %v5517
      %v5523 = vrot.slane %v5522, 4
      %v5525 = vshll.u32 %v5357, 16
      %v5527 = vrot.slane %v5525, 5
      %v5528 = vsel %vm1525, %v5523, %v5527
      %v5529 = vshrl.u32 %v5357, 16
      %v5531 = vrot.slane %v5529, 4
      %v5532 = vor.u32 %v5531, %v5527
      %v5533 = vrot.slane %v5532, 4
      %v5535 = vshll.u32 %v5358, 16
      %v5537 = vrot.slane %v5535, 5
      %v5538 = vsel %vm1525, %v5533, %v5537
      %v5539 = vshrl.u32 %v5358, 16
      %v5541 = vrot.slane %v5539, 4
      %v5542 = vor.u32 %v5541, %v5537
      %v5543 = vrot.slane %v5542, 4
      %v5545 = vshll.u32 %v5359, 16
      %v5547 = vrot.slane %v5545, 5
      %v5548 = vsel %vm1525, %v5543, %v5547
      %v5549 = vshrl.u32 %v5359, 16
      %v5551 = vrot.slane %v5549, 4
      %v5552 = vor.u32 %v5551, %v5547
      %v5553 = vrot.slane %v5552, 4
      %v5555 = vshll.u32 %v5360, 16
      %v5557 = vrot.slane %v5555, 5
      %v5558 = vsel %vm1525, %v5553, %v5557
      %v5559 = vshrl.u32 %v5360, 16
      %v5561 = vrot.slane %v5559, 4
      %v5562 = vor.u32 %v5561, %v5557
      %v5563 = vrot.slane %v5562, 4
      %v5565 = vshll.u32 %v5361, 16
      %v5567 = vrot.slane %v5565, 5
      %v5568 = vsel %vm1525, %v5563, %v5567
      %v5569 = vshrl.u32 %v5361, 16
      %v5571 = vrot.slane %v5569, 4
      %v5572 = vor.u32 %v5571, %v5567
      %v5573 = vrot.slane %v5572, 4
      %v5575 = vshll.u32 %v5362, 16
      %v5577 = vrot.slane %v5575, 5
      %v5578 = vsel %vm1525, %v5573, %v5577
      %v5579 = vshrl.u32 %v5362, 16
      %v5581 = vrot.slane %v5579, 4
      %v5582 = vor.u32 %v5581, %v5577
      %v5583 = vrot.slane %v5582, 4
      %v5585 = vshll.u32 %v5363, 16
      %v5587 = vrot.slane %v5585, 5
      %v5588 = vsel %vm1525, %v5583, %v5587
      %v5589 = vshrl.u32 %v5363, 16
      %v5591 = vrot.slane %v5589, 4
      %v5592 = vor.u32 %v5591, %v5587
      %v5593 = vrot.slane %v5592, 4
      %v5595 = vshll.u32 %v5364, 16
      %v5597 = vrot.slane %v5595, 5
      %v5598 = vsel %vm1525, %v5593, %v5597
      %v5599 = vshrl.u32 %v5364, 16
      %v5601 = vrot.slane %v5599, 4
      %v5602 = vor.u32 %v5601, %v5597
      %v5603 = vrot.slane %v5602, 4
      %v5605 = vshll.u32 %v5365, 16
      %v5607 = vrot.slane %v5605, 5
      %v5608 = vsel %vm1525, %v5603, %v5607
      %v5609 = vshrl.u32 %v5365, 16
      %v5611 = vrot.slane %v5609, 4
      %v5612 = vor.u32 %v5611, %v5607
      %v5613 = vrot.slane %v5612, 4
      %v5615 = vshll.u32 %v5366, 16
      %v5617 = vrot.slane %v5615, 5
      %v5618 = vsel %vm1525, %v5613, %v5617
      %v5619 = vshrl.u32 %v5366, 16
      %v5621 = vrot.slane %v5619, 4
      %v5622 = vor.u32 %v5621, %v5617
      %v5623 = vrot.slane %v5622, 4
      %v5625 = vshll.u32 %v5367, 16
      %v5627 = vrot.slane %v5625, 5
      %v5628 = vsel %vm1525, %v5623, %v5627
      %v5629 = vshrl.u32 %v5367, 16
      %v5631 = vrot.slane %v5629, 4
      %v5632 = vor.u32 %v5631, %v5627
      %v5633 = vrot.slane %v5632, 4
      %v5635 = vshll.u32 %v5368, 16
      %v5637 = vrot.slane %v5635, 5
      %v5638 = vsel %vm1525, %v5633, %v5637
      %v5639 = vshrl.u32 %v5368, 16
      %v5641 = vrot.slane %v5639, 4
      %v5642 = vor.u32 %v5641, %v5637
      %v5643 = vrot.slane %v5642, 4
      %v5645 = vshll.u32 %v5369, 16
      %v5647 = vrot.slane %v5645, 5
      %v5648 = vsel %vm1525, %v5643, %v5647
      %v5649 = vshrl.u32 %v5369, 16
      %v5651 = vrot.slane %v5649, 4
      %v5652 = vor.u32 %v5651, %v5647
      %v5653 = vrot.slane %v5652, 4
      %v5655 = vshll.u32 %v5370, 16
      %v5657 = vrot.slane %v5655, 5
      %v5658 = vsel %vm1525, %v5653, %v5657
      %v5659 = vshrl.u32 %v5370, 16
      %v5661 = vrot.slane %v5659, 4
      %v5662 = vor.u32 %v5661, %v5657
      %v5663 = vrot.slane %v5662, 4
      %v5665 = vshll.u32 %v5371, 16
      %v5667 = vrot.slane %v5665, 5
      %v5668 = vsel %vm1525, %v5663, %v5667
      %v5669 = vshrl.u32 %v5371, 16
      %v5671 = vrot.slane %v5669, 4
      %v5672 = vor.u32 %v5671, %v5667
      %v5673 = vrot.slane %v5672, 4
      %v5675 = vshll.u32 %v5372, 16
      %v5677 = vrot.slane %v5675, 5
      %v5678 = vsel %vm1525, %v5673, %v5677
      %v5679 = vshrl.u32 %v5372, 16
      %v5681 = vrot.slane %v5679, 4
      %v5682 = vor.u32 %v5681, %v5677
      %v5683 = vrot.slane %v5682, 4
      %v5685 = vshll.u32 %v5373, 16
      %v5687 = vrot.slane %v5685, 5
      %v5688 = vsel %vm1525, %v5683, %v5687
      %v5689 = vshrl.u32 %v5373, 16
      %v5691 = vrot.slane %v5689, 4
      %v5692 = vor.u32 %v5691, %v5687
      %v5693 = vrot.slane %v5692, 4
      %v5695 = vshll.u32 %v5374, 16
      %v5697 = vrot.slane %v5695, 5
      %v5698 = vsel %vm1525, %v5693, %v5697
      %5699 = vrot.lane.b32.xlu0 %v5388, 32
      %v5700 = vpop.permute.xlu0 %5699
      %5701 = vrot.lane.b32.xlu0 %v5398, 32
      %v5702 = vpop.permute.xlu0 %5701
      %5703 = vrot.lane.b32.xlu0 %v5408, 32
      %v5704 = vpop.permute.xlu0 %5703
      %5705 = vrot.lane.b32.xlu0 %v5418, 32
      %v5706 = vpop.permute.xlu0 %5705
      %5707 = vrot.lane.b32.xlu0 %v5428, 32
      %v5708 = vpop.permute.xlu0 %5707
      %5709 = vrot.lane.b32.xlu0 %v5438, 32
      %v5710 = vpop.permute.xlu0 %5709
      %5711 = vrot.lane.b32.xlu0 %v5448, 32
      %v5712 = vpop.permute.xlu0 %5711
      %5713 = vrot.lane.b32.xlu0 %v5458, 32
      %v5714 = vpop.permute.xlu0 %5713
      %5715 = vrot.lane.b32.xlu0 %v5468, 32
      %v5716 = vpop.permute.xlu0 %5715
      %5717 = vrot.lane.b32.xlu0 %v5478, 32
      %v5718 = vpop.permute.xlu0 %5717
      %5719 = vrot.lane.b32.xlu0 %v5488, 32
      %v5720 = vpop.permute.xlu0 %5719
      %5721 = vrot.lane.b32.xlu0 %v5498, 32
      %v5722 = vpop.permute.xlu0 %5721
      %5723 = vrot.lane.b32.xlu0 %v5508, 32
      %v5724 = vpop.permute.xlu0 %5723
      %5725 = vrot.lane.b32.xlu0 %v5518, 32
      %v5726 = vpop.permute.xlu0 %5725
      %5727 = vrot.lane.b32.xlu0 %v5528, 32
      %v5728 = vpop.permute.xlu0 %5727
      %5729 = vrot.lane.b32.xlu0 %v5538, 32
      %v5730 = vpop.permute.xlu0 %5729
      %5731 = vrot.lane.b32.xlu0 %v5548, 32
      %v5732 = vpop.permute.xlu0 %5731
      %5733 = vrot.lane.b32.xlu0 %v5558, 32
      %v5734 = vpop.permute.xlu0 %5733
      %5735 = vrot.lane.b32.xlu0 %v5568, 32
      %v5736 = vpop.permute.xlu0 %5735
      %5737 = vrot.lane.b32.xlu0 %v5578, 32
      %v5738 = vpop.permute.xlu0 %5737
      %5739 = vrot.lane.b32.xlu0 %v5588, 32
      %v5740 = vpop.permute.xlu0 %5739
      %5741 = vrot.lane.b32.xlu0 %v5598, 32
      %v5742 = vpop.permute.xlu0 %5741
      %5743 = vrot.lane.b32.xlu0 %v5608, 32
      %v5744 = vpop.permute.xlu0 %5743
      %5745 = vrot.lane.b32.xlu0 %v5618, 32
      %v5746 = vpop.permute.xlu0 %5745
      %5747 = vrot.lane.b32.xlu0 %v5628, 32
      %v5748 = vpop.permute.xlu0 %5747
      %5749 = vrot.lane.b32.xlu0 %v5638, 32
      %v5750 = vpop.permute.xlu0 %5749
      %5751 = vrot.lane.b32.xlu0 %v5648, 32
      %v5752 = vpop.permute.xlu0 %5751
      %5753 = vrot.lane.b32.xlu0 %v5658, 32
      %v5754 = vpop.permute.xlu0 %5753
      %5755 = vrot.lane.b32.xlu0 %v5668, 32
      %v5756 = vpop.permute.xlu0 %5755
      %5757 = vrot.lane.b32.xlu0 %v5678, 32
      %v5758 = vpop.permute.xlu0 %5757
      %5759 = vrot.lane.b32.xlu0 %v5688, 32
      %v5760 = vpop.permute.xlu0 %5759
      %5761 = vrot.lane.b32.xlu0 %v5698, 32
      %v5762 = vpop.permute.xlu0 %5761
      %vm5795 = vcmask 290048
      %5796 = vst.msk [vmem:[#allocation3] sm:$0xf] %vm5795, %v5700
      %5797 = vst.msk [vmem:[#allocation3 + $0x4] sm:$0xf] %vm5795, %v5702
      %5798 = vst.msk [vmem:[#allocation3 + $0x8] sm:$0xf] %vm5795, %v5704
      %5799 = vst.msk [vmem:[#allocation3 + $0xc] sm:$0xf] %vm5795, %v5706
      %5800 = vst.msk [vmem:[#allocation3 + $0x10] sm:$0xf] %vm5795, %v5708
      %5801 = vst.msk [vmem:[#allocation3 + $0x14] sm:$0xf] %vm5795, %v5710
      %5802 = vst.msk [vmem:[#allocation3 + $0x18] sm:$0xf] %vm5795, %v5712
      %5803 = vst.msk [vmem:[#allocation3 + $0x1c] sm:$0xf] %vm5795, %v5714
      %5804 = vst.msk [vmem:[#allocation3 + $0x20] sm:$0xf] %vm5795, %v5716
      %5805 = vst.msk [vmem:[#allocation3 + $0x24] sm:$0xf] %vm5795, %v5718
      %5806 = vst.msk [vmem:[#allocation3 + $0x28] sm:$0xf] %vm5795, %v5720
      %5807 = vst.msk [vmem:[#allocation3 + $0x2c] sm:$0xf] %vm5795, %v5722
      %5808 = vst.msk [vmem:[#allocation3 + $0x30] sm:$0xf] %vm5795, %v5724
      %5809 = vst.msk [vmem:[#allocation3 + $0x34] sm:$0xf] %vm5795, %v5726
      %5810 = vst.msk [vmem:[#allocation3 + $0x38] sm:$0xf] %vm5795, %v5728
      %5811 = vst.msk [vmem:[#allocation3 + $0x3c] sm:$0xf] %vm5795, %v5730
      %5812 = vst.msk [vmem:[#allocation3 + $0x40] sm:$0xf] %vm5795, %v5732
      %5813 = vst.msk [vmem:[#allocation3 + $0x44] sm:$0xf] %vm5795, %v5734
      %5814 = vst.msk [vmem:[#allocation3 + $0x48] sm:$0xf] %vm5795, %v5736
      %5815 = vst.msk [vmem:[#allocation3 + $0x4c] sm:$0xf] %vm5795, %v5738
      %5816 = vst.msk [vmem:[#allocation3 + $0x50] sm:$0xf] %vm5795, %v5740
      %5817 = vst.msk [vmem:[#allocation3 + $0x54] sm:$0xf] %vm5795, %v5742
      %5818 = vst.msk [vmem:[#allocation3 + $0x58] sm:$0xf] %vm5795, %v5744
      %5819 = vst.msk [vmem:[#allocation3 + $0x5c] sm:$0xf] %vm5795, %v5746
      %5820 = vst.msk [vmem:[#allocation3 + $0x60] sm:$0xf] %vm5795, %v5748
      %5821 = vst.msk [vmem:[#allocation3 + $0x64] sm:$0xf] %vm5795, %v5750
      %5822 = vst.msk [vmem:[#allocation3 + $0x68] sm:$0xf] %vm5795, %v5752
      %5823 = vst.msk [vmem:[#allocation3 + $0x6c] sm:$0xf] %vm5795, %v5754
      %5824 = vst.msk [vmem:[#allocation3 + $0x70] sm:$0xf] %vm5795, %v5756
      %5825 = vst.msk [vmem:[#allocation3 + $0x74] sm:$0xf] %vm5795, %v5758
      %5826 = vst.msk [vmem:[#allocation3 + $0x78] sm:$0xf] %vm5795, %v5760
      %5827 = vst.msk [vmem:[#allocation3 + $0x7c] sm:$0xf] %vm5795, %v5762
      %v5828 = vld [vmem:[#allocation3] sm:$0xf]
      %v5829 = vld [vmem:[#allocation3 + $0x4] sm:$0xf]
      %v5830 = vld [vmem:[#allocation3 + $0x8] sm:$0xf]
      %v5831 = vld [vmem:[#allocation3 + $0xc] sm:$0xf]
      %v5832 = vld [vmem:[#allocation3 + $0x10] sm:$0xf]
      %v5833 = vld [vmem:[#allocation3 + $0x14] sm:$0xf]
      %v5834 = vld [vmem:[#allocation3 + $0x18] sm:$0xf]
      %v5835 = vld [vmem:[#allocation3 + $0x1c] sm:$0xf]
      %v5836 = vld [vmem:[#allocation3 + $0x20] sm:$0xf]
      %v5837 = vld [vmem:[#allocation3 + $0x24] sm:$0xf]
      %v5838 = vld [vmem:[#allocation3 + $0x28] sm:$0xf]
      %v5839 = vld [vmem:[#allocation3 + $0x2c] sm:$0xf]
      %v5840 = vld [vmem:[#allocation3 + $0x30] sm:$0xf]
      %v5841 = vld [vmem:[#allocation3 + $0x34] sm:$0xf]
      %v5842 = vld [vmem:[#allocation3 + $0x38] sm:$0xf]
      %v5843 = vld [vmem:[#allocation3 + $0x3c] sm:$0xf]
      %v5844 = vld [vmem:[#allocation3 + $0x40] sm:$0xf]
      %v5845 = vld [vmem:[#allocation3 + $0x44] sm:$0xf]
      %v5846 = vld [vmem:[#allocation3 + $0x48] sm:$0xf]
      %v5847 = vld [vmem:[#allocation3 + $0x4c] sm:$0xf]
      %v5848 = vld [vmem:[#allocation3 + $0x50] sm:$0xf]
      %v5849 = vld [vmem:[#allocation3 + $0x54] sm:$0xf]
      %v5850 = vld [vmem:[#allocation3 + $0x58] sm:$0xf]
      %v5851 = vld [vmem:[#allocation3 + $0x5c] sm:$0xf]
      %v5852 = vld [vmem:[#allocation3 + $0x60] sm:$0xf]
      %v5853 = vld [vmem:[#allocation3 + $0x64] sm:$0xf]
      %v5854 = vld [vmem:[#allocation3 + $0x68] sm:$0xf]
      %v5855 = vld [vmem:[#allocation3 + $0x6c] sm:$0xf]
      %v5856 = vld [vmem:[#allocation3 + $0x70] sm:$0xf]
      %v5857 = vld [vmem:[#allocation3 + $0x74] sm:$0xf]
      %v5858 = vld [vmem:[#allocation3 + $0x78] sm:$0xf]
      %v5859 = vld [vmem:[#allocation3 + $0x7c] sm:$0xf]
      %v5860 = vld [vmem:[%s3] sm:$0xf]
      %v5861 = vld [vmem:[%s3 + $0x4] sm:$0xf]
      %v5862 = vld [vmem:[%s3 + $0x8] sm:$0xf]
      %v5863 = vld [vmem:[%s3 + $0xc] sm:$0xf]
      %v5864 = vld [vmem:[%s3 + $0x10] sm:$0x3]
      %v5865 = vld [vmem:[%s4] sm:$0x1]
      %v5867 = vlaneseq
      %v5868 = vshrl.u32 %v5867, 7
      %v5869 = vsub.s32 0, %v5868
      %v5870 = vrot.slane %v5865, %v5869
      %v5904 = vunpack.c.l.b16 %v5828
      %v5905 = vunpack.c.l.b16 %v5829
      %v5906 = vunpack.c.l.b16 %v5830
      %v5907 = vunpack.c.l.b16 %v5831
      %v5908 = vunpack.c.l.b16 %v5832
      %v5909 = vunpack.c.l.b16 %v5833
      %v5910 = vunpack.c.l.b16 %v5834
      %v5911 = vunpack.c.l.b16 %v5835
      %v5912 = vunpack.c.l.b16 %v5836
      %v5913 = vunpack.c.l.b16 %v5837
      %v5914 = vunpack.c.l.b16 %v5838
      %v5915 = vunpack.c.l.b16 %v5839
      %v5916 = vunpack.c.l.b16 %v5840
      %v5917 = vunpack.c.l.b16 %v5841
      %v5918 = vunpack.c.l.b16 %v5842
      %v5919 = vunpack.c.l.b16 %v5843
      %v5920 = vunpack.c.l.b16 %v5844
      %v5921 = vunpack.c.l.b16 %v5845
      %v5922 = vunpack.c.l.b16 %v5846
      %v5923 = vunpack.c.l.b16 %v5847
      %v5924 = vunpack.c.l.b16 %v5848
      %v5925 = vunpack.c.l.b16 %v5849
      %v5926 = vunpack.c.l.b16 %v5850
      %v5927 = vunpack.c.l.b16 %v5851
      %v5928 = vunpack.c.l.b16 %v5852
      %v5929 = vunpack.c.l.b16 %v5853
      %v5930 = vunpack.c.l.b16 %v5854
      %v5931 = vunpack.c.l.b16 %v5855
      %v5932 = vunpack.c.l.b16 %v5856
      %v5933 = vunpack.c.l.b16 %v5857
      %v5934 = vunpack.c.l.b16 %v5858
      %v5935 = vunpack.c.l.b16 %v5859
      %v5936 = vpack.c.b16 %v5905, %v5904
      %v5937 = vpack.c.b16 %v5907, %v5906
      %v5938 = vpack.c.b16 %v5909, %v5908
      %v5939 = vpack.c.b16 %v5911, %v5910
      %v5940 = vpack.c.b16 %v5913, %v5912
      %v5941 = vpack.c.b16 %v5915, %v5914
      %v5942 = vpack.c.b16 %v5917, %v5916
      %v5943 = vpack.c.b16 %v5919, %v5918
      %v5944 = vpack.c.b16 %v5921, %v5920
      %v5945 = vpack.c.b16 %v5923, %v5922
      %v5946 = vpack.c.b16 %v5925, %v5924
      %v5947 = vpack.c.b16 %v5927, %v5926
      %v5948 = vpack.c.b16 %v5929, %v5928
      %v5949 = vpack.c.b16 %v5931, %v5930
      %v5950 = vpack.c.b16 %v5933, %v5932
      %v5951 = vpack.c.b16 %v5935, %v5934
      %v5957 = vunpack.c.l.b16 %v5860
      %v5958 = vunpack.c.l.b16 %v5861
      %v5959 = vunpack.c.l.b16 %v5862
      %v5960 = vunpack.c.l.b16 %v5863
      %v5961 = vunpack.c.l.b16 %v5864
      %v5962 = vpack.c.b16 %v5958, %v5957
      %v5963 = vpack.c.b16 %v5960, %v5959
      %v5964 = vpack.c.b16 %v5961, %v5961
      %vm5967 = vcmask 293888
      %v5969 = vsel %vm5967, %v5936, 0
      %v5972 = vsel %vm5967, %v5937, 0
      %v5975 = vsel %vm5967, %v5938, 0
      %v5978 = vsel %vm5967, %v5939, 0
      %v5981 = vsel %vm5967, %v5940, 0
      %v5984 = vsel %vm5967, %v5941, 0
      %v5987 = vsel %vm5967, %v5942, 0
      %v5990 = vsel %vm5967, %v5943, 0
      %v5993 = vsel %vm5967, %v5944, 0
      %v5996 = vsel %vm5967, %v5945, 0
      %v5999 = vsel %vm5967, %v5946, 0
      %v6002 = vsel %vm5967, %v5947, 0
      %v6005 = vsel %vm5967, %v5948, 0
      %v6008 = vsel %vm5967, %v5949, 0
      %v6011 = vsel %vm5967, %v5950, 0
      %v6014 = vsel %vm5967, %v5951, 0
      %v6017 = vsel %vm460, %v5964, 0
      %6019 = vmatprep.subr.bf16.mxu0 0
      %6020 = vmatpush1.bf16.msra.mxu0 0
      %6021 = vmatprep.subr.bf16.mxu0 0
      %6022 = vmatpush1.bf16.msra.mxu0 0
      %6023 = vmatprep.subr.bf16.mxu0 0
      %6024 = vmatpush1.bf16.msra.mxu0 0
      %6025 = vmatprep.subr.bf16.mxu0 0
      %6026 = vmatpush1.bf16.msra.mxu0 0
      %6027 = vmatprep.subr.bf16.mxu0 0
      %6028 = vmatpush1.bf16.msra.mxu0 0
      %6029 = vmatprep.subr.bf16.mxu0 0
      %6030 = vmatpush1.bf16.msra.mxu0 %v6017
      %6031 = vmatprep.subr.bf16.mxu0 0
      %6032 = vmatpush1.bf16.msra.mxu0 %v5963
      %6033 = vmatprep.subr.bf16.mxu0 0
      %6034 = vmatpush1.bf16.msra.mxu0 %v5962
      %6035 = vmatprep.subr.bf16.mxu0 0
      %6036 = vmatpush2.bf16.msra.mxu0 0
      %6037 = vmatprep.subr.bf16.mxu0 0
      %6038 = vmatpush2.bf16.msra.mxu0 0
      %6039 = vmatprep.subr.bf16.mxu0 0
      %6040 = vmatpush2.bf16.msra.mxu0 0
      %6041 = vmatprep.subr.bf16.mxu0 0
      %6042 = vmatpush2.bf16.msra.mxu0 0
      %6043 = vmatprep.subr.bf16.mxu0 0
      %6044 = vmatpush2.bf16.msra.mxu0 0
      %6045 = vmatprep.subr.bf16.mxu0 0
      %6046 = vmatpush2.bf16.msra.mxu0 0
      %6047 = vmatprep.subr.bf16.mxu0 0
      %6048 = vmatpush2.bf16.msra.mxu0 0
      %6049 = vmatprep.subr.bf16.mxu0 0
      %6050 = vmatpush2.bf16.msra.mxu0 0
      %6051 = vmatprep.mubr.bf16.mxu0 0
      %6052 = vmatmul.mubr.bf16.gmra.mxu0 %v5969
      %v6053 = vpop.f32.mrf.mxu0
      %v6054 = vadd.f32 %v5870, %v6053
      %v6055 = vpop.f32.mrf.mxu0
      %v6056 = vpop.f32.mrf.mxu0
      %v6057 = vadd.f32 %v5870, %v6056
      %v6058 = vpop.f32.mrf.mxu0
      %6059 = vmatprep.mubr.bf16.mxu0 0
      %6060 = vmatmul.mubr.bf16.gmra.mxu0 %v5972
      %v6061 = vpop.f32.mrf.mxu0
      %v6062 = vadd.f32 %v5870, %v6061
      %v6063 = vpop.f32.mrf.mxu0
      %v6064 = vpop.f32.mrf.mxu0
      %v6065 = vadd.f32 %v5870, %v6064
      %v6066 = vpop.f32.mrf.mxu0
      %6067 = vmatprep.mubr.bf16.mxu0 0
      %6068 = vmatmul.mubr.bf16.gmra.mxu0 %v5975
      %v6069 = vpop.f32.mrf.mxu0
      %v6070 = vadd.f32 %v5870, %v6069
      %v6071 = vpop.f32.mrf.mxu0
      %v6072 = vpop.f32.mrf.mxu0
      %v6073 = vadd.f32 %v5870, %v6072
      %v6074 = vpop.f32.mrf.mxu0
      %6075 = vmatprep.mubr.bf16.mxu0 0
      %6076 = vmatmul.mubr.bf16.gmra.mxu0 %v5978
      %v6077 = vpop.f32.mrf.mxu0
      %v6078 = vadd.f32 %v5870, %v6077
      %v6079 = vpop.f32.mrf.mxu0
      %v6080 = vpop.f32.mrf.mxu0
      %v6081 = vadd.f32 %v5870, %v6080
      %v6082 = vpop.f32.mrf.mxu0
      %6083 = vmatprep.mubr.bf16.mxu0 0
      %6084 = vmatmul.mubr.bf16.gmra.mxu0 %v5981
      %v6085 = vpop.f32.mrf.mxu0
      %v6086 = vadd.f32 %v5870, %v6085
      %v6087 = vpop.f32.mrf.mxu0
      %v6088 = vpop.f32.mrf.mxu0
      %v6089 = vadd.f32 %v5870, %v6088
      %v6090 = vpop.f32.mrf.mxu0
      %6091 = vmatprep.mubr.bf16.mxu0 0
      %6092 = vmatmul.mubr.bf16.gmra.mxu0 %v5984
      %v6093 = vpop.f32.mrf.mxu0
      %v6094 = vadd.f32 %v5870, %v6093
      %v6095 = vpop.f32.mrf.mxu0
      %v6096 = vpop.f32.mrf.mxu0
      %v6097 = vadd.f32 %v5870, %v6096
      %v6098 = vpop.f32.mrf.mxu0
      %6099 = vmatprep.mubr.bf16.mxu0 0
      %6100 = vmatmul.mubr.bf16.gmra.mxu0 %v5987
      %v6101 = vpop.f32.mrf.mxu0
      %v6102 = vadd.f32 %v5870, %v6101
      %v6103 = vpop.f32.mrf.mxu0
      %v6104 = vpop.f32.mrf.mxu0
      %v6105 = vadd.f32 %v5870, %v6104
      %v6106 = vpop.f32.mrf.mxu0
      %6107 = vmatprep.mubr.bf16.mxu0 0
      %6108 = vmatmul.mubr.bf16.gmra.mxu0 %v5990
      %v6109 = vpop.f32.mrf.mxu0
      %v6110 = vadd.f32 %v5870, %v6109
      %v6111 = vpop.f32.mrf.mxu0
      %v6112 = vpop.f32.mrf.mxu0
      %v6113 = vadd.f32 %v5870, %v6112
      %v6114 = vpop.f32.mrf.mxu0
      %6115 = vmatprep.mubr.bf16.mxu0 0
      %6116 = vmatmul.mubr.bf16.gmra.mxu0 %v5993
      %v6117 = vpop.f32.mrf.mxu0
      %v6118 = vadd.f32 %v5870, %v6117
      %v6119 = vpop.f32.mrf.mxu0
      %v6120 = vpop.f32.mrf.mxu0
      %v6121 = vadd.f32 %v5870, %v6120
      %v6122 = vpop.f32.mrf.mxu0
      %6123 = vmatprep.mubr.bf16.mxu0 0
      %6124 = vmatmul.mubr.bf16.gmra.mxu0 %v5996
      %v6125 = vpop.f32.mrf.mxu0
      %v6126 = vadd.f32 %v5870, %v6125
      %v6127 = vpop.f32.mrf.mxu0
      %v6128 = vpop.f32.mrf.mxu0
      %v6129 = vadd.f32 %v5870, %v6128
      %v6130 = vpop.f32.mrf.mxu0
      %6131 = vmatprep.mubr.bf16.mxu0 0
      %6132 = vmatmul.mubr.bf16.gmra.mxu0 %v5999
      %v6133 = vpop.f32.mrf.mxu0
      %v6134 = vadd.f32 %v5870, %v6133
      %v6135 = vpop.f32.mrf.mxu0
      %v6136 = vpop.f32.mrf.mxu0
      %v6137 = vadd.f32 %v5870, %v6136
      %v6138 = vpop.f32.mrf.mxu0
      %6139 = vmatprep.mubr.bf16.mxu0 0
      %6140 = vmatmul.mubr.bf16.gmra.mxu0 %v6002
      %v6141 = vpop.f32.mrf.mxu0
      %v6142 = vadd.f32 %v5870, %v6141
      %v6143 = vpop.f32.mrf.mxu0
      %v6144 = vpop.f32.mrf.mxu0
      %v6145 = vadd.f32 %v5870, %v6144
      %v6146 = vpop.f32.mrf.mxu0
      %6147 = vmatprep.mubr.bf16.mxu0 0
      %6148 = vmatmul.mubr.bf16.gmra.mxu0 %v6005
      %v6149 = vpop.f32.mrf.mxu0
      %v6150 = vadd.f32 %v5870, %v6149
      %v6151 = vpop.f32.mrf.mxu0
      %v6152 = vpop.f32.mrf.mxu0
      %v6153 = vadd.f32 %v5870, %v6152
      %v6154 = vpop.f32.mrf.mxu0
      %6155 = vmatprep.mubr.bf16.mxu0 0
      %6156 = vmatmul.mubr.bf16.gmra.mxu0 %v6008
      %v6157 = vpop.f32.mrf.mxu0
      %v6158 = vadd.f32 %v5870, %v6157
      %v6159 = vpop.f32.mrf.mxu0
      %v6160 = vpop.f32.mrf.mxu0
      %v6161 = vadd.f32 %v5870, %v6160
      %v6162 = vpop.f32.mrf.mxu0
      %6163 = vmatprep.mubr.bf16.mxu0 0
      %6164 = vmatmul.mubr.bf16.gmra.mxu0 %v6011
      %v6165 = vpop.f32.mrf.mxu0
      %v6166 = vadd.f32 %v5870, %v6165
      %v6167 = vpop.f32.mrf.mxu0
      %v6168 = vpop.f32.mrf.mxu0
      %v6169 = vadd.f32 %v5870, %v6168
      %v6170 = vpop.f32.mrf.mxu0
      %6171 = vmatprep.mubr.bf16.mxu0 0
      %6172 = vmatmul.mubr.bf16.gmra.mxu0 %v6014
      %v6173 = vpop.f32.mrf.mxu0
      %v6174 = vadd.f32 %v5870, %v6173
      %v6175 = vpop.f32.mrf.mxu0
      %v6176 = vpop.f32.mrf.mxu0
      %v6177 = vadd.f32 %v5870, %v6176
      %v6178 = vpop.f32.mrf.mxu0
      %6179 = vdwg.mxu0
      %v6180 = vmax.f32 %v6054, 0.0
      %v6181 = vmax.f32 %v6057, 0.0
      %v6182 = vmax.f32 %v6062, 0.0
      %v6183 = vmax.f32 %v6065, 0.0
      %v6184 = vmax.f32 %v6070, 0.0
      %v6185 = vmax.f32 %v6073, 0.0
      %v6186 = vmax.f32 %v6078, 0.0
      %v6187 = vmax.f32 %v6081, 0.0
      %v6188 = vmax.f32 %v6086, 0.0
      %v6189 = vmax.f32 %v6089, 0.0
      %v6190 = vmax.f32 %v6094, 0.0
      %v6191 = vmax.f32 %v6097, 0.0
      %v6192 = vmax.f32 %v6102, 0.0
      %v6193 = vmax.f32 %v6105, 0.0
      %v6194 = vmax.f32 %v6110, 0.0
      %v6195 = vmax.f32 %v6113, 0.0
      %v6196 = vmax.f32 %v6118, 0.0
      %v6197 = vmax.f32 %v6121, 0.0
      %v6198 = vmax.f32 %v6126, 0.0
      %v6199 = vmax.f32 %v6129, 0.0
      %v6200 = vmax.f32 %v6134, 0.0
      %v6201 = vmax.f32 %v6137, 0.0
      %v6202 = vmax.f32 %v6142, 0.0
      %v6203 = vmax.f32 %v6145, 0.0
      %v6204 = vmax.f32 %v6150, 0.0
      %v6205 = vmax.f32 %v6153, 0.0
      %v6206 = vmax.f32 %v6158, 0.0
      %v6207 = vmax.f32 %v6161, 0.0
      %v6208 = vmax.f32 %v6166, 0.0
      %v6209 = vmax.f32 %v6169, 0.0
      %v6210 = vmax.f32 %v6174, 0.0
      %v6211 = vmax.f32 %v6177, 0.0
      %v6212 = vpack.c.bf16 %v6181, %v6180
      %v6213 = vpack.c.bf16 %v6183, %v6182
      %v6214 = vpack.c.bf16 %v6185, %v6184
      %v6215 = vpack.c.bf16 %v6187, %v6186
      %v6216 = vpack.c.bf16 %v6189, %v6188
      %v6217 = vpack.c.bf16 %v6191, %v6190
      %v6218 = vpack.c.bf16 %v6193, %v6192
      %v6219 = vpack.c.bf16 %v6195, %v6194
      %v6220 = vpack.c.bf16 %v6197, %v6196
      %v6221 = vpack.c.bf16 %v6199, %v6198
      %v6222 = vpack.c.bf16 %v6201, %v6200
      %v6223 = vpack.c.bf16 %v6203, %v6202
      %v6224 = vpack.c.bf16 %v6205, %v6204
      %v6225 = vpack.c.bf16 %v6207, %v6206
      %v6226 = vpack.c.bf16 %v6209, %v6208
      %v6227 = vpack.c.bf16 %v6211, %v6210
      %v6228 = vld [vmem:[%s5] sm:$0x3]
      %v6229 = vld [vmem:[%s6] sm:$0x1]
      %v6231 = vlaneseq
      %v6232 = vshrl.u32 %v6231, 7
      %v6233 = vsub.s32 0, %v6232
      %v6234 = vrot.slane %v6229, %v6233
      %v6237 = vsel %vm411, %v6212, 0
      %v6240 = vsel %vm411, %v6213, 0
      %v6243 = vsel %vm411, %v6214, 0
      %v6246 = vsel %vm411, %v6215, 0
      %v6249 = vsel %vm411, %v6216, 0
      %v6252 = vsel %vm411, %v6217, 0
      %v6255 = vsel %vm411, %v6218, 0
      %v6258 = vsel %vm411, %v6219, 0
      %v6261 = vsel %vm411, %v6220, 0
      %v6264 = vsel %vm411, %v6221, 0
      %v6267 = vsel %vm411, %v6222, 0
      %v6270 = vsel %vm411, %v6223, 0
      %v6273 = vsel %vm411, %v6224, 0
      %v6276 = vsel %vm411, %v6225, 0
      %v6279 = vsel %vm411, %v6226, 0
      %v6282 = vsel %vm411, %v6227, 0
      %v6285 = vsel %vm460, %v6228, 0
      %6287 = vmatprep.subr.bf16.mxu0 0
      %6288 = vmatpush1.bf16.msra.mxu0 0
      %6289 = vmatprep.subr.bf16.mxu0 0
      %6290 = vmatpush1.bf16.msra.mxu0 0
      %6291 = vmatprep.subr.bf16.mxu0 0
      %6292 = vmatpush1.bf16.msra.mxu0 0
      %6293 = vmatprep.subr.bf16.mxu0 0
      %6294 = vmatpush1.bf16.msra.mxu0 0
      %6295 = vmatprep.subr.bf16.mxu0 0
      %6296 = vmatpush1.bf16.msra.mxu0 0
      %6297 = vmatprep.subr.bf16.mxu0 0
      %6298 = vmatpush1.bf16.msra.mxu0 0
      %6299 = vmatprep.subr.bf16.mxu0 0
      %6300 = vmatpush1.bf16.msra.mxu0 0
      %6301 = vmatprep.subr.bf16.mxu0 0
      %6302 = vmatpush1.bf16.msra.mxu0 %v6285
      %6303 = vmatprep.subr.bf16.mxu0 0
      %6304 = vmatpush2.bf16.msra.mxu0 0
      %6305 = vmatprep.subr.bf16.mxu0 0
      %6306 = vmatpush2.bf16.msra.mxu0 0
      %6307 = vmatprep.subr.bf16.mxu0 0
      %6308 = vmatpush2.bf16.msra.mxu0 0
      %6309 = vmatprep.subr.bf16.mxu0 0
      %6310 = vmatpush2.bf16.msra.mxu0 0
      %6311 = vmatprep.subr.bf16.mxu0 0
      %6312 = vmatpush2.bf16.msra.mxu0 0
      %6313 = vmatprep.subr.bf16.mxu0 0
      %6314 = vmatpush2.bf16.msra.mxu0 0
      %6315 = vmatprep.subr.bf16.mxu0 0
      %6316 = vmatpush2.bf16.msra.mxu0 0
      %6317 = vmatprep.subr.bf16.mxu0 0
      %6318 = vmatpush2.bf16.msra.mxu0 0
      %6319 = vmatprep.mubr.bf16.mxu0 0
      %6320 = vmatmul.mubr.bf16.gmra.mxu0 %v6237
      %v6321 = vpop.f32.mrf.mxu0
      %v6322 = vadd.f32 %v6234, %v6321
      %v6323 = vpop.f32.mrf.mxu0
      %v6324 = vpop.f32.mrf.mxu0
      %v6325 = vadd.f32 %v6234, %v6324
      %v6326 = vpop.f32.mrf.mxu0
      %6327 = vmatprep.mubr.bf16.mxu0 0
      %6328 = vmatmul.mubr.bf16.gmra.mxu0 %v6240
      %v6329 = vpop.f32.mrf.mxu0
      %v6330 = vadd.f32 %v6234, %v6329
      %v6331 = vpop.f32.mrf.mxu0
      %v6332 = vpop.f32.mrf.mxu0
      %v6333 = vadd.f32 %v6234, %v6332
      %v6334 = vpop.f32.mrf.mxu0
      %6335 = vmatprep.mubr.bf16.mxu0 0
      %6336 = vmatmul.mubr.bf16.gmra.mxu0 %v6243
      %v6337 = vpop.f32.mrf.mxu0
      %v6338 = vadd.f32 %v6234, %v6337
      %v6339 = vpop.f32.mrf.mxu0
      %v6340 = vpop.f32.mrf.mxu0
      %v6341 = vadd.f32 %v6234, %v6340
      %v6342 = vpop.f32.mrf.mxu0
      %6343 = vmatprep.mubr.bf16.mxu0 0
      %6344 = vmatmul.mubr.bf16.gmra.mxu0 %v6246
      %v6345 = vpop.f32.mrf.mxu0
      %v6346 = vadd.f32 %v6234, %v6345
      %v6347 = vpop.f32.mrf.mxu0
      %v6348 = vpop.f32.mrf.mxu0
      %v6349 = vadd.f32 %v6234, %v6348
      %v6350 = vpop.f32.mrf.mxu0
      %6351 = vmatprep.mubr.bf16.mxu0 0
      %6352 = vmatmul.mubr.bf16.gmra.mxu0 %v6249
      %v6353 = vpop.f32.mrf.mxu0
      %v6354 = vadd.f32 %v6234, %v6353
      %v6355 = vpop.f32.mrf.mxu0
      %v6356 = vpop.f32.mrf.mxu0
      %v6357 = vadd.f32 %v6234, %v6356
      %v6358 = vpop.f32.mrf.mxu0
      %6359 = vmatprep.mubr.bf16.mxu0 0
      %6360 = vmatmul.mubr.bf16.gmra.mxu0 %v6252
      %v6361 = vpop.f32.mrf.mxu0
      %v6362 = vadd.f32 %v6234, %v6361
      %v6363 = vpop.f32.mrf.mxu0
      %v6364 = vpop.f32.mrf.mxu0
      %v6365 = vadd.f32 %v6234, %v6364
      %v6366 = vpop.f32.mrf.mxu0
      %6367 = vmatprep.mubr.bf16.mxu0 0
      %6368 = vmatmul.mubr.bf16.gmra.mxu0 %v6255
      %v6369 = vpop.f32.mrf.mxu0
      %v6370 = vadd.f32 %v6234, %v6369
      %v6371 = vpop.f32.mrf.mxu0
      %v6372 = vpop.f32.mrf.mxu0
      %v6373 = vadd.f32 %v6234, %v6372
      %v6374 = vpop.f32.mrf.mxu0
      %6375 = vmatprep.mubr.bf16.mxu0 0
      %6376 = vmatmul.mubr.bf16.gmra.mxu0 %v6258
      %v6377 = vpop.f32.mrf.mxu0
      %v6378 = vadd.f32 %v6234, %v6377
      %v6379 = vpop.f32.mrf.mxu0
      %v6380 = vpop.f32.mrf.mxu0
      %v6381 = vadd.f32 %v6234, %v6380
      %v6382 = vpop.f32.mrf.mxu0
      %6383 = vmatprep.mubr.bf16.mxu0 0
      %6384 = vmatmul.mubr.bf16.gmra.mxu0 %v6261
      %v6385 = vpop.f32.mrf.mxu0
      %v6386 = vadd.f32 %v6234, %v6385
      %v6387 = vpop.f32.mrf.mxu0
      %v6388 = vpop.f32.mrf.mxu0
      %v6389 = vadd.f32 %v6234, %v6388
      %v6390 = vpop.f32.mrf.mxu0
      %6391 = vmatprep.mubr.bf16.mxu0 0
      %6392 = vmatmul.mubr.bf16.gmra.mxu0 %v6264
      %v6393 = vpop.f32.mrf.mxu0
      %v6394 = vadd.f32 %v6234, %v6393
      %v6395 = vpop.f32.mrf.mxu0
      %v6396 = vpop.f32.mrf.mxu0
      %v6397 = vadd.f32 %v6234, %v6396
      %v6398 = vpop.f32.mrf.mxu0
      %6399 = vmatprep.mubr.bf16.mxu0 0
      %6400 = vmatmul.mubr.bf16.gmra.mxu0 %v6267
      %v6401 = vpop.f32.mrf.mxu0
      %v6402 = vadd.f32 %v6234, %v6401
      %v6403 = vpop.f32.mrf.mxu0
      %v6404 = vpop.f32.mrf.mxu0
      %v6405 = vadd.f32 %v6234, %v6404
      %v6406 = vpop.f32.mrf.mxu0
      %6407 = vmatprep.mubr.bf16.mxu0 0
      %6408 = vmatmul.mubr.bf16.gmra.mxu0 %v6270
      %v6409 = vpop.f32.mrf.mxu0
      %v6410 = vadd.f32 %v6234, %v6409
      %v6411 = vpop.f32.mrf.mxu0
      %v6412 = vpop.f32.mrf.mxu0
      %v6413 = vadd.f32 %v6234, %v6412
      %v6414 = vpop.f32.mrf.mxu0
      %6415 = vmatprep.mubr.bf16.mxu0 0
      %6416 = vmatmul.mubr.bf16.gmra.mxu0 %v6273
      %v6417 = vpop.f32.mrf.mxu0
      %v6418 = vadd.f32 %v6234, %v6417
      %v6419 = vpop.f32.mrf.mxu0
      %v6420 = vpop.f32.mrf.mxu0
      %v6421 = vadd.f32 %v6234, %v6420
      %v6422 = vpop.f32.mrf.mxu0
      %6423 = vmatprep.mubr.bf16.mxu0 0
      %6424 = vmatmul.mubr.bf16.gmra.mxu0 %v6276
      %v6425 = vpop.f32.mrf.mxu0
      %v6426 = vadd.f32 %v6234, %v6425
      %v6427 = vpop.f32.mrf.mxu0
      %v6428 = vpop.f32.mrf.mxu0
      %v6429 = vadd.f32 %v6234, %v6428
      %v6430 = vpop.f32.mrf.mxu0
      %6431 = vmatprep.mubr.bf16.mxu0 0
      %6432 = vmatmul.mubr.bf16.gmra.mxu0 %v6279
      %v6433 = vpop.f32.mrf.mxu0
      %v6434 = vadd.f32 %v6234, %v6433
      %v6435 = vpop.f32.mrf.mxu0
      %v6436 = vpop.f32.mrf.mxu0
      %v6437 = vadd.f32 %v6234, %v6436
      %v6438 = vpop.f32.mrf.mxu0
      %6439 = vmatprep.mubr.bf16.mxu0 0
      %6440 = vmatmul.mubr.bf16.gmra.mxu0 %v6282
      %v6441 = vpop.f32.mrf.mxu0
      %v6442 = vadd.f32 %v6234, %v6441
      %v6443 = vpop.f32.mrf.mxu0
      %v6444 = vpop.f32.mrf.mxu0
      %v6445 = vadd.f32 %v6234, %v6444
      %v6446 = vpop.f32.mrf.mxu0
      %6447 = vdwg.mxu0
      %v6448 = vadd.f32 %v6322, %v499
      %v6449 = vadd.f32 %v6325, %v502
      %v6450 = vadd.f32 %v6330, %v507
      %v6451 = vadd.f32 %v6333, %v510
      %v6452 = vadd.f32 %v6338, %v515
      %v6453 = vadd.f32 %v6341, %v518
      %v6454 = vadd.f32 %v6346, %v523
      %v6455 = vadd.f32 %v6349, %v526
      %v6456 = vadd.f32 %v6354, %v531
      %v6457 = vadd.f32 %v6357, %v534
      %v6458 = vadd.f32 %v6362, %v539
      %v6459 = vadd.f32 %v6365, %v542
      %v6460 = vadd.f32 %v6370, %v547
      %v6461 = vadd.f32 %v6373, %v550
      %v6462 = vadd.f32 %v6378, %v555
      %v6463 = vadd.f32 %v6381, %v558
      %v6464 = vadd.f32 %v6386, %v563
      %v6465 = vadd.f32 %v6389, %v566
      %v6466 = vadd.f32 %v6394, %v571
      %v6467 = vadd.f32 %v6397, %v574
      %v6468 = vadd.f32 %v6402, %v579
      %v6469 = vadd.f32 %v6405, %v582
      %v6470 = vadd.f32 %v6410, %v587
      %v6471 = vadd.f32 %v6413, %v590
      %v6472 = vadd.f32 %v6418, %v595
      %v6473 = vadd.f32 %v6421, %v598
      %v6474 = vadd.f32 %v6426, %v603
      %v6475 = vadd.f32 %v6429, %v606
      %v6476 = vadd.f32 %v6434, %v611
      %v6477 = vadd.f32 %v6437, %v614
      %v6478 = vadd.f32 %v6442, %v619
      %v6479 = vadd.f32 %v6445, %v622
      %v6480 = vmax.f32 %v6448, 0.0
      %v6481 = vmax.f32 %v6449, 0.0
      %v6482 = vmax.f32 %v6450, 0.0
      %v6483 = vmax.f32 %v6451, 0.0
      %v6484 = vmax.f32 %v6452, 0.0
      %v6485 = vmax.f32 %v6453, 0.0
      %v6486 = vmax.f32 %v6454, 0.0
      %v6487 = vmax.f32 %v6455, 0.0
      %v6488 = vmax.f32 %v6456, 0.0
      %v6489 = vmax.f32 %v6457, 0.0
      %v6490 = vmax.f32 %v6458, 0.0
      %v6491 = vmax.f32 %v6459, 0.0
      %v6492 = vmax.f32 %v6460, 0.0
      %v6493 = vmax.f32 %v6461, 0.0
      %v6494 = vmax.f32 %v6462, 0.0
      %v6495 = vmax.f32 %v6463, 0.0
      %v6496 = vmax.f32 %v6464, 0.0
      %v6497 = vmax.f32 %v6465, 0.0
      %v6498 = vmax.f32 %v6466, 0.0
      %v6499 = vmax.f32 %v6467, 0.0
      %v6500 = vmax.f32 %v6468, 0.0
      %v6501 = vmax.f32 %v6469, 0.0
      %v6502 = vmax.f32 %v6470, 0.0
      %v6503 = vmax.f32 %v6471, 0.0
      %v6504 = vmax.f32 %v6472, 0.0
      %v6505 = vmax.f32 %v6473, 0.0
      %v6506 = vmax.f32 %v6474, 0.0
      %v6507 = vmax.f32 %v6475, 0.0
      %v6508 = vmax.f32 %v6476, 0.0
      %v6509 = vmax.f32 %v6477, 0.0
      %v6510 = vmax.f32 %v6478, 0.0
      %v6511 = vmax.f32 %v6479, 0.0
      %v6512 = vpack.c.bf16 %v6481, %v6480
      %v6513 = vpack.c.bf16 %v6483, %v6482
      %v6514 = vpack.c.bf16 %v6485, %v6484
      %v6515 = vpack.c.bf16 %v6487, %v6486
      %v6516 = vpack.c.bf16 %v6489, %v6488
      %v6517 = vpack.c.bf16 %v6491, %v6490
      %v6518 = vpack.c.bf16 %v6493, %v6492
      %v6519 = vpack.c.bf16 %v6495, %v6494
      %v6520 = vpack.c.bf16 %v6497, %v6496
      %v6521 = vpack.c.bf16 %v6499, %v6498
      %v6522 = vpack.c.bf16 %v6501, %v6500
      %v6523 = vpack.c.bf16 %v6503, %v6502
      %v6524 = vpack.c.bf16 %v6505, %v6504
      %v6525 = vpack.c.bf16 %v6507, %v6506
      %v6526 = vpack.c.bf16 %v6509, %v6508
      %v6527 = vpack.c.bf16 %v6511, %v6510
      %v6544 = vunpack.c.l.b16 %v6512
      %v6545 = vunpack.c.h.b16 %v6512
      %v6546 = vunpack.c.l.b16 %v6513
      %v6547 = vunpack.c.h.b16 %v6513
      %v6548 = vunpack.c.l.b16 %v6514
      %v6549 = vunpack.c.h.b16 %v6514
      %v6550 = vunpack.c.l.b16 %v6515
      %v6551 = vunpack.c.h.b16 %v6515
      %v6552 = vunpack.c.l.b16 %v6516
      %v6553 = vunpack.c.h.b16 %v6516
      %v6554 = vunpack.c.l.b16 %v6517
      %v6555 = vunpack.c.h.b16 %v6517
      %v6556 = vunpack.c.l.b16 %v6518
      %v6557 = vunpack.c.h.b16 %v6518
      %v6558 = vunpack.c.l.b16 %v6519
      %v6559 = vunpack.c.h.b16 %v6519
      %v6560 = vunpack.c.l.b16 %v6520
      %v6561 = vunpack.c.h.b16 %v6520
      %v6562 = vunpack.c.l.b16 %v6521
      %v6563 = vunpack.c.h.b16 %v6521
      %v6564 = vunpack.c.l.b16 %v6522
      %v6565 = vunpack.c.h.b16 %v6522
      %v6566 = vunpack.c.l.b16 %v6523
      %v6567 = vunpack.c.h.b16 %v6523
      %v6568 = vunpack.c.l.b16 %v6524
      %v6569 = vunpack.c.h.b16 %v6524
      %v6570 = vunpack.c.l.b16 %v6525
      %v6571 = vunpack.c.h.b16 %v6525
      %v6572 = vunpack.c.l.b16 %v6526
      %v6573 = vunpack.c.h.b16 %v6526
      %v6574 = vunpack.c.l.b16 %v6527
      %v6575 = vunpack.c.h.b16 %v6527
      %v6576 = vpack.c.b16 %v6544, %v6544
      %v6577 = vpack.c.b16 %v6545, %v6545
      %v6578 = vpack.c.b16 %v6546, %v6546
      %v6579 = vpack.c.b16 %v6547, %v6547
      %v6580 = vpack.c.b16 %v6548, %v6548
      %v6581 = vpack.c.b16 %v6549, %v6549
      %v6582 = vpack.c.b16 %v6550, %v6550
      %v6583 = vpack.c.b16 %v6551, %v6551
      %v6584 = vpack.c.b16 %v6552, %v6552
      %v6585 = vpack.c.b16 %v6553, %v6553
      %v6586 = vpack.c.b16 %v6554, %v6554
      %v6587 = vpack.c.b16 %v6555, %v6555
      %v6588 = vpack.c.b16 %v6556, %v6556
      %v6589 = vpack.c.b16 %v6557, %v6557
      %v6590 = vpack.c.b16 %v6558, %v6558
      %v6591 = vpack.c.b16 %v6559, %v6559
      %v6592 = vpack.c.b16 %v6560, %v6560
      %v6593 = vpack.c.b16 %v6561, %v6561
      %v6594 = vpack.c.b16 %v6562, %v6562
      %v6595 = vpack.c.b16 %v6563, %v6563
      %v6596 = vpack.c.b16 %v6564, %v6564
      %v6597 = vpack.c.b16 %v6565, %v6565
      %v6598 = vpack.c.b16 %v6566, %v6566
      %v6599 = vpack.c.b16 %v6567, %v6567
      %v6600 = vpack.c.b16 %v6568, %v6568
      %v6601 = vpack.c.b16 %v6569, %v6569
      %v6602 = vpack.c.b16 %v6570, %v6570
      %v6603 = vpack.c.b16 %v6571, %v6571
      %v6604 = vpack.c.b16 %v6572, %v6572
      %v6605 = vpack.c.b16 %v6573, %v6573
      %v6606 = vpack.c.b16 %v6574, %v6574
      %v6607 = vpack.c.b16 %v6575, %v6575
      %vm6640 = vcmask 60416
      %6641 = vst.msk [vmem:[%s278] sm:$0xf] %vm6640, %v6576
      %6642 = vst.msk [vmem:[%s278 + $0x4] sm:$0xf] %vm6640, %v6577
      %6643 = vst.msk [vmem:[%s278 + $0x8] sm:$0xf] %vm6640, %v6578
      %6644 = vst.msk [vmem:[%s278 + $0xc] sm:$0xf] %vm6640, %v6579
      %6645 = vst.msk [vmem:[%s278 + $0x10] sm:$0xf] %vm6640, %v6580
      %6646 = vst.msk [vmem:[%s278 + $0x14] sm:$0xf] %vm6640, %v6581
      %6647 = vst.msk [vmem:[%s278 + $0x18] sm:$0xf] %vm6640, %v6582
      %6648 = vst.msk [vmem:[%s278 + $0x1c] sm:$0xf] %vm6640, %v6583
      %6649 = vst.msk [vmem:[%s278 + $0x20] sm:$0xf] %vm6640, %v6584
      %6650 = vst.msk [vmem:[%s278 + $0x24] sm:$0xf] %vm6640, %v6585
      %6651 = vst.msk [vmem:[%s278 + $0x28] sm:$0xf] %vm6640, %v6586
      %6652 = vst.msk [vmem:[%s278 + $0x2c] sm:$0xf] %vm6640, %v6587
      %6653 = vst.msk [vmem:[%s278 + $0x30] sm:$0xf] %vm6640, %v6588
      %6654 = vst.msk [vmem:[%s278 + $0x34] sm:$0xf] %vm6640, %v6589
      %6655 = vst.msk [vmem:[%s278 + $0x38] sm:$0xf] %vm6640, %v6590
      %6656 = vst.msk [vmem:[%s278 + $0x3c] sm:$0xf] %vm6640, %v6591
      %6657 = vst.msk [vmem:[%s278 + $0x40] sm:$0xf] %vm6640, %v6592
      %6658 = vst.msk [vmem:[%s278 + $0x44] sm:$0xf] %vm6640, %v6593
      %6659 = vst.msk [vmem:[%s278 + $0x48] sm:$0xf] %vm6640, %v6594
      %6660 = vst.msk [vmem:[%s278 + $0x4c] sm:$0xf] %vm6640, %v6595
      %6661 = vst.msk [vmem:[%s278 + $0x50] sm:$0xf] %vm6640, %v6596
      %6662 = vst.msk [vmem:[%s278 + $0x54] sm:$0xf] %vm6640, %v6597
      %6663 = vst.msk [vmem:[%s278 + $0x58] sm:$0xf] %vm6640, %v6598
      %6664 = vst.msk [vmem:[%s278 + $0x5c] sm:$0xf] %vm6640, %v6599
      %6665 = vst.msk [vmem:[%s278 + $0x60] sm:$0xf] %vm6640, %v6600
      %6666 = vst.msk [vmem:[%s278 + $0x64] sm:$0xf] %vm6640, %v6601
      %6667 = vst.msk [vmem:[%s278 + $0x68] sm:$0xf] %vm6640, %v6602
      %6668 = vst.msk [vmem:[%s278 + $0x6c] sm:$0xf] %vm6640, %v6603
      %6669 = vst.msk [vmem:[%s278 + $0x70] sm:$0xf] %vm6640, %v6604
      %6670 = vst.msk [vmem:[%s278 + $0x74] sm:$0xf] %vm6640, %v6605
      %6671 = vst.msk [vmem:[%s278 + $0x78] sm:$0xf] %vm6640, %v6606
      %6672 = vst.msk [vmem:[%s278 + $0x7c] sm:$0xf] %vm6640, %v6607
      %p6673 = scmp.lt.s32.totalorder %s18, 1
      %s6674 = scalar_select %p6673, %s18, 1
      %s6675 = smul.addr %s6674, 32
      %s6676 = smul.addr %s6675, 4
      %s6677 = scalar_lea.vmem %s7, %s6676
      // Predicated region
      $region49: #{tpu_custom_call.1} parent=47 // pred_check
        %p6678 = pneg %p188
      $region50: #{tpu_custom_call.1} parent=47 // pred_check_branch
        %6680 = sbr.rel (%p6678) target = $region52
      $region51: #{tpu_custom_call.1} parent=47 // pred_region
        _
      $region52: #{tpu_custom_call.1} parent=47 // pred_fallthru
        _
    $region48: #{tpu_custom_call.1} parent=5 // pred_fallthru
      _
    %p6681 = scmp.le.s32.totalorder 2, %s13
    // Predicated region
    $region53: #{tpu_custom_call.1} parent=5 // pred_check
      %p6682 = pneg %p6681
    $region54: #{tpu_custom_call.1} parent=5 // pred_check_branch
      %6684 = sbr.rel (%p6682) target = $region56
    $region55: #{tpu_custom_call.1} parent=5 // pred_region
      %s6685 = ssub.s32 %s13, 2
      // Predicated region
      $region57: #{tpu_custom_call.1} parent=55 // pred_check
        %p6686 = pneg %p194
      $region58: #{tpu_custom_call.1} parent=55 // pred_check_branch
        %6688 = sbr.rel (%p6686) target = $region60
      $region59: #{tpu_custom_call.1} parent=55 // pred_region
        %p6689 = scmp.lt.s32.totalorder %s19, 1
        %s6690 = scalar_select %p6689, %s19, 1
        %s6691 = smul.addr %s6690, 32
        %s6692 = smul.addr %s6691, 4
        %s6693 = scalar_lea.vmem %s7, %s6692
      $region60: #{tpu_custom_call.1} parent=55 // pred_fallthru
        _
    $region56: #{tpu_custom_call.1} parent=5 // pred_fallthru
      _
  $region6: #{tpu_custom_call.1} parent=0 // loop_footer
    %s17 = sadd.s32 1, %s13
  $region7: #{tpu_custom_call.1} parent=0 // loop_footer_branch
    %12 = sbr.rel target = $region3
  $region8: #{tpu_custom_call.1} parent=0 // loop_exit
    _

</llo_original>
